<compile_context>
chip_gen: v7x
topology: tpu7x:2x2x1
jax: 0.10.0
libtpu: 0.0.40
codegen_flags: <defaults>
</compile_context>

<pallas_src>
import functools

import jax
import jax.numpy as jnp
from jax import lax
from jax.experimental import pallas as pl
from jax.experimental.pallas import tpu as pltpu

NEG_SLOPE = 0.1
BN_EPS = 1e-5


def _conv_bn_lrelu_kernel(x_ref, w_ref, b_ref, o_ref, *, KH, KW, Wp):
    """Fused conv + folded-BN + LeakyReLU for one image (NHWC, spatial flattened).

    x_ref: (Hp*Wp + KW - 1, Cin)  bf16  zero-padded, spatially flattened input
    w_ref: (KH*KW, Cin, Cout)     bf16  conv weight with BN scale folded in
    b_ref: (1, Cout)              f32   folded BN bias
    o_ref: (Ho*Wp, Cout)          f32   flattened output (cols Wo..Wp-1 are junk)
    """
    M, Cout = o_ref.shape

    # Folded BN bias pre-loaded into the accumulator (single hoisted broadcast).
    acc = jnp.broadcast_to(b_ref[...], (M, Cout)).astype(jnp.float32)

    # KH*KW shifted matmuls; each tap is a contiguous, statically-offset slice
    # of the flattened padded image, so M = Ho*Wp rows per MXU push.
    for dy in range(KH):
        for dx in range(KW):
            start = dy * Wp + dx
            lhs = x_ref[start:start + M, :]                 # bf16 (M, Cin)
            acc = acc + jnp.dot(lhs, w_ref[dy * KW + dx],
                                preferred_element_type=jnp.float32)

    # LeakyReLU(0.1) == max(x, 0.1*x) for slope in (0, 1).
    o_ref[...] = jnp.maximum(acc, NEG_SLOPE * acc).astype(o_ref.dtype)


def conv_bn_lrelu(x_nchw, params, *, stride=1, padding=0):
    """Pallas forward of ConvolutionalLayer.  x: (N, Cin, H, W) f32 -> (N, Cout, Ho, Wo)."""
    if stride != 1:
        raise NotImplementedError("stride > 1 not supported by this Pallas kernel")

    w_oihw, gamma, beta, mean, var = params
    Cout, Cin, KH, KW = w_oihw.shape
    N, C, H, W = x_nchw.shape
    assert C == Cin
    P = int(padding)
    Hp, Wp = H + 2 * P, W + 2 * P
    Ho, Wo = Hp - KH + 1, Wp - KW + 1
    M = Ho * Wp                        # accumulator rows (incl. Wp-Wo junk cols/row)
    Mx = Hp * Wp + (KW - 1)            # flattened input rows (+tail so every tap fits)

    # Fold eval-mode BN: y = (conv(x) - mean) / sqrt(var+eps) * gamma + beta.
    scale = gamma / jnp.sqrt(var + BN_EPS)                                # (Cout,)
    w_hwio = jnp.transpose(w_oihw, (2, 3, 1, 0))                          # (KH,KW,Cin,Cout)
    w_mat = (w_hwio * scale).reshape(KH * KW, Cin, Cout).astype(jnp.bfloat16)
    b_vec = (beta - mean * scale).reshape(1, Cout).astype(jnp.float32)

    # NCHW -> NHWC, zero pad, flatten spatial, cast to bf16 (halves input DMA).
    # Under jit, XLA fuses this into a single copy.
    x = jnp.transpose(x_nchw, (0, 2, 3, 1)).astype(jnp.bfloat16)
    x = jnp.pad(x, ((0, 0), (P, P), (P, P), (0, 0)))
    x = jnp.pad(x.reshape(N, Hp * Wp, Cin), ((0, 0), (0, KW - 1), (0, 0)))

    kernel = functools.partial(_conv_bn_lrelu_kernel, KH=KH, KW=KW, Wp=Wp)
    out_flat = pl.pallas_call(
        kernel,
        out_shape=jax.ShapeDtypeStruct((N, M, Cout), jnp.float32),
        grid=(N,),
        in_specs=[
            pl.BlockSpec((None, Mx, Cin), lambda n: (n, 0, 0)),
            pl.BlockSpec((KH * KW, Cin, Cout), lambda n: (0, 0, 0)),
            pl.BlockSpec((1, Cout), lambda n: (0, 0)),
        ],
        out_specs=pl.BlockSpec((None, M, Cout), lambda n: (n, 0, 0)),
        compiler_params=pltpu.CompilerParams(
            dimension_semantics=("parallel",)),
    )(x, w_mat, b_vec)

    out = out_flat.reshape(N, Ho, Wp, Cout)[:, :, :Wo, :]     # drop junk columns
    return jnp.transpose(out, (0, 3, 1, 2))                   # back to NCHW


def reference(x_nchw, params, *, stride=1, padding=0):
    """Pure-JAX reference matching the PyTorch module (eval-mode BN) semantics."""
    w_oihw, gamma, beta, mean, var = params
    y = lax.conv_general_dilated(
        x_nchw.astype(jnp.float32), w_oihw.astype(jnp.float32),
        window_strides=(stride, stride),
        padding=((padding, padding), (padding, padding)),
        dimension_numbers=("NCHW", "OIHW", "NCHW"),
        precision=lax.Precision.HIGHEST)
    g = gamma[None, :, None, None]
    b = beta[None, :, None, None]
    m = mean[None, :, None, None]
    v = var[None, :, None, None]
    y = (y - m) / jnp.sqrt(v + BN_EPS) * g + b
    return jnp.where(y >= 0, y, NEG_SLOPE * y)


def init_params(key, in_channels, out_channels, kernel_size):
    """Deterministic synthetic parameters (Conv2d bias=False + BatchNorm2d)."""
    k = jax.random.split(key, 5)
    fan_in = in_channels * kernel_size * kernel_size
    w = jax.random.normal(
        k[0], (out_channels, in_channels, kernel_size, kernel_size),
        jnp.float32) / jnp.sqrt(float(fan_in))                           # OIHW
    gamma = 0.5 + jax.random.uniform(k[1], (out_channels,), jnp.float32)
    beta = 0.1 * jax.random.normal(k[2], (out_channels,), jnp.float32)
    mean = 0.1 * jax.random.normal(k[3], (out_channels,), jnp.float32)
    var = 0.5 + jax.random.uniform(k[4], (out_channels,), jnp.float32)
    return (w, gamma, beta, mean, var)


if __name__ == "__main__":
    key = jax.random.PRNGKey(0)
    kx, kp1, kp2 = jax.random.split(key, 3)

    # Config 1: the canonical 3x3 / stride 1 / pad 1 ConvolutionalLayer.
    N, Cin, H, W, Cout = 2, 4, 16, 16, 8
    x = jax.random.normal(kx, (N, Cin, H, W), jnp.float32)

    params3 = init_params(kp1, Cin, Cout, 3)
    fwd3 = jax.jit(functools.partial(conv_bn_lrelu, stride=1, padding=1))
    out3 = jax.block_until_ready(fwd3(x, params3))
    ref3 = reference(x, params3, stride=1, padding=1)
    assert out3.shape == ref3.shape == (N, Cout, H, W)
    # Tolerance loosened for bf16 MXU inputs (f32 accumulation).
    assert jnp.allclose(out3, ref3, atol=5e-2, rtol=5e-2), "mismatch (3x3 conv)"

    # Config 2: 1x1 / stride 1 / pad 0 (same kernel, degenerate tap count).
    params1 = init_params(kp2, Cin, Cout, 1)
    fwd1 = jax.jit(functools.partial(conv_bn_lrelu, stride=1, padding=0))
    out1 = jax.block_until_ready(fwd1(x, params1))
    ref1 = reference(x, params1, stride=1, padding=0)
    assert out1.shape == ref1.shape == (N, Cout, H, W)
    assert jnp.allclose(out1, ref1, atol=5e-2, rtol=5e-2), "mismatch (1x1 conv)"

    print("KERNEL_OK")
</pallas_src>

<mosaic_0001>
module attributes {stable_mosaic.version = 11 : i64} {
  func.func @_conv_bn_lrelu_kernel(%arg0: i32, %arg1: memref<1x326x4xbf16, #tpu.memory_space<vmem>>, %arg2: memref<9x4x8xbf16, #tpu.memory_space<vmem>>, %arg3: memref<1x8xf32, #tpu.memory_space<vmem>>, %arg4: memref<1x288x8xf32, #tpu.memory_space<vmem>>) attributes {dimension_semantics = [#tpu.dimension_semantics<parallel>], iteration_bounds = array<i64: 2>, scalar_prefetch = 0 : i64, scratch_operands = 0 : i64, tpu.core_type = #tpu.core_type<tc>, window_params = [{transform_indices = @transform_0, window_bounds = array<i64: 1, 326, 4>}, {pipeline_mode = #tpu.pipeline_mode<synchronous>, transform_indices = @transform_1, window_bounds = array<i64: 9, 4, 8>}, {pipeline_mode = #tpu.pipeline_mode<synchronous>, transform_indices = @transform_2, window_bounds = array<i64: 1, 8>}, {transform_indices = @transform_3, window_bounds = array<i64: 1, 288, 8>}]} {
    %c0 = arith.constant 0 : index
    %c0_0 = arith.constant 0 : index
    %0 = vector.load %arg3[%c0, %c0_0] : memref<1x8xf32, #tpu.memory_space<vmem>>, vector<1x8xf32>
    %1 = vector.shape_cast %0 : vector<1x8xf32> to vector<1x8xf32>
    %2 = vector.broadcast %1 : vector<1x8xf32> to vector<288x8xf32>
    %c0_1 = arith.constant 0 : index
    %c0_2 = arith.constant 0 : index
    %c0_3 = arith.constant 0 : index
    %3 = vector.load %arg1[%c0_1, %c0_2, %c0_3] : memref<1x326x4xbf16, #tpu.memory_space<vmem>>, vector<1x288x4xbf16>
    %4 = vector.shape_cast %3 : vector<1x288x4xbf16> to vector<288x4xbf16>
    %c0_4 = arith.constant 0 : index
    %c0_5 = arith.constant 0 : index
    %c0_6 = arith.constant 0 : index
    %5 = vector.load %arg2[%c0_4, %c0_5, %c0_6] : memref<9x4x8xbf16, #tpu.memory_space<vmem>>, vector<1x4x8xbf16>
    %6 = vector.shape_cast %5 : vector<1x4x8xbf16> to vector<4x8xbf16>
    %cst = arith.constant dense<0.000000e+00> : vector<288x8xf32>
    %7 = tpu.matmul %4, %6, %cst {dimension_numbers = #tpu.dot_dimension_numbers<[1], [0], [0], [1], [0, 0, 1, 1], [], []>} : vector<288x4xbf16>, vector<4x8xbf16>, vector<288x8xf32> -> vector<288x8xf32>
    %8 = arith.addf %2, %7 : vector<288x8xf32>
    %c0_7 = arith.constant 0 : index
    %c1 = arith.constant 1 : index
    %c0_8 = arith.constant 0 : index
    %9 = vector.load %arg1[%c0_7, %c1, %c0_8] : memref<1x326x4xbf16, #tpu.memory_space<vmem>>, vector<1x288x4xbf16>
    %10 = vector.shape_cast %9 : vector<1x288x4xbf16> to vector<288x4xbf16>
    %c1_9 = arith.constant 1 : index
    %c0_10 = arith.constant 0 : index
    %c0_11 = arith.constant 0 : index
    %11 = vector.load %arg2[%c1_9, %c0_10, %c0_11] : memref<9x4x8xbf16, #tpu.memory_space<vmem>>, vector<1x4x8xbf16>
    %12 = vector.shape_cast %11 : vector<1x4x8xbf16> to vector<4x8xbf16>
    %cst_12 = arith.constant dense<0.000000e+00> : vector<288x8xf32>
    %13 = tpu.matmul %10, %12, %cst_12 {dimension_numbers = #tpu.dot_dimension_numbers<[1], [0], [0], [1], [0, 0, 1, 1], [], []>} : vector<288x4xbf16>, vector<4x8xbf16>, vector<288x8xf32> -> vector<288x8xf32>
    %14 = arith.addf %8, %13 : vector<288x8xf32>
    %c0_13 = arith.constant 0 : index
    %c2 = arith.constant 2 : index
    %c0_14 = arith.constant 0 : index
    %15 = vector.load %arg1[%c0_13, %c2, %c0_14] : memref<1x326x4xbf16, #tpu.memory_space<vmem>>, vector<1x288x4xbf16>
    %16 = vector.shape_cast %15 : vector<1x288x4xbf16> to vector<288x4xbf16>
    %c2_15 = arith.constant 2 : index
    %c0_16 = arith.constant 0 : index
    %c0_17 = arith.constant 0 : index
    %17 = vector.load %arg2[%c2_15, %c0_16, %c0_17] : memref<9x4x8xbf16, #tpu.memory_space<vmem>>, vector<1x4x8xbf16>
    %18 = vector.shape_cast %17 : vector<1x4x8xbf16> to vector<4x8xbf16>
    %cst_18 = arith.constant dense<0.000000e+00> : vector<288x8xf32>
    %19 = tpu.matmul %16, %18, %cst_18 {dimension_numbers = #tpu.dot_dimension_numbers<[1], [0], [0], [1], [0, 0, 1, 1], [], []>} : vector<288x4xbf16>, vector<4x8xbf16>, vector<288x8xf32> -> vector<288x8xf32>
    %20 = arith.addf %14, %19 : vector<288x8xf32>
    %c0_19 = arith.constant 0 : index
    %c18 = arith.constant 18 : index
    %c0_20 = arith.constant 0 : index
    %21 = vector.load %arg1[%c0_19, %c18, %c0_20] : memref<1x326x4xbf16, #tpu.memory_space<vmem>>, vector<1x288x4xbf16>
    %22 = vector.shape_cast %21 : vector<1x288x4xbf16> to vector<288x4xbf16>
    %c3 = arith.constant 3 : index
    %c0_21 = arith.constant 0 : index
    %c0_22 = arith.constant 0 : index
    %23 = vector.load %arg2[%c3, %c0_21, %c0_22] : memref<9x4x8xbf16, #tpu.memory_space<vmem>>, vector<1x4x8xbf16>
    %24 = vector.shape_cast %23 : vector<1x4x8xbf16> to vector<4x8xbf16>
    %cst_23 = arith.constant dense<0.000000e+00> : vector<288x8xf32>
    %25 = tpu.matmul %22, %24, %cst_23 {dimension_numbers = #tpu.dot_dimension_numbers<[1], [0], [0], [1], [0, 0, 1, 1], [], []>} : vector<288x4xbf16>, vector<4x8xbf16>, vector<288x8xf32> -> vector<288x8xf32>
    %26 = arith.addf %20, %25 : vector<288x8xf32>
    %c0_24 = arith.constant 0 : index
    %c19 = arith.constant 19 : index
    %c0_25 = arith.constant 0 : index
    %27 = vector.load %arg1[%c0_24, %c19, %c0_25] : memref<1x326x4xbf16, #tpu.memory_space<vmem>>, vector<1x288x4xbf16>
    %28 = vector.shape_cast %27 : vector<1x288x4xbf16> to vector<288x4xbf16>
    %c4 = arith.constant 4 : index
    %c0_26 = arith.constant 0 : index
    %c0_27 = arith.constant 0 : index
    %29 = vector.load %arg2[%c4, %c0_26, %c0_27] : memref<9x4x8xbf16, #tpu.memory_space<vmem>>, vector<1x4x8xbf16>
    %30 = vector.shape_cast %29 : vector<1x4x8xbf16> to vector<4x8xbf16>
    %cst_28 = arith.constant dense<0.000000e+00> : vector<288x8xf32>
    %31 = tpu.matmul %28, %30, %cst_28 {dimension_numbers = #tpu.dot_dimension_numbers<[1], [0], [0], [1], [0, 0, 1, 1], [], []>} : vector<288x4xbf16>, vector<4x8xbf16>, vector<288x8xf32> -> vector<288x8xf32>
    %32 = arith.addf %26, %31 : vector<288x8xf32>
    %c0_29 = arith.constant 0 : index
    %c20 = arith.constant 20 : index
    %c0_30 = arith.constant 0 : index
    %33 = vector.load %arg1[%c0_29, %c20, %c0_30] : memref<1x326x4xbf16, #tpu.memory_space<vmem>>, vector<1x288x4xbf16>
    %34 = vector.shape_cast %33 : vector<1x288x4xbf16> to vector<288x4xbf16>
    %c5 = arith.constant 5 : index
    %c0_31 = arith.constant 0 : index
    %c0_32 = arith.constant 0 : index
    %35 = vector.load %arg2[%c5, %c0_31, %c0_32] : memref<9x4x8xbf16, #tpu.memory_space<vmem>>, vector<1x4x8xbf16>
    %36 = vector.shape_cast %35 : vector<1x4x8xbf16> to vector<4x8xbf16>
    %cst_33 = arith.constant dense<0.000000e+00> : vector<288x8xf32>
    %37 = tpu.matmul %34, %36, %cst_33 {dimension_numbers = #tpu.dot_dimension_numbers<[1], [0], [0], [1], [0, 0, 1, 1], [], []>} : vector<288x4xbf16>, vector<4x8xbf16>, vector<288x8xf32> -> vector<288x8xf32>
    %38 = arith.addf %32, %37 : vector<288x8xf32>
    %c0_34 = arith.constant 0 : index
    %c36 = arith.constant 36 : index
    %c0_35 = arith.constant 0 : index
    %39 = vector.load %arg1[%c0_34, %c36, %c0_35] : memref<1x326x4xbf16, #tpu.memory_space<vmem>>, vector<1x288x4xbf16>
    %40 = vector.shape_cast %39 : vector<1x288x4xbf16> to vector<288x4xbf16>
    %c6 = arith.constant 6 : index
    %c0_36 = arith.constant 0 : index
    %c0_37 = arith.constant 0 : index
    %41 = vector.load %arg2[%c6, %c0_36, %c0_37] : memref<9x4x8xbf16, #tpu.memory_space<vmem>>, vector<1x4x8xbf16>
    %42 = vector.shape_cast %41 : vector<1x4x8xbf16> to vector<4x8xbf16>
    %cst_38 = arith.constant dense<0.000000e+00> : vector<288x8xf32>
    %43 = tpu.matmul %40, %42, %cst_38 {dimension_numbers = #tpu.dot_dimension_numbers<[1], [0], [0], [1], [0, 0, 1, 1], [], []>} : vector<288x4xbf16>, vector<4x8xbf16>, vector<288x8xf32> -> vector<288x8xf32>
    %44 = arith.addf %38, %43 : vector<288x8xf32>
    %c0_39 = arith.constant 0 : index
    %c37 = arith.constant 37 : index
    %c0_40 = arith.constant 0 : index
    %45 = vector.load %arg1[%c0_39, %c37, %c0_40] : memref<1x326x4xbf16, #tpu.memory_space<vmem>>, vector<1x288x4xbf16>
    %46 = vector.shape_cast %45 : vector<1x288x4xbf16> to vector<288x4xbf16>
    %c7 = arith.constant 7 : index
    %c0_41 = arith.constant 0 : index
    %c0_42 = arith.constant 0 : index
    %47 = vector.load %arg2[%c7, %c0_41, %c0_42] : memref<9x4x8xbf16, #tpu.memory_space<vmem>>, vector<1x4x8xbf16>
    %48 = vector.shape_cast %47 : vector<1x4x8xbf16> to vector<4x8xbf16>
    %cst_43 = arith.constant dense<0.000000e+00> : vector<288x8xf32>
    %49 = tpu.matmul %46, %48, %cst_43 {dimension_numbers = #tpu.dot_dimension_numbers<[1], [0], [0], [1], [0, 0, 1, 1], [], []>} : vector<288x4xbf16>, vector<4x8xbf16>, vector<288x8xf32> -> vector<288x8xf32>
    %50 = arith.addf %44, %49 : vector<288x8xf32>
    %c0_44 = arith.constant 0 : index
    %c38 = arith.constant 38 : index
    %c0_45 = arith.constant 0 : index
    %51 = vector.load %arg1[%c0_44, %c38, %c0_45] : memref<1x326x4xbf16, #tpu.memory_space<vmem>>, vector<1x288x4xbf16>
    %52 = vector.shape_cast %51 : vector<1x288x4xbf16> to vector<288x4xbf16>
    %c8 = arith.constant 8 : index
    %c0_46 = arith.constant 0 : index
    %c0_47 = arith.constant 0 : index
    %53 = vector.load %arg2[%c8, %c0_46, %c0_47] : memref<9x4x8xbf16, #tpu.memory_space<vmem>>, vector<1x4x8xbf16>
    %54 = vector.shape_cast %53 : vector<1x4x8xbf16> to vector<4x8xbf16>
    %cst_48 = arith.constant dense<0.000000e+00> : vector<288x8xf32>
    %55 = tpu.matmul %52, %54, %cst_48 {dimension_numbers = #tpu.dot_dimension_numbers<[1], [0], [0], [1], [0, 0, 1, 1], [], []>} : vector<288x4xbf16>, vector<4x8xbf16>, vector<288x8xf32> -> vector<288x8xf32>
    %56 = arith.addf %50, %55 : vector<288x8xf32>
    %cst_49 = arith.constant 1.000000e-01 : f32
    %57 = vector.broadcast %cst_49 : f32 to vector<288x8xf32>
    %58 = arith.mulf %57, %56 : vector<288x8xf32>
    %59 = arith.maximumf %56, %58 : vector<288x8xf32>
    %c0_50 = arith.constant 0 : index
    %c0_51 = arith.constant 0 : index
    %c0_52 = arith.constant 0 : index
    %60 = vector.load %arg4[%c0_50, %c0_51, %c0_52] : memref<1x288x8xf32, #tpu.memory_space<vmem>>, vector<1x288x8xf32>
    %61 = vector.shape_cast %60 : vector<1x288x8xf32> to vector<288x8xf32>
    %62 = vector.shape_cast %59 : vector<288x8xf32> to vector<1x288x8xf32>
    tpu.vector_store %arg4[%c0_50, %c0_51, %c0_52], %62 {strides = array<i32>} : memref<1x288x8xf32, #tpu.memory_space<vmem>>, vector<1x288x8xf32>,
    return
  }
  func.func @transform_0(%arg0: i32) -> (i32, i32, i32) {
    %c0_i32 = arith.constant 0 : i32
    %c0_i32_0 = arith.constant 0 : i32
    %c0_i32_1 = arith.constant 0 : i32
    return %arg0, %c0_i32, %c0_i32_0 : i32, i32, i32
  }
  func.func @transform_1(%arg0: i32) -> (i32, i32, i32) {
    %c0_i32 = arith.constant 0 : i32
    %c0_i32_0 = arith.constant 0 : i32
    %c0_i32_1 = arith.constant 0 : i32
    %c0_i32_2 = arith.constant 0 : i32
    return %c0_i32, %c0_i32_0, %c0_i32_1 : i32, i32, i32
  }
  func.func @transform_2(%arg0: i32) -> (i32, i32) {
    %c0_i32 = arith.constant 0 : i32
    %c0_i32_0 = arith.constant 0 : i32
    %c0_i32_1 = arith.constant 0 : i32
    return %c0_i32, %c0_i32_0 : i32, i32
  }
  func.func @transform_3(%arg0: i32) -> (i32, i32, i32) {
    %c0_i32 = arith.constant 0 : i32
    %c0_i32_0 = arith.constant 0 : i32
    %c0_i32_1 = arith.constant 0 : i32
    return %arg0, %c0_i32, %c0_i32_0 : i32, i32, i32
  }
}

</mosaic_0001>

<llo_original>
// kernel: conv_bn_lrelu.1
$region0: #{conv_bn_lrelu.1}
  #allocation0 [shape = 'u32[]', space=smem, size = 0x4, offset = 0x4, fixed_abs, tag = 'smem constant byte address 0x4 - core index']
  #allocation1 [shape = 'u32[144,128]{1,0:T(1,128)}', space=vmem, size = 0x12000, scoped, tag = 'internal scratch']
  %s0 = inlined_call_operand.vmem [shape: bf16[2,326,4], index: 0, kind: input, shape index: {}]
  %s1 = inlined_call_operand.vmem [shape: bf16[9,4,8], index: 1, kind: input, shape index: {}]
  %s2 = inlined_call_operand.vmem [shape: f32[1,8], index: 2, kind: input, shape index: {}]
  %s3 = inlined_call_operand.vmem [shape: f32[2,288,8], index: 3, kind: output, shape index: {}]
  %s4 = sld [smem:[#allocation0]]
  $region45: #{conv_bn_lrelu.1} parent=0
    _
  %s6 = ssub.s32 1, %s4
  %s7 = scalar_select 0, %s6, %s4
  loop: start=0, step=1, limit=4
  $region2: #{conv_bn_lrelu.1} parent=0 // loop_pre_header
    _
  $region3: #{conv_bn_lrelu.1} parent=0 // loop_header
    %s9 = sphi 0, %s13
    %p10 = scmp.ge.s32.totalorder %s9, 4
    %s19 = sphi 0, %s21
    %s22 = sphi 0, %s19
    %s23 = sphi 0, %s22
    %s39 = sphi 0, %s23
    %s43 = sphi 0, %s43
    %s45 = sphi 0, %s43
    %s46 = sphi 0, %s45
    %s60 = sphi 0, %s46
    %s64 = sphi 0, %s64
    %s66 = sphi 0, %s64
    %s67 = sphi 0, %s66
    %s81 = sphi 0, %s67
    %s87 = sphi 0, %s89
    %s90 = sphi 0, %s87
    %s91 = sphi 0, %s90
    %s107 = sphi 0, %s91
  $region4: #{conv_bn_lrelu.1} parent=0 // loop_header_branch
    %12 = sbr.rel (%p10) target = $region8
  $region5: #{conv_bn_lrelu.1} parent=0 // loop_body
    %s14 = ssub.s32 %s9, 1
    %s15 = ssub.s32 %s9, 2
    %s16 = sadd.s32 %s9, 1
    %s17 = ssub.s32 %s9, %s16
    %p18 = scmp.eq.s32.totalorder %s17, 0
    %s20 = sadd.s32 %s19, 1
    %s21 = scalar_select %p18, %s19, %s20
    %p24 = pneg %p18
    %p25 = scmp.eq.s32.totalorder %s9, 1
    %p26 = por %p24, %p25
    %p27 = scmp.ne.s32.totalorder %s19, %s22
    %p28 = scmp.eq.s32.totalorder %s9, 0
    %p29 = por %p27, %p28
    %p30 = scmp.ne.s32.totalorder %s19, %s22
    %p31 = scmp.eq.s32.totalorder %s14, 1
    %p32 = por %p30, %p31
    %p33 = scmp.ne.s32.totalorder %s22, %s23
    %p34 = scmp.eq.s32.totalorder %s14, 0
    %p35 = por %p33, %p34
    %p36 = scmp.ne.s32.totalorder %s22, %s23
    %p37 = scmp.eq.s32.totalorder %s15, 1
    %p38 = por %p36, %p37
    %p40 = scmp.ne.s32.totalorder %s23, %s39
    %p41 = scmp.eq.s32.totalorder %s15, 0
    %p42 = por %p40, %p41
    %s44 = sadd.s32 %s43, 1
    %p47 = scmp.eq.s32.totalorder %s9, 1
    %p48 = scmp.ne.s32.totalorder %s43, %s45
    %p49 = scmp.eq.s32.totalorder %s9, 0
    %p50 = por %p48, %p49
    %p51 = scmp.ne.s32.totalorder %s43, %s45
    %p52 = scmp.eq.s32.totalorder %s14, 1
    %p53 = por %p51, %p52
    %p54 = scmp.ne.s32.totalorder %s45, %s46
    %p55 = scmp.eq.s32.totalorder %s14, 0
    %p56 = por %p54, %p55
    %p57 = scmp.ne.s32.totalorder %s45, %s46
    %p58 = scmp.eq.s32.totalorder %s15, 1
    %p59 = por %p57, %p58
    %p61 = scmp.ne.s32.totalorder %s46, %s60
    %p62 = scmp.eq.s32.totalorder %s15, 0
    %p63 = por %p61, %p62
    %s65 = sadd.s32 %s64, 1
    %p68 = scmp.eq.s32.totalorder %s9, 1
    %p69 = scmp.ne.s32.totalorder %s64, %s66
    %p70 = scmp.eq.s32.totalorder %s9, 0
    %p71 = por %p69, %p70
    %p72 = scmp.ne.s32.totalorder %s64, %s66
    %p73 = scmp.eq.s32.totalorder %s14, 1
    %p74 = por %p72, %p73
    %p75 = scmp.ne.s32.totalorder %s66, %s67
    %p76 = scmp.eq.s32.totalorder %s14, 0
    %p77 = por %p75, %p76
    %p78 = scmp.ne.s32.totalorder %s66, %s67
    %p79 = scmp.eq.s32.totalorder %s15, 1
    %p80 = por %p78, %p79
    %p82 = scmp.ne.s32.totalorder %s67, %s81
    %p83 = scmp.eq.s32.totalorder %s15, 0
    %p84 = por %p82, %p83
    %s85 = ssub.s32 %s9, %s16
    %p86 = scmp.eq.s32.totalorder %s85, 0
    %s88 = sadd.s32 %s87, 1
    %s89 = scalar_select %p86, %s87, %s88
    %p92 = pneg %p86
    %p93 = scmp.eq.s32.totalorder %s9, 1
    %p94 = por %p92, %p93
    %p95 = scmp.ne.s32.totalorder %s87, %s90
    %p96 = scmp.eq.s32.totalorder %s9, 0
    %p97 = por %p95, %p96
    %p98 = scmp.ne.s32.totalorder %s87, %s90
    %p99 = scmp.eq.s32.totalorder %s14, 1
    %p100 = por %p98, %p99
    %p101 = scmp.ne.s32.totalorder %s90, %s91
    %p102 = scmp.eq.s32.totalorder %s14, 0
    %p103 = por %p101, %p102
    %p104 = scmp.ne.s32.totalorder %s90, %s91
    %p105 = scmp.eq.s32.totalorder %s15, 1
    %p106 = por %p104, %p105
    %p108 = scmp.ne.s32.totalorder %s91, %s107
    %p109 = scmp.eq.s32.totalorder %s15, 0
    %p110 = por %p108, %p109
    %p111 = scmp.le.s32.totalorder 1, %s9
    %p112 = scmp.lt.s32.totalorder %s9, 3
    %p113 = pnand %p111, %p112
    %p114 = pneg %p113
    // Predicated region
    $region9: #{conv_bn_lrelu.1} parent=5 // pred_check
      _
    $region10: #{conv_bn_lrelu.1} parent=5 // pred_check_branch
      %116 = sbr.rel (%p113) target = $region12
    $region11: #{conv_bn_lrelu.1} parent=5 // pred_region
      %s117 = ssub.s32 %s9, 1
      // Predicated region
      $region13: #{conv_bn_lrelu.1} parent=11 // pred_check
        %p118 = pneg %p56
      $region14: #{conv_bn_lrelu.1} parent=11 // pred_check_branch
        %120 = sbr.rel (%p118) target = $region16
      $region15: #{conv_bn_lrelu.1} parent=11 // pred_region
        _
      $region16: #{conv_bn_lrelu.1} parent=11 // pred_fallthru
        _
      // Predicated region
      $region17: #{conv_bn_lrelu.1} parent=11 // pred_check
        %p121 = pneg %p77
      $region18: #{conv_bn_lrelu.1} parent=11 // pred_check_branch
        %123 = sbr.rel (%p121) target = $region20
      $region19: #{conv_bn_lrelu.1} parent=11 // pred_region
        _
      $region20: #{conv_bn_lrelu.1} parent=11 // pred_fallthru
        _
    $region12: #{conv_bn_lrelu.1} parent=5 // pred_fallthru
      _
    %p124 = scmp.lt.s32.totalorder %s9, 2
    // Predicated region
    $region21: #{conv_bn_lrelu.1} parent=5 // pred_check
      %p125 = pneg %p124
    $region22: #{conv_bn_lrelu.1} parent=5 // pred_check_branch
      %127 = sbr.rel (%p125) target = $region24
    $region23: #{conv_bn_lrelu.1} parent=5 // pred_region
      // Predicated region
      $region25: #{conv_bn_lrelu.1} parent=23 // pred_check
        %p128 = pneg %p29
      $region26: #{conv_bn_lrelu.1} parent=23 // pred_check_branch
        %130 = sbr.rel (%p128) target = $region28
      $region27: #{conv_bn_lrelu.1} parent=23 // pred_region
        %p131 = scmp.lt.s32.totalorder %s9, 1
        %s132 = scalar_select %p131, %s9, 1
        %s133 = smul.addr %s132, 41
        %s134 = smul.addr %s133, 4
        %s135 = scalar_lea.vmem %s0, %s134
      $region28: #{conv_bn_lrelu.1} parent=23 // pred_fallthru
        _
    $region24: #{conv_bn_lrelu.1} parent=5 // pred_fallthru
      _
    %p136 = scmp.le.s32.totalorder 1, %s9
    %p137 = scmp.lt.s32.totalorder %s9, 3
    %p138 = pnand %p136, %p137
    %p139 = pneg %p138
    // Predicated region
    $region29: #{conv_bn_lrelu.1} parent=5 // pred_check
      _
    $region30: #{conv_bn_lrelu.1} parent=5 // pred_check_branch
      %141 = sbr.rel (%p138) target = $region32
    $region31: #{conv_bn_lrelu.1} parent=5 // pred_region
      %s142 = ssub.s32 %s9, 1
      %p143 = scmp.lt.s32.totalorder %s14, 1
      %s144 = scalar_select %p143, %s14, 1
      %s145 = smul.addr %s144, 41
      %s146 = smul.addr %s145, 4
      %s147 = scalar_lea.vmem %s0, %s146
      %p148 = pneg %p35
      %p149 = pneg %p32
      %p150 = pneg %p56
      %p151 = pneg %p53
      %p152 = pneg %p77
      %p153 = pneg %p74
      %p154 = pneg %p103
      %p155 = pneg %p100
      %p156 = scmp.lt.s32.totalorder %s14, 1
      %s157 = scalar_select %p156, %s14, 1
      %s158 = smul.addr %s157, 36
      %s159 = smul.addr %s158, 8
      %s160 = scalar_lea.vmem %s3, %s159
      %p161 = scmp.lt.s32.totalorder %s14, 1
      %s162 = scalar_select %p161, %s14, 1
      %s163 = smul.addr %s162, 41
      %s164 = smul.addr %s163, 4
      %s165 = scalar_lea.vmem %s0, %s164
      %p166 = scmp.lt.s32.totalorder %s14, 1
      %s167 = scalar_select %p166, %s14, 1
      %s168 = smul.addr %s167, 36
      %s169 = smul.addr %s168, 8
      %s170 = scalar_lea.vmem %s3, %s169
      %v172 = vld [vmem:[%s2] sm:$0x1]
      %v174 = vlaneseq
      %v175 = vshrl.u32 %v174, 7
      %v176 = vsub.s32 0, %v175
      %v177 = vrot.slane %v172, %v176
      %v179 = vld [vmem:[%s165] sm:$0xf]
      %v180 = vld [vmem:[%s165 + $0x4] sm:$0xf]
      %v181 = vld [vmem:[%s165 + $0x8] sm:$0xf]
      %v182 = vld [vmem:[%s165 + $0xc] sm:$0xf]
      %v183 = vld [vmem:[%s165 + $0x10] sm:$0xf]
      %v184 = vld [vmem:[%s165 + $0x14] sm:$0xf]
      %v185 = vld [vmem:[%s165 + $0x18] sm:$0xf]
      %v186 = vld [vmem:[%s165 + $0x1c] sm:$0xf]
      %v187 = vld [vmem:[%s165 + $0x20] sm:$0xf]
      %v188 = vld [vmem:[%s165 + $0x24] sm:$0xf]
      %v189 = vld [vmem:[%s165 + $0x28] sm:$0xf]
      %v190 = vld [vmem:[%s165 + $0x2c] sm:$0xf]
      %v191 = vld [vmem:[%s165 + $0x30] sm:$0xf]
      %v192 = vld [vmem:[%s165 + $0x34] sm:$0xf]
      %v193 = vld [vmem:[%s165 + $0x38] sm:$0xf]
      %v194 = vld [vmem:[%s165 + $0x3c] sm:$0xf]
      %v195 = vld [vmem:[%s165 + $0x40] sm:$0xf]
      %v196 = vld [vmem:[%s165 + $0x44] sm:$0xf]
      %v197 = vld [vmem:[%s165 + $0x48] sm:$0xf]
      %v198 = vld [vmem:[%s165 + $0x4c] sm:$0xf]
      %v199 = vld [vmem:[%s165 + $0x50] sm:$0xf]
      %v200 = vld [vmem:[%s165 + $0x54] sm:$0xf]
      %v201 = vld [vmem:[%s165 + $0x58] sm:$0xf]
      %v202 = vld [vmem:[%s165 + $0x5c] sm:$0xf]
      %v203 = vld [vmem:[%s165 + $0x60] sm:$0xf]
      %v204 = vld [vmem:[%s165 + $0x64] sm:$0xf]
      %v205 = vld [vmem:[%s165 + $0x68] sm:$0xf]
      %v206 = vld [vmem:[%s165 + $0x6c] sm:$0xf]
      %v207 = vld [vmem:[%s165 + $0x70] sm:$0xf]
      %v208 = vld [vmem:[%s165 + $0x74] sm:$0xf]
      %v209 = vld [vmem:[%s165 + $0x78] sm:$0xf]
      %v210 = vld [vmem:[%s165 + $0x7c] sm:$0xf]
      %v211 = vld [vmem:[%s165 + $0x80] sm:$0xf]
      %v212 = vld [vmem:[%s165 + $0x84] sm:$0xf]
      %v213 = vld [vmem:[%s165 + $0x88] sm:$0xf]
      %v214 = vld [vmem:[%s165 + $0x8c] sm:$0xf]
      %v215 = vld [vmem:[%s1] sm:$0x3]
      %v252 = vunpack.c.l.b16 %v179
      %v253 = vunpack.c.l.b16 %v180
      %v254 = vunpack.c.l.b16 %v181
      %v255 = vunpack.c.l.b16 %v182
      %v256 = vunpack.c.l.b16 %v183
      %v257 = vunpack.c.l.b16 %v184
      %v258 = vunpack.c.l.b16 %v185
      %v259 = vunpack.c.l.b16 %v186
      %v260 = vunpack.c.l.b16 %v187
      %v261 = vunpack.c.l.b16 %v188
      %v262 = vunpack.c.l.b16 %v189
      %v263 = vunpack.c.l.b16 %v190
      %v264 = vunpack.c.l.b16 %v191
      %v265 = vunpack.c.l.b16 %v192
      %v266 = vunpack.c.l.b16 %v193
      %v267 = vunpack.c.l.b16 %v194
      %v268 = vunpack.c.l.b16 %v195
      %v269 = vunpack.c.l.b16 %v196
      %v270 = vunpack.c.l.b16 %v197
      %v271 = vunpack.c.l.b16 %v198
      %v272 = vunpack.c.l.b16 %v199
      %v273 = vunpack.c.l.b16 %v200
      %v274 = vunpack.c.l.b16 %v201
      %v275 = vunpack.c.l.b16 %v202
      %v276 = vunpack.c.l.b16 %v203
      %v277 = vunpack.c.l.b16 %v204
      %v278 = vunpack.c.l.b16 %v205
      %v279 = vunpack.c.l.b16 %v206
      %v280 = vunpack.c.l.b16 %v207
      %v281 = vunpack.c.l.b16 %v208
      %v282 = vunpack.c.l.b16 %v209
      %v283 = vunpack.c.l.b16 %v210
      %v284 = vunpack.c.l.b16 %v211
      %v285 = vunpack.c.l.b16 %v212
      %v286 = vunpack.c.l.b16 %v213
      %v287 = vunpack.c.l.b16 %v214
      %v288 = vpack.c.b16 %v253, %v252
      %v289 = vpack.c.b16 %v255, %v254
      %v290 = vpack.c.b16 %v257, %v256
      %v291 = vpack.c.b16 %v259, %v258
      %v292 = vpack.c.b16 %v261, %v260
      %v293 = vpack.c.b16 %v263, %v262
      %v294 = vpack.c.b16 %v265, %v264
      %v295 = vpack.c.b16 %v267, %v266
      %v296 = vpack.c.b16 %v269, %v268
      %v297 = vpack.c.b16 %v271, %v270
      %v298 = vpack.c.b16 %v273, %v272
      %v299 = vpack.c.b16 %v275, %v274
      %v300 = vpack.c.b16 %v277, %v276
      %v301 = vpack.c.b16 %v279, %v278
      %v302 = vpack.c.b16 %v281, %v280
      %v303 = vpack.c.b16 %v283, %v282
      %v304 = vpack.c.b16 %v285, %v284
      %v305 = vpack.c.b16 %v287, %v286
      %vm306 = vcmask 31744
      %v308 = vsel %vm306, %v288, 0
      %v311 = vsel %vm306, %v289, 0
      %v314 = vsel %vm306, %v290, 0
      %v317 = vsel %vm306, %v291, 0
      %v320 = vsel %vm306, %v292, 0
      %v323 = vsel %vm306, %v293, 0
      %v326 = vsel %vm306, %v294, 0
      %v329 = vsel %vm306, %v295, 0
      %v332 = vsel %vm306, %v296, 0
      %v335 = vsel %vm306, %v297, 0
      %v338 = vsel %vm306, %v298, 0
      %v341 = vsel %vm306, %v299, 0
      %v344 = vsel %vm306, %v300, 0
      %v347 = vsel %vm306, %v301, 0
      %v350 = vsel %vm306, %v302, 0
      %v353 = vsel %vm306, %v303, 0
      %v356 = vsel %vm306, %v304, 0
      %v359 = vsel %vm306, %v305, 0
      %vm361 = vcmask 1041408
      %v363 = vsel %vm361, %v215, 0
      %365 = vmatprep.subr.bf16.mxu0 0
      %366 = vmatpush1.bf16.msra.mxu0 %v363
      %367 = vmatprep.subr.bf16.mxu0 0
      %368 = vmatpush1.bf16.msra.mxu0 0
      %369 = vmatprep.subr.bf16.mxu0 0
      %370 = vmatpush1.bf16.msra.mxu0 0
      %371 = vmatprep.subr.bf16.mxu0 0
      %372 = vmatpush1.bf16.msra.mxu0 0
      %373 = vmatprep.subr.bf16.mxu0 0
      %374 = vmatpush1.bf16.msra.mxu0 0
      %375 = vmatprep.subr.bf16.mxu0 0
      %376 = vmatpush1.bf16.msra.mxu0 0
      %377 = vmatprep.subr.bf16.mxu0 0
      %378 = vmatpush1.bf16.msra.mxu0 0
      %379 = vmatprep.subr.bf16.mxu0 0
      %380 = vmatpush1.bf16.msra.mxu0 0
      %381 = vmatprep.subr.bf16.mxu0 0
      %382 = vmatpush1.bf16.msra.mxu0 0
      %383 = vmatprep.subr.bf16.mxu0 0
      %384 = vmatpush1.bf16.msra.mxu0 0
      %385 = vmatprep.subr.bf16.mxu0 0
      %386 = vmatpush1.bf16.msra.mxu0 0
      %387 = vmatprep.subr.bf16.mxu0 0
      %388 = vmatpush1.bf16.msra.mxu0 0
      %389 = vmatprep.subr.bf16.mxu0 0
      %390 = vmatpush1.bf16.msra.mxu0 0
      %391 = vmatprep.subr.bf16.mxu0 0
      %392 = vmatpush1.bf16.msra.mxu0 0
      %393 = vmatprep.subr.bf16.mxu0 0
      %394 = vmatpush1.bf16.msra.mxu0 0
      %395 = vmatprep.subr.bf16.mxu0 0
      %396 = vmatpush1.bf16.msra.mxu0 0
      %397 = vmatprep.mubr.bf16.mxu0 0
      %398 = vmatmul.mubr.bf16.gmra.mrb[0].mxu0 %v308
      %v399 = vpop.f32.mrb[0].mxu0
      %v400 = vadd.f32 0.0, %v399
      %v401 = vpop.f32.mrb[0].mxu0
      %v402 = vpop.f32.mrb[0].mxu0
      %v403 = vadd.f32 0.0, %v402
      %v404 = vpop.f32.mrb[0].mxu0
      %405 = vmatprep.mubr.bf16.mxu0 0
      %406 = vmatmul.mubr.bf16.gmra.mrb[0].mxu0 %v311
      %v407 = vpop.f32.mrb[0].mxu0
      %v408 = vadd.f32 0.0, %v407
      %v409 = vpop.f32.mrb[0].mxu0
      %v410 = vpop.f32.mrb[0].mxu0
      %v411 = vadd.f32 0.0, %v410
      %v412 = vpop.f32.mrb[0].mxu0
      %413 = vmatprep.mubr.bf16.mxu0 0
      %414 = vmatmul.mubr.bf16.gmra.mrb[0].mxu0 %v314
      %v415 = vpop.f32.mrb[0].mxu0
      %v416 = vadd.f32 0.0, %v415
      %v417 = vpop.f32.mrb[0].mxu0
      %v418 = vpop.f32.mrb[0].mxu0
      %v419 = vadd.f32 0.0, %v418
      %v420 = vpop.f32.mrb[0].mxu0
      %421 = vmatprep.mubr.bf16.mxu0 0
      %422 = vmatmul.mubr.bf16.gmra.mrb[0].mxu0 %v317
      %v423 = vpop.f32.mrb[0].mxu0
      %v424 = vadd.f32 0.0, %v423
      %v425 = vpop.f32.mrb[0].mxu0
      %v426 = vpop.f32.mrb[0].mxu0
      %v427 = vadd.f32 0.0, %v426
      %v428 = vpop.f32.mrb[0].mxu0
      %429 = vmatprep.mubr.bf16.mxu0 0
      %430 = vmatmul.mubr.bf16.gmra.mrb[0].mxu0 %v320
      %v431 = vpop.f32.mrb[0].mxu0
      %v432 = vadd.f32 0.0, %v431
      %v433 = vpop.f32.mrb[0].mxu0
      %v434 = vpop.f32.mrb[0].mxu0
      %v435 = vadd.f32 0.0, %v434
      %v436 = vpop.f32.mrb[0].mxu0
      %437 = vmatprep.mubr.bf16.mxu0 0
      %438 = vmatmul.mubr.bf16.gmra.mrb[0].mxu0 %v323
      %v439 = vpop.f32.mrb[0].mxu0
      %v440 = vadd.f32 0.0, %v439
      %v441 = vpop.f32.mrb[0].mxu0
      %v442 = vpop.f32.mrb[0].mxu0
      %v443 = vadd.f32 0.0, %v442
      %v444 = vpop.f32.mrb[0].mxu0
      %445 = vmatprep.mubr.bf16.mxu0 0
      %446 = vmatmul.mubr.bf16.gmra.mrb[0].mxu0 %v326
      %v447 = vpop.f32.mrb[0].mxu0
      %v448 = vadd.f32 0.0, %v447
      %v449 = vpop.f32.mrb[0].mxu0
      %v450 = vpop.f32.mrb[0].mxu0
      %v451 = vadd.f32 0.0, %v450
      %v452 = vpop.f32.mrb[0].mxu0
      %453 = vmatprep.mubr.bf16.mxu0 0
      %454 = vmatmul.mubr.bf16.gmra.mrb[0].mxu0 %v329
      %v455 = vpop.f32.mrb[0].mxu0
      %v456 = vadd.f32 0.0, %v455
      %v457 = vpop.f32.mrb[0].mxu0
      %v458 = vpop.f32.mrb[0].mxu0
      %v459 = vadd.f32 0.0, %v458
      %v460 = vpop.f32.mrb[0].mxu0
      %461 = vmatprep.mubr.bf16.mxu0 0
      %462 = vmatmul.mubr.bf16.gmra.mrb[0].mxu0 %v332
      %v463 = vpop.f32.mrb[0].mxu0
      %v464 = vadd.f32 0.0, %v463
      %v465 = vpop.f32.mrb[0].mxu0
      %v466 = vpop.f32.mrb[0].mxu0
      %v467 = vadd.f32 0.0, %v466
      %v468 = vpop.f32.mrb[0].mxu0
      %469 = vmatprep.mubr.bf16.mxu0 0
      %470 = vmatmul.mubr.bf16.gmra.mrb[0].mxu0 %v335
      %v471 = vpop.f32.mrb[0].mxu0
      %v472 = vadd.f32 0.0, %v471
      %v473 = vpop.f32.mrb[0].mxu0
      %v474 = vpop.f32.mrb[0].mxu0
      %v475 = vadd.f32 0.0, %v474
      %v476 = vpop.f32.mrb[0].mxu0
      %477 = vmatprep.mubr.bf16.mxu0 0
      %478 = vmatmul.mubr.bf16.gmra.mrb[0].mxu0 %v338
      %v479 = vpop.f32.mrb[0].mxu0
      %v480 = vadd.f32 0.0, %v479
      %v481 = vpop.f32.mrb[0].mxu0
      %v482 = vpop.f32.mrb[0].mxu0
      %v483 = vadd.f32 0.0, %v482
      %v484 = vpop.f32.mrb[0].mxu0
      %485 = vmatprep.mubr.bf16.mxu0 0
      %486 = vmatmul.mubr.bf16.gmra.mrb[0].mxu0 %v341
      %v487 = vpop.f32.mrb[0].mxu0
      %v488 = vadd.f32 0.0, %v487
      %v489 = vpop.f32.mrb[0].mxu0
      %v490 = vpop.f32.mrb[0].mxu0
      %v491 = vadd.f32 0.0, %v490
      %v492 = vpop.f32.mrb[0].mxu0
      %493 = vmatprep.mubr.bf16.mxu0 0
      %494 = vmatmul.mubr.bf16.gmra.mrb[0].mxu0 %v344
      %v495 = vpop.f32.mrb[0].mxu0
      %v496 = vadd.f32 0.0, %v495
      %v497 = vpop.f32.mrb[0].mxu0
      %v498 = vpop.f32.mrb[0].mxu0
      %v499 = vadd.f32 0.0, %v498
      %v500 = vpop.f32.mrb[0].mxu0
      %501 = vmatprep.mubr.bf16.mxu0 0
      %502 = vmatmul.mubr.bf16.gmra.mrb[0].mxu0 %v347
      %v503 = vpop.f32.mrb[0].mxu0
      %v504 = vadd.f32 0.0, %v503
      %v505 = vpop.f32.mrb[0].mxu0
      %v506 = vpop.f32.mrb[0].mxu0
      %v507 = vadd.f32 0.0, %v506
      %v508 = vpop.f32.mrb[0].mxu0
      %509 = vmatprep.mubr.bf16.mxu0 0
      %510 = vmatmul.mubr.bf16.gmra.mrb[0].mxu0 %v350
      %v511 = vpop.f32.mrb[0].mxu0
      %v512 = vadd.f32 0.0, %v511
      %v513 = vpop.f32.mrb[0].mxu0
      %v514 = vpop.f32.mrb[0].mxu0
      %v515 = vadd.f32 0.0, %v514
      %v516 = vpop.f32.mrb[0].mxu0
      %517 = vmatprep.mubr.bf16.mxu0 0
      %518 = vmatmul.mubr.bf16.gmra.mrb[0].mxu0 %v353
      %v519 = vpop.f32.mrb[0].mxu0
      %v520 = vadd.f32 0.0, %v519
      %v521 = vpop.f32.mrb[0].mxu0
      %v522 = vpop.f32.mrb[0].mxu0
      %v523 = vadd.f32 0.0, %v522
      %v524 = vpop.f32.mrb[0].mxu0
      %525 = vmatprep.mubr.bf16.mxu0 0
      %526 = vmatmul.mubr.bf16.gmra.mrb[0].mxu0 %v356
      %v527 = vpop.f32.mrb[0].mxu0
      %v528 = vadd.f32 0.0, %v527
      %v529 = vpop.f32.mrb[0].mxu0
      %v530 = vpop.f32.mrb[0].mxu0
      %v531 = vadd.f32 0.0, %v530
      %v532 = vpop.f32.mrb[0].mxu0
      %533 = vmatprep.mubr.bf16.mxu0 0
      %534 = vmatmul.mubr.bf16.gmra.mrb[0].mxu0 %v359
      %v535 = vpop.f32.mrb[0].mxu0
      %v536 = vadd.f32 0.0, %v535
      %v537 = vpop.f32.mrb[0].mxu0
      %v538 = vpop.f32.mrb[0].mxu0
      %v539 = vadd.f32 0.0, %v538
      %v540 = vpop.f32.mrb[0].mxu0
      %541 = vdwg.mxu0
      %v542 = vadd.f32 %v177, %v400
      %v543 = vadd.f32 %v177, %v403
      %v544 = vadd.f32 %v177, %v408
      %v545 = vadd.f32 %v177, %v411
      %v546 = vadd.f32 %v177, %v416
      %v547 = vadd.f32 %v177, %v419
      %v548 = vadd.f32 %v177, %v424
      %v549 = vadd.f32 %v177, %v427
      %v550 = vadd.f32 %v177, %v432
      %v551 = vadd.f32 %v177, %v435
      %v552 = vadd.f32 %v177, %v440
      %v553 = vadd.f32 %v177, %v443
      %v554 = vadd.f32 %v177, %v448
      %v555 = vadd.f32 %v177, %v451
      %v556 = vadd.f32 %v177, %v456
      %v557 = vadd.f32 %v177, %v459
      %v558 = vadd.f32 %v177, %v464
      %v559 = vadd.f32 %v177, %v467
      %v560 = vadd.f32 %v177, %v472
      %v561 = vadd.f32 %v177, %v475
      %v562 = vadd.f32 %v177, %v480
      %v563 = vadd.f32 %v177, %v483
      %v564 = vadd.f32 %v177, %v488
      %v565 = vadd.f32 %v177, %v491
      %v566 = vadd.f32 %v177, %v496
      %v567 = vadd.f32 %v177, %v499
      %v568 = vadd.f32 %v177, %v504
      %v569 = vadd.f32 %v177, %v507
      %v570 = vadd.f32 %v177, %v512
      %v571 = vadd.f32 %v177, %v515
      %v572 = vadd.f32 %v177, %v520
      %v573 = vadd.f32 %v177, %v523
      %v574 = vadd.f32 %v177, %v528
      %v575 = vadd.f32 %v177, %v531
      %v576 = vadd.f32 %v177, %v536
      %v577 = vadd.f32 %v177, %v539
      %v578 = vld [vmem:[%s165] sm:$0xf]
      %v579 = vld [vmem:[%s165 + $0x4] sm:$0xf]
      %v580 = vld [vmem:[%s165 + $0x8] sm:$0xf]
      %v581 = vld [vmem:[%s165 + $0xc] sm:$0xf]
      %v582 = vld [vmem:[%s165 + $0x10] sm:$0xf]
      %v583 = vld [vmem:[%s165 + $0x14] sm:$0xf]
      %v584 = vld [vmem:[%s165 + $0x18] sm:$0xf]
      %v585 = vld [vmem:[%s165 + $0x1c] sm:$0xf]
      %v586 = vld [vmem:[%s165 + $0x20] sm:$0xf]
      %v587 = vld [vmem:[%s165 + $0x24] sm:$0xf]
      %v588 = vld [vmem:[%s165 + $0x28] sm:$0xf]
      %v589 = vld [vmem:[%s165 + $0x2c] sm:$0xf]
      %v590 = vld [vmem:[%s165 + $0x30] sm:$0xf]
      %v591 = vld [vmem:[%s165 + $0x34] sm:$0xf]
      %v592 = vld [vmem:[%s165 + $0x38] sm:$0xf]
      %v593 = vld [vmem:[%s165 + $0x3c] sm:$0xf]
      %v594 = vld [vmem:[%s165 + $0x40] sm:$0xf]
      %v595 = vld [vmem:[%s165 + $0x44] sm:$0xf]
      %v596 = vld [vmem:[%s165 + $0x48] sm:$0xf]
      %v597 = vld [vmem:[%s165 + $0x4c] sm:$0xf]
      %v598 = vld [vmem:[%s165 + $0x50] sm:$0xf]
      %v599 = vld [vmem:[%s165 + $0x54] sm:$0xf]
      %v600 = vld [vmem:[%s165 + $0x58] sm:$0xf]
      %v601 = vld [vmem:[%s165 + $0x5c] sm:$0xf]
      %v602 = vld [vmem:[%s165 + $0x60] sm:$0xf]
      %v603 = vld [vmem:[%s165 + $0x64] sm:$0xf]
      %v604 = vld [vmem:[%s165 + $0x68] sm:$0xf]
      %v605 = vld [vmem:[%s165 + $0x6c] sm:$0xf]
      %v606 = vld [vmem:[%s165 + $0x70] sm:$0xf]
      %v607 = vld [vmem:[%s165 + $0x74] sm:$0xf]
      %v608 = vld [vmem:[%s165 + $0x78] sm:$0xf]
      %v609 = vld [vmem:[%s165 + $0x7c] sm:$0xf]
      %v610 = vld [vmem:[%s165 + $0x80] sm:$0xf]
      %v611 = vld [vmem:[%s165 + $0x84] sm:$0xf]
      %v612 = vld [vmem:[%s165 + $0x88] sm:$0xf]
      %v613 = vld [vmem:[%s165 + $0x8c] sm:$0xf]
      %v614 = vld [vmem:[%s165 + $0x90] sm:$0x1]
      %s615 = scalar_lea.vmem %s1, 2
      %v616 = vld [vmem:[%s615] sm:$0x3]
      %v654 = vunpack.c.l.b16 %v578
      %v655 = vunpack.c.l.b16 %v579
      %v656 = vunpack.c.l.b16 %v580
      %v657 = vunpack.c.l.b16 %v581
      %v658 = vunpack.c.l.b16 %v582
      %v659 = vunpack.c.l.b16 %v583
      %v660 = vunpack.c.l.b16 %v584
      %v661 = vunpack.c.l.b16 %v585
      %v662 = vunpack.c.l.b16 %v586
      %v663 = vunpack.c.l.b16 %v587
      %v664 = vunpack.c.l.b16 %v588
      %v665 = vunpack.c.l.b16 %v589
      %v666 = vunpack.c.l.b16 %v590
      %v667 = vunpack.c.l.b16 %v591
      %v668 = vunpack.c.l.b16 %v592
      %v669 = vunpack.c.l.b16 %v593
      %v670 = vunpack.c.l.b16 %v594
      %v671 = vunpack.c.l.b16 %v595
      %v672 = vunpack.c.l.b16 %v596
      %v673 = vunpack.c.l.b16 %v597
      %v674 = vunpack.c.l.b16 %v598
      %v675 = vunpack.c.l.b16 %v599
      %v676 = vunpack.c.l.b16 %v600
      %v677 = vunpack.c.l.b16 %v601
      %v678 = vunpack.c.l.b16 %v602
      %v679 = vunpack.c.l.b16 %v603
      %v680 = vunpack.c.l.b16 %v604
      %v681 = vunpack.c.l.b16 %v605
      %v682 = vunpack.c.l.b16 %v606
      %v683 = vunpack.c.l.b16 %v607
      %v684 = vunpack.c.l.b16 %v608
      %v685 = vunpack.c.l.b16 %v609
      %v686 = vunpack.c.l.b16 %v610
      %v687 = vunpack.c.l.b16 %v611
      %v688 = vunpack.c.l.b16 %v612
      %v689 = vunpack.c.l.b16 %v613
      %v690 = vunpack.c.l.b16 %v614
      %v691 = vpack.c.b16 %v655, %v654
      %v692 = vpack.c.b16 %v657, %v656
      %v693 = vpack.c.b16 %v659, %v658
      %v694 = vpack.c.b16 %v661, %v660
      %v695 = vpack.c.b16 %v663, %v662
      %v696 = vpack.c.b16 %v665, %v664
      %v697 = vpack.c.b16 %v667, %v666
      %v698 = vpack.c.b16 %v669, %v668
      %v699 = vpack.c.b16 %v671, %v670
      %v700 = vpack.c.b16 %v673, %v672
      %v701 = vpack.c.b16 %v675, %v674
      %v702 = vpack.c.b16 %v677, %v676
      %v703 = vpack.c.b16 %v679, %v678
      %v704 = vpack.c.b16 %v681, %v680
      %v705 = vpack.c.b16 %v683, %v682
      %v706 = vpack.c.b16 %v685, %v684
      %v707 = vpack.c.b16 %v687, %v686
      %v708 = vpack.c.b16 %v689, %v688
      %v709 = vpack.c.b16 %v690, %v690
      %vm710 = vsmask.f32 7424
      %v712 = vshrl.u32 %v691, 16
      %v714 = vshll.u32 %v691, 16
      %v716 = vrot.slane %v714, 1
      %v717 = vor.u32 %v712, %v716
      %v719 = vshll.u32 %v692, 16
      %v721 = vrot.slane %v719, 1
      %v722 = vsel %vm710, %v717, %v721
      %v723 = vshrl.u32 %v692, 16
      %v725 = vor.u32 %v723, %v721
      %v727 = vshll.u32 %v693, 16
      %v729 = vrot.slane %v727, 1
      %v730 = vsel %vm710, %v725, %v729
      %v731 = vshrl.u32 %v693, 16
      %v733 = vor.u32 %v731, %v729
      %v735 = vshll.u32 %v694, 16
      %v737 = vrot.slane %v735, 1
      %v738 = vsel %vm710, %v733, %v737
      %v739 = vshrl.u32 %v694, 16
      %v741 = vor.u32 %v739, %v737
      %v743 = vshll.u32 %v695, 16
      %v745 = vrot.slane %v743, 1
      %v746 = vsel %vm710, %v741, %v745
      %v747 = vshrl.u32 %v695, 16
      %v749 = vor.u32 %v747, %v745
      %v751 = vshll.u32 %v696, 16
      %v753 = vrot.slane %v751, 1
      %v754 = vsel %vm710, %v749, %v753
      %v755 = vshrl.u32 %v696, 16
      %v757 = vor.u32 %v755, %v753
      %v759 = vshll.u32 %v697, 16
      %v761 = vrot.slane %v759, 1
      %v762 = vsel %vm710, %v757, %v761
      %v763 = vshrl.u32 %v697, 16
      %v765 = vor.u32 %v763, %v761
      %v767 = vshll.u32 %v698, 16
      %v769 = vrot.slane %v767, 1
      %v770 = vsel %vm710, %v765, %v769
      %v771 = vshrl.u32 %v698, 16
      %v773 = vor.u32 %v771, %v769
      %v775 = vshll.u32 %v699, 16
      %v777 = vrot.slane %v775, 1
      %v778 = vsel %vm710, %v773, %v777
      %v779 = vshrl.u32 %v699, 16
      %v781 = vor.u32 %v779, %v777
      %v783 = vshll.u32 %v700, 16
      %v785 = vrot.slane %v783, 1
      %v786 = vsel %vm710, %v781, %v785
      %v787 = vshrl.u32 %v700, 16
      %v789 = vor.u32 %v787, %v785
      %v791 = vshll.u32 %v701, 16
      %v793 = vrot.slane %v791, 1
      %v794 = vsel %vm710, %v789, %v793
      %v795 = vshrl.u32 %v701, 16
      %v797 = vor.u32 %v795, %v793
      %v799 = vshll.u32 %v702, 16
      %v801 = vrot.slane %v799, 1
      %v802 = vsel %vm710, %v797, %v801
      %v803 = vshrl.u32 %v702, 16
      %v805 = vor.u32 %v803, %v801
      %v807 = vshll.u32 %v703, 16
      %v809 = vrot.slane %v807, 1
      %v810 = vsel %vm710, %v805, %v809
      %v811 = vshrl.u32 %v703, 16
      %v813 = vor.u32 %v811, %v809
      %v815 = vshll.u32 %v704, 16
      %v817 = vrot.slane %v815, 1
      %v818 = vsel %vm710, %v813, %v817
      %v819 = vshrl.u32 %v704, 16
      %v821 = vor.u32 %v819, %v817
      %v823 = vshll.u32 %v705, 16
      %v825 = vrot.slane %v823, 1
      %v826 = vsel %vm710, %v821, %v825
      %v827 = vshrl.u32 %v705, 16
      %v829 = vor.u32 %v827, %v825
      %v831 = vshll.u32 %v706, 16
      %v833 = vrot.slane %v831, 1
      %v834 = vsel %vm710, %v829, %v833
      %v835 = vshrl.u32 %v706, 16
      %v837 = vor.u32 %v835, %v833
      %v839 = vshll.u32 %v707, 16
      %v841 = vrot.slane %v839, 1
      %v842 = vsel %vm710, %v837, %v841
      %v843 = vshrl.u32 %v707, 16
      %v845 = vor.u32 %v843, %v841
      %v847 = vshll.u32 %v708, 16
      %v849 = vrot.slane %v847, 1
      %v850 = vsel %vm710, %v845, %v849
      %v851 = vshrl.u32 %v708, 16
      %v853 = vor.u32 %v851, %v849
      %v855 = vshll.u32 %v709, 16
      %v857 = vrot.slane %v855, 1
      %v858 = vsel %vm710, %v853, %v857
      %v860 = vsel %vm306, %v722, 0
      %v863 = vsel %vm306, %v730, 0
      %v866 = vsel %vm306, %v738, 0
      %v869 = vsel %vm306, %v746, 0
      %v872 = vsel %vm306, %v754, 0
      %v875 = vsel %vm306, %v762, 0
      %v878 = vsel %vm306, %v770, 0
      %v881 = vsel %vm306, %v778, 0
      %v884 = vsel %vm306, %v786, 0
      %v887 = vsel %vm306, %v794, 0
      %v890 = vsel %vm306, %v802, 0
      %v893 = vsel %vm306, %v810, 0
      %v896 = vsel %vm306, %v818, 0
      %v899 = vsel %vm306, %v826, 0
      %v902 = vsel %vm306, %v834, 0
      %v905 = vsel %vm306, %v842, 0
      %v908 = vsel %vm306, %v850, 0
      %v911 = vsel %vm306, %v858, 0
      %v914 = vsel %vm361, %v616, 0
      %916 = vmatprep.subr.bf16.mxu0 0
      %917 = vmatpush1.bf16.msra.mxu0 %v914
      %918 = vmatprep.subr.bf16.mxu0 0
      %919 = vmatpush1.bf16.msra.mxu0 0
      %920 = vmatprep.subr.bf16.mxu0 0
      %921 = vmatpush1.bf16.msra.mxu0 0
      %922 = vmatprep.subr.bf16.mxu0 0
      %923 = vmatpush1.bf16.msra.mxu0 0
      %924 = vmatprep.subr.bf16.mxu0 0
      %925 = vmatpush1.bf16.msra.mxu0 0
      %926 = vmatprep.subr.bf16.mxu0 0
      %927 = vmatpush1.bf16.msra.mxu0 0
      %928 = vmatprep.subr.bf16.mxu0 0
      %929 = vmatpush1.bf16.msra.mxu0 0
      %930 = vmatprep.subr.bf16.mxu0 0
      %931 = vmatpush1.bf16.msra.mxu0 0
      %932 = vmatprep.subr.bf16.mxu0 0
      %933 = vmatpush1.bf16.msra.mxu0 0
      %934 = vmatprep.subr.bf16.mxu0 0
      %935 = vmatpush1.bf16.msra.mxu0 0
      %936 = vmatprep.subr.bf16.mxu0 0
      %937 = vmatpush1.bf16.msra.mxu0 0
      %938 = vmatprep.subr.bf16.mxu0 0
      %939 = vmatpush1.bf16.msra.mxu0 0
      %940 = vmatprep.subr.bf16.mxu0 0
      %941 = vmatpush1.bf16.msra.mxu0 0
      %942 = vmatprep.subr.bf16.mxu0 0
      %943 = vmatpush1.bf16.msra.mxu0 0
      %944 = vmatprep.subr.bf16.mxu0 0
      %945 = vmatpush1.bf16.msra.mxu0 0
      %946 = vmatprep.subr.bf16.mxu0 0
      %947 = vmatpush1.bf16.msra.mxu0 0
      %948 = vmatprep.mubr.bf16.mxu0 0
      %949 = vmatmul.mubr.bf16.gmra.mrb[0].mxu0 %v860
      %v950 = vpop.f32.mrb[0].mxu0
      %v951 = vadd.f32 0.0, %v950
      %v952 = vpop.f32.mrb[0].mxu0
      %v953 = vpop.f32.mrb[0].mxu0
      %v954 = vadd.f32 0.0, %v953
      %v955 = vpop.f32.mrb[0].mxu0
      %956 = vmatprep.mubr.bf16.mxu0 0
      %957 = vmatmul.mubr.bf16.gmra.mrb[0].mxu0 %v863
      %v958 = vpop.f32.mrb[0].mxu0
      %v959 = vadd.f32 0.0, %v958
      %v960 = vpop.f32.mrb[0].mxu0
      %v961 = vpop.f32.mrb[0].mxu0
      %v962 = vadd.f32 0.0, %v961
      %v963 = vpop.f32.mrb[0].mxu0
      %964 = vmatprep.mubr.bf16.mxu0 0
      %965 = vmatmul.mubr.bf16.gmra.mrb[0].mxu0 %v866
      %v966 = vpop.f32.mrb[0].mxu0
      %v967 = vadd.f32 0.0, %v966
      %v968 = vpop.f32.mrb[0].mxu0
      %v969 = vpop.f32.mrb[0].mxu0
      %v970 = vadd.f32 0.0, %v969
      %v971 = vpop.f32.mrb[0].mxu0
      %972 = vmatprep.mubr.bf16.mxu0 0
      %973 = vmatmul.mubr.bf16.gmra.mrb[0].mxu0 %v869
      %v974 = vpop.f32.mrb[0].mxu0
      %v975 = vadd.f32 0.0, %v974
      %v976 = vpop.f32.mrb[0].mxu0
      %v977 = vpop.f32.mrb[0].mxu0
      %v978 = vadd.f32 0.0, %v977
      %v979 = vpop.f32.mrb[0].mxu0
      %980 = vmatprep.mubr.bf16.mxu0 0
      %981 = vmatmul.mubr.bf16.gmra.mrb[0].mxu0 %v872
      %v982 = vpop.f32.mrb[0].mxu0
      %v983 = vadd.f32 0.0, %v982
      %v984 = vpop.f32.mrb[0].mxu0
      %v985 = vpop.f32.mrb[0].mxu0
      %v986 = vadd.f32 0.0, %v985
      %v987 = vpop.f32.mrb[0].mxu0
      %988 = vmatprep.mubr.bf16.mxu0 0
      %989 = vmatmul.mubr.bf16.gmra.mrb[0].mxu0 %v875
      %v990 = vpop.f32.mrb[0].mxu0
      %v991 = vadd.f32 0.0, %v990
      %v992 = vpop.f32.mrb[0].mxu0
      %v993 = vpop.f32.mrb[0].mxu0
      %v994 = vadd.f32 0.0, %v993
      %v995 = vpop.f32.mrb[0].mxu0
      %996 = vmatprep.mubr.bf16.mxu0 0
      %997 = vmatmul.mubr.bf16.gmra.mrb[0].mxu0 %v878
      %v998 = vpop.f32.mrb[0].mxu0
      %v999 = vadd.f32 0.0, %v998
      %v1000 = vpop.f32.mrb[0].mxu0
      %v1001 = vpop.f32.mrb[0].mxu0
      %v1002 = vadd.f32 0.0, %v1001
      %v1003 = vpop.f32.mrb[0].mxu0
      %1004 = vmatprep.mubr.bf16.mxu0 0
      %1005 = vmatmul.mubr.bf16.gmra.mrb[0].mxu0 %v881
      %v1006 = vpop.f32.mrb[0].mxu0
      %v1007 = vadd.f32 0.0, %v1006
      %v1008 = vpop.f32.mrb[0].mxu0
      %v1009 = vpop.f32.mrb[0].mxu0
      %v1010 = vadd.f32 0.0, %v1009
      %v1011 = vpop.f32.mrb[0].mxu0
      %1012 = vmatprep.mubr.bf16.mxu0 0
      %1013 = vmatmul.mubr.bf16.gmra.mrb[0].mxu0 %v884
      %v1014 = vpop.f32.mrb[0].mxu0
      %v1015 = vadd.f32 0.0, %v1014
      %v1016 = vpop.f32.mrb[0].mxu0
      %v1017 = vpop.f32.mrb[0].mxu0
      %v1018 = vadd.f32 0.0, %v1017
      %v1019 = vpop.f32.mrb[0].mxu0
      %1020 = vmatprep.mubr.bf16.mxu0 0
      %1021 = vmatmul.mubr.bf16.gmra.mrb[0].mxu0 %v887
      %v1022 = vpop.f32.mrb[0].mxu0
      %v1023 = vadd.f32 0.0, %v1022
      %v1024 = vpop.f32.mrb[0].mxu0
      %v1025 = vpop.f32.mrb[0].mxu0
      %v1026 = vadd.f32 0.0, %v1025
      %v1027 = vpop.f32.mrb[0].mxu0
      %1028 = vmatprep.mubr.bf16.mxu0 0
      %1029 = vmatmul.mubr.bf16.gmra.mrb[0].mxu0 %v890
      %v1030 = vpop.f32.mrb[0].mxu0
      %v1031 = vadd.f32 0.0, %v1030
      %v1032 = vpop.f32.mrb[0].mxu0
      %v1033 = vpop.f32.mrb[0].mxu0
      %v1034 = vadd.f32 0.0, %v1033
      %v1035 = vpop.f32.mrb[0].mxu0
      %1036 = vmatprep.mubr.bf16.mxu0 0
      %1037 = vmatmul.mubr.bf16.gmra.mrb[0].mxu0 %v893
      %v1038 = vpop.f32.mrb[0].mxu0
      %v1039 = vadd.f32 0.0, %v1038
      %v1040 = vpop.f32.mrb[0].mxu0
      %v1041 = vpop.f32.mrb[0].mxu0
      %v1042 = vadd.f32 0.0, %v1041
      %v1043 = vpop.f32.mrb[0].mxu0
      %1044 = vmatprep.mubr.bf16.mxu0 0
      %1045 = vmatmul.mubr.bf16.gmra.mrb[0].mxu0 %v896
      %v1046 = vpop.f32.mrb[0].mxu0
      %v1047 = vadd.f32 0.0, %v1046
      %v1048 = vpop.f32.mrb[0].mxu0
      %v1049 = vpop.f32.mrb[0].mxu0
      %v1050 = vadd.f32 0.0, %v1049
      %v1051 = vpop.f32.mrb[0].mxu0
      %1052 = vmatprep.mubr.bf16.mxu0 0
      %1053 = vmatmul.mubr.bf16.gmra.mrb[0].mxu0 %v899
      %v1054 = vpop.f32.mrb[0].mxu0
      %v1055 = vadd.f32 0.0, %v1054
      %v1056 = vpop.f32.mrb[0].mxu0
      %v1057 = vpop.f32.mrb[0].mxu0
      %v1058 = vadd.f32 0.0, %v1057
      %v1059 = vpop.f32.mrb[0].mxu0
      %1060 = vmatprep.mubr.bf16.mxu0 0
      %1061 = vmatmul.mubr.bf16.gmra.mrb[0].mxu0 %v902
      %v1062 = vpop.f32.mrb[0].mxu0
      %v1063 = vadd.f32 0.0, %v1062
      %v1064 = vpop.f32.mrb[0].mxu0
      %v1065 = vpop.f32.mrb[0].mxu0
      %v1066 = vadd.f32 0.0, %v1065
      %v1067 = vpop.f32.mrb[0].mxu0
      %1068 = vmatprep.mubr.bf16.mxu0 0
      %1069 = vmatmul.mubr.bf16.gmra.mrb[0].mxu0 %v905
      %v1070 = vpop.f32.mrb[0].mxu0
      %v1071 = vadd.f32 0.0, %v1070
      %v1072 = vpop.f32.mrb[0].mxu0
      %v1073 = vpop.f32.mrb[0].mxu0
      %v1074 = vadd.f32 0.0, %v1073
      %v1075 = vpop.f32.mrb[0].mxu0
      %1076 = vmatprep.mubr.bf16.mxu0 0
      %1077 = vmatmul.mubr.bf16.gmra.mrb[0].mxu0 %v908
      %v1078 = vpop.f32.mrb[0].mxu0
      %v1079 = vadd.f32 0.0, %v1078
      %v1080 = vpop.f32.mrb[0].mxu0
      %v1081 = vpop.f32.mrb[0].mxu0
      %v1082 = vadd.f32 0.0, %v1081
      %v1083 = vpop.f32.mrb[0].mxu0
      %1084 = vmatprep.mubr.bf16.mxu0 0
      %1085 = vmatmul.mubr.bf16.gmra.mrb[0].mxu0 %v911
      %v1086 = vpop.f32.mrb[0].mxu0
      %v1087 = vadd.f32 0.0, %v1086
      %v1088 = vpop.f32.mrb[0].mxu0
      %v1089 = vpop.f32.mrb[0].mxu0
      %v1090 = vadd.f32 0.0, %v1089
      %v1091 = vpop.f32.mrb[0].mxu0
      %1092 = vdwg.mxu0
      %v1093 = vadd.f32 %v542, %v951
      %v1094 = vadd.f32 %v543, %v954
      %v1095 = vadd.f32 %v544, %v959
      %v1096 = vadd.f32 %v545, %v962
      %v1097 = vadd.f32 %v546, %v967
      %v1098 = vadd.f32 %v547, %v970
      %v1099 = vadd.f32 %v548, %v975
      %v1100 = vadd.f32 %v549, %v978
      %v1101 = vadd.f32 %v550, %v983
      %v1102 = vadd.f32 %v551, %v986
      %v1103 = vadd.f32 %v552, %v991
      %v1104 = vadd.f32 %v553, %v994
      %v1105 = vadd.f32 %v554, %v999
      %v1106 = vadd.f32 %v555, %v1002
      %v1107 = vadd.f32 %v556, %v1007
      %v1108 = vadd.f32 %v557, %v1010
      %v1109 = vadd.f32 %v558, %v1015
      %v1110 = vadd.f32 %v559, %v1018
      %v1111 = vadd.f32 %v560, %v1023
      %v1112 = vadd.f32 %v561, %v1026
      %v1113 = vadd.f32 %v562, %v1031
      %v1114 = vadd.f32 %v563, %v1034
      %v1115 = vadd.f32 %v564, %v1039
      %v1116 = vadd.f32 %v565, %v1042
      %v1117 = vadd.f32 %v566, %v1047
      %v1118 = vadd.f32 %v567, %v1050
      %v1119 = vadd.f32 %v568, %v1055
      %v1120 = vadd.f32 %v569, %v1058
      %v1121 = vadd.f32 %v570, %v1063
      %v1122 = vadd.f32 %v571, %v1066
      %v1123 = vadd.f32 %v572, %v1071
      %v1124 = vadd.f32 %v573, %v1074
      %v1125 = vadd.f32 %v574, %v1079
      %v1126 = vadd.f32 %v575, %v1082
      %v1127 = vadd.f32 %v576, %v1087
      %v1128 = vadd.f32 %v577, %v1090
      %v1129 = vld [vmem:[%s165] sm:$0xe]
      %s1130 = scalar_lea.vmem %s1, 4
      %v1131 = vld [vmem:[%s1130] sm:$0x3]
      %v1133 = vunpack.c.l.b16 %v1129
      %v1134 = vpack.c.b16 %v655, %v1133
      %vm1135 = vcmask 1046528
      %v1136 = vrot.slane %v1134, 1
      %v1137 = vrot.slane %v692, 1
      %v1138 = vsel %vm1135, %v1136, %v1137
      %v1139 = vrot.slane %v693, 1
      %v1140 = vsel %vm1135, %v1137, %v1139
      %v1141 = vrot.slane %v694, 1
      %v1142 = vsel %vm1135, %v1139, %v1141
      %v1143 = vrot.slane %v695, 1
      %v1144 = vsel %vm1135, %v1141, %v1143
      %v1145 = vrot.slane %v696, 1
      %v1146 = vsel %vm1135, %v1143, %v1145
      %v1147 = vrot.slane %v697, 1
      %v1148 = vsel %vm1135, %v1145, %v1147
      %v1149 = vrot.slane %v698, 1
      %v1150 = vsel %vm1135, %v1147, %v1149
      %v1151 = vrot.slane %v699, 1
      %v1152 = vsel %vm1135, %v1149, %v1151
      %v1153 = vrot.slane %v700, 1
      %v1154 = vsel %vm1135, %v1151, %v1153
      %v1155 = vrot.slane %v701, 1
      %v1156 = vsel %vm1135, %v1153, %v1155
      %v1157 = vrot.slane %v702, 1
      %v1158 = vsel %vm1135, %v1155, %v1157
      %v1159 = vrot.slane %v703, 1
      %v1160 = vsel %vm1135, %v1157, %v1159
      %v1161 = vrot.slane %v704, 1
      %v1162 = vsel %vm1135, %v1159, %v1161
      %v1163 = vrot.slane %v705, 1
      %v1164 = vsel %vm1135, %v1161, %v1163
      %v1165 = vrot.slane %v706, 1
      %v1166 = vsel %vm1135, %v1163, %v1165
      %v1167 = vrot.slane %v707, 1
      %v1168 = vsel %vm1135, %v1165, %v1167
      %v1169 = vrot.slane %v708, 1
      %v1170 = vsel %vm1135, %v1167, %v1169
      %v1171 = vrot.slane %v709, 1
      %v1172 = vsel %vm1135, %v1169, %v1171
      %v1174 = vsel %vm306, %v1138, 0
      %v1177 = vsel %vm306, %v1140, 0
      %v1180 = vsel %vm306, %v1142, 0
      %v1183 = vsel %vm306, %v1144, 0
      %v1186 = vsel %vm306, %v1146, 0
      %v1189 = vsel %vm306, %v1148, 0
      %v1192 = vsel %vm306, %v1150, 0
      %v1195 = vsel %vm306, %v1152, 0
      %v1198 = vsel %vm306, %v1154, 0
      %v1201 = vsel %vm306, %v1156, 0
      %v1204 = vsel %vm306, %v1158, 0
      %v1207 = vsel %vm306, %v1160, 0
      %v1210 = vsel %vm306, %v1162, 0
      %v1213 = vsel %vm306, %v1164, 0
      %v1216 = vsel %vm306, %v1166, 0
      %v1219 = vsel %vm306, %v1168, 0
      %v1222 = vsel %vm306, %v1170, 0
      %v1225 = vsel %vm306, %v1172, 0
      %v1228 = vsel %vm361, %v1131, 0
      %1230 = vmatprep.subr.bf16.mxu0 0
      %1231 = vmatpush1.bf16.msra.mxu0 %v1228
      %1232 = vmatprep.subr.bf16.mxu0 0
      %1233 = vmatpush1.bf16.msra.mxu0 0
      %1234 = vmatprep.subr.bf16.mxu0 0
      %1235 = vmatpush1.bf16.msra.mxu0 0
      %1236 = vmatprep.subr.bf16.mxu0 0
      %1237 = vmatpush1.bf16.msra.mxu0 0
      %1238 = vmatprep.subr.bf16.mxu0 0
      %1239 = vmatpush1.bf16.msra.mxu0 0
      %1240 = vmatprep.subr.bf16.mxu0 0
      %1241 = vmatpush1.bf16.msra.mxu0 0
      %1242 = vmatprep.subr.bf16.mxu0 0
      %1243 = vmatpush1.bf16.msra.mxu0 0
      %1244 = vmatprep.subr.bf16.mxu0 0
      %1245 = vmatpush1.bf16.msra.mxu0 0
      %1246 = vmatprep.subr.bf16.mxu0 0
      %1247 = vmatpush1.bf16.msra.mxu0 0
      %1248 = vmatprep.subr.bf16.mxu0 0
      %1249 = vmatpush1.bf16.msra.mxu0 0
      %1250 = vmatprep.subr.bf16.mxu0 0
      %1251 = vmatpush1.bf16.msra.mxu0 0
      %1252 = vmatprep.subr.bf16.mxu0 0
      %1253 = vmatpush1.bf16.msra.mxu0 0
      %1254 = vmatprep.subr.bf16.mxu0 0
      %1255 = vmatpush1.bf16.msra.mxu0 0
      %1256 = vmatprep.subr.bf16.mxu0 0
      %1257 = vmatpush1.bf16.msra.mxu0 0
      %1258 = vmatprep.subr.bf16.mxu0 0
      %1259 = vmatpush1.bf16.msra.mxu0 0
      %1260 = vmatprep.subr.bf16.mxu0 0
      %1261 = vmatpush1.bf16.msra.mxu0 0
      %1262 = vmatprep.mubr.bf16.mxu0 0
      %1263 = vmatmul.mubr.bf16.gmra.mrb[0].mxu0 %v1174
      %v1264 = vpop.f32.mrb[0].mxu0
      %v1265 = vadd.f32 0.0, %v1264
      %v1266 = vpop.f32.mrb[0].mxu0
      %v1267 = vpop.f32.mrb[0].mxu0
      %v1268 = vadd.f32 0.0, %v1267
      %v1269 = vpop.f32.mrb[0].mxu0
      %1270 = vmatprep.mubr.bf16.mxu0 0
      %1271 = vmatmul.mubr.bf16.gmra.mrb[0].mxu0 %v1177
      %v1272 = vpop.f32.mrb[0].mxu0
      %v1273 = vadd.f32 0.0, %v1272
      %v1274 = vpop.f32.mrb[0].mxu0
      %v1275 = vpop.f32.mrb[0].mxu0
      %v1276 = vadd.f32 0.0, %v1275
      %v1277 = vpop.f32.mrb[0].mxu0
      %1278 = vmatprep.mubr.bf16.mxu0 0
      %1279 = vmatmul.mubr.bf16.gmra.mrb[0].mxu0 %v1180
      %v1280 = vpop.f32.mrb[0].mxu0
      %v1281 = vadd.f32 0.0, %v1280
      %v1282 = vpop.f32.mrb[0].mxu0
      %v1283 = vpop.f32.mrb[0].mxu0
      %v1284 = vadd.f32 0.0, %v1283
      %v1285 = vpop.f32.mrb[0].mxu0
      %1286 = vmatprep.mubr.bf16.mxu0 0
      %1287 = vmatmul.mubr.bf16.gmra.mrb[0].mxu0 %v1183
      %v1288 = vpop.f32.mrb[0].mxu0
      %v1289 = vadd.f32 0.0, %v1288
      %v1290 = vpop.f32.mrb[0].mxu0
      %v1291 = vpop.f32.mrb[0].mxu0
      %v1292 = vadd.f32 0.0, %v1291
      %v1293 = vpop.f32.mrb[0].mxu0
      %1294 = vmatprep.mubr.bf16.mxu0 0
      %1295 = vmatmul.mubr.bf16.gmra.mrb[0].mxu0 %v1186
      %v1296 = vpop.f32.mrb[0].mxu0
      %v1297 = vadd.f32 0.0, %v1296
      %v1298 = vpop.f32.mrb[0].mxu0
      %v1299 = vpop.f32.mrb[0].mxu0
      %v1300 = vadd.f32 0.0, %v1299
      %v1301 = vpop.f32.mrb[0].mxu0
      %1302 = vmatprep.mubr.bf16.mxu0 0
      %1303 = vmatmul.mubr.bf16.gmra.mrb[0].mxu0 %v1189
      %v1304 = vpop.f32.mrb[0].mxu0
      %v1305 = vadd.f32 0.0, %v1304
      %v1306 = vpop.f32.mrb[0].mxu0
      %v1307 = vpop.f32.mrb[0].mxu0
      %v1308 = vadd.f32 0.0, %v1307
      %v1309 = vpop.f32.mrb[0].mxu0
      %1310 = vmatprep.mubr.bf16.mxu0 0
      %1311 = vmatmul.mubr.bf16.gmra.mrb[0].mxu0 %v1192
      %v1312 = vpop.f32.mrb[0].mxu0
      %v1313 = vadd.f32 0.0, %v1312
      %v1314 = vpop.f32.mrb[0].mxu0
      %v1315 = vpop.f32.mrb[0].mxu0
      %v1316 = vadd.f32 0.0, %v1315
      %v1317 = vpop.f32.mrb[0].mxu0
      %1318 = vmatprep.mubr.bf16.mxu0 0
      %1319 = vmatmul.mubr.bf16.gmra.mrb[0].mxu0 %v1195
      %v1320 = vpop.f32.mrb[0].mxu0
      %v1321 = vadd.f32 0.0, %v1320
      %v1322 = vpop.f32.mrb[0].mxu0
      %v1323 = vpop.f32.mrb[0].mxu0
      %v1324 = vadd.f32 0.0, %v1323
      %v1325 = vpop.f32.mrb[0].mxu0
      %1326 = vmatprep.mubr.bf16.mxu0 0
      %1327 = vmatmul.mubr.bf16.gmra.mrb[0].mxu0 %v1198
      %v1328 = vpop.f32.mrb[0].mxu0
      %v1329 = vadd.f32 0.0, %v1328
      %v1330 = vpop.f32.mrb[0].mxu0
      %v1331 = vpop.f32.mrb[0].mxu0
      %v1332 = vadd.f32 0.0, %v1331
      %v1333 = vpop.f32.mrb[0].mxu0
      %1334 = vmatprep.mubr.bf16.mxu0 0
      %1335 = vmatmul.mubr.bf16.gmra.mrb[0].mxu0 %v1201
      %v1336 = vpop.f32.mrb[0].mxu0
      %v1337 = vadd.f32 0.0, %v1336
      %v1338 = vpop.f32.mrb[0].mxu0
      %v1339 = vpop.f32.mrb[0].mxu0
      %v1340 = vadd.f32 0.0, %v1339
      %v1341 = vpop.f32.mrb[0].mxu0
      %1342 = vmatprep.mubr.bf16.mxu0 0
      %1343 = vmatmul.mubr.bf16.gmra.mrb[0].mxu0 %v1204
      %v1344 = vpop.f32.mrb[0].mxu0
      %v1345 = vadd.f32 0.0, %v1344
      %v1346 = vpop.f32.mrb[0].mxu0
      %v1347 = vpop.f32.mrb[0].mxu0
      %v1348 = vadd.f32 0.0, %v1347
      %v1349 = vpop.f32.mrb[0].mxu0
      %1350 = vmatprep.mubr.bf16.mxu0 0
      %1351 = vmatmul.mubr.bf16.gmra.mrb[0].mxu0 %v1207
      %v1352 = vpop.f32.mrb[0].mxu0
      %v1353 = vadd.f32 0.0, %v1352
      %v1354 = vpop.f32.mrb[0].mxu0
      %v1355 = vpop.f32.mrb[0].mxu0
      %v1356 = vadd.f32 0.0, %v1355
      %v1357 = vpop.f32.mrb[0].mxu0
      %1358 = vmatprep.mubr.bf16.mxu0 0
      %1359 = vmatmul.mubr.bf16.gmra.mrb[0].mxu0 %v1210
      %v1360 = vpop.f32.mrb[0].mxu0
      %v1361 = vadd.f32 0.0, %v1360
      %v1362 = vpop.f32.mrb[0].mxu0
      %v1363 = vpop.f32.mrb[0].mxu0
      %v1364 = vadd.f32 0.0, %v1363
      %v1365 = vpop.f32.mrb[0].mxu0
      %1366 = vmatprep.mubr.bf16.mxu0 0
      %1367 = vmatmul.mubr.bf16.gmra.mrb[0].mxu0 %v1213
      %v1368 = vpop.f32.mrb[0].mxu0
      %v1369 = vadd.f32 0.0, %v1368
      %v1370 = vpop.f32.mrb[0].mxu0
      %v1371 = vpop.f32.mrb[0].mxu0
      %v1372 = vadd.f32 0.0, %v1371
      %v1373 = vpop.f32.mrb[0].mxu0
      %1374 = vmatprep.mubr.bf16.mxu0 0
      %1375 = vmatmul.mubr.bf16.gmra.mrb[0].mxu0 %v1216
      %v1376 = vpop.f32.mrb[0].mxu0
      %v1377 = vadd.f32 0.0, %v1376
      %v1378 = vpop.f32.mrb[0].mxu0
      %v1379 = vpop.f32.mrb[0].mxu0
      %v1380 = vadd.f32 0.0, %v1379
      %v1381 = vpop.f32.mrb[0].mxu0
      %1382 = vmatprep.mubr.bf16.mxu0 0
      %1383 = vmatmul.mubr.bf16.gmra.mrb[0].mxu0 %v1219
      %v1384 = vpop.f32.mrb[0].mxu0
      %v1385 = vadd.f32 0.0, %v1384
      %v1386 = vpop.f32.mrb[0].mxu0
      %v1387 = vpop.f32.mrb[0].mxu0
      %v1388 = vadd.f32 0.0, %v1387
      %v1389 = vpop.f32.mrb[0].mxu0
      %1390 = vmatprep.mubr.bf16.mxu0 0
      %1391 = vmatmul.mubr.bf16.gmra.mrb[0].mxu0 %v1222
      %v1392 = vpop.f32.mrb[0].mxu0
      %v1393 = vadd.f32 0.0, %v1392
      %v1394 = vpop.f32.mrb[0].mxu0
      %v1395 = vpop.f32.mrb[0].mxu0
      %v1396 = vadd.f32 0.0, %v1395
      %v1397 = vpop.f32.mrb[0].mxu0
      %1398 = vmatprep.mubr.bf16.mxu0 0
      %1399 = vmatmul.mubr.bf16.gmra.mrb[0].mxu0 %v1225
      %v1400 = vpop.f32.mrb[0].mxu0
      %v1401 = vadd.f32 0.0, %v1400
      %v1402 = vpop.f32.mrb[0].mxu0
      %v1403 = vpop.f32.mrb[0].mxu0
      %v1404 = vadd.f32 0.0, %v1403
      %v1405 = vpop.f32.mrb[0].mxu0
      %1406 = vdwg.mxu0
      %v1407 = vadd.f32 %v1093, %v1265
      %v1408 = vadd.f32 %v1094, %v1268
      %v1409 = vadd.f32 %v1095, %v1273
      %v1410 = vadd.f32 %v1096, %v1276
      %v1411 = vadd.f32 %v1097, %v1281
      %v1412 = vadd.f32 %v1098, %v1284
      %v1413 = vadd.f32 %v1099, %v1289
      %v1414 = vadd.f32 %v1100, %v1292
      %v1415 = vadd.f32 %v1101, %v1297
      %v1416 = vadd.f32 %v1102, %v1300
      %v1417 = vadd.f32 %v1103, %v1305
      %v1418 = vadd.f32 %v1104, %v1308
      %v1419 = vadd.f32 %v1105, %v1313
      %v1420 = vadd.f32 %v1106, %v1316
      %v1421 = vadd.f32 %v1107, %v1321
      %v1422 = vadd.f32 %v1108, %v1324
      %v1423 = vadd.f32 %v1109, %v1329
      %v1424 = vadd.f32 %v1110, %v1332
      %v1425 = vadd.f32 %v1111, %v1337
      %v1426 = vadd.f32 %v1112, %v1340
      %v1427 = vadd.f32 %v1113, %v1345
      %v1428 = vadd.f32 %v1114, %v1348
      %v1429 = vadd.f32 %v1115, %v1353
      %v1430 = vadd.f32 %v1116, %v1356
      %v1431 = vadd.f32 %v1117, %v1361
      %v1432 = vadd.f32 %v1118, %v1364
      %v1433 = vadd.f32 %v1119, %v1369
      %v1434 = vadd.f32 %v1120, %v1372
      %v1435 = vadd.f32 %v1121, %v1377
      %v1436 = vadd.f32 %v1122, %v1380
      %v1437 = vadd.f32 %v1123, %v1385
      %v1438 = vadd.f32 %v1124, %v1388
      %v1439 = vadd.f32 %v1125, %v1393
      %v1440 = vadd.f32 %v1126, %v1396
      %v1441 = vadd.f32 %v1127, %v1401
      %v1442 = vadd.f32 %v1128, %v1404
      %v1443 = vld [vmem:[%s165 + $0x8] sm:$0xe]
      %v1444 = vld [vmem:[%s165 + $0xc] sm:$0xf]
      %v1445 = vld [vmem:[%s165 + $0x10] sm:$0xf]
      %v1446 = vld [vmem:[%s165 + $0x14] sm:$0xf]
      %v1447 = vld [vmem:[%s165 + $0x18] sm:$0xf]
      %v1448 = vld [vmem:[%s165 + $0x1c] sm:$0xf]
      %v1449 = vld [vmem:[%s165 + $0x20] sm:$0xf]
      %v1450 = vld [vmem:[%s165 + $0x24] sm:$0xf]
      %v1451 = vld [vmem:[%s165 + $0x28] sm:$0xf]
      %v1452 = vld [vmem:[%s165 + $0x2c] sm:$0xf]
      %v1453 = vld [vmem:[%s165 + $0x30] sm:$0xf]
      %v1454 = vld [vmem:[%s165 + $0x34] sm:$0xf]
      %v1455 = vld [vmem:[%s165 + $0x38] sm:$0xf]
      %v1456 = vld [vmem:[%s165 + $0x3c] sm:$0xf]
      %v1457 = vld [vmem:[%s165 + $0x40] sm:$0xf]
      %v1458 = vld [vmem:[%s165 + $0x44] sm:$0xf]
      %v1459 = vld [vmem:[%s165 + $0x48] sm:$0xf]
      %v1460 = vld [vmem:[%s165 + $0x4c] sm:$0xf]
      %v1461 = vld [vmem:[%s165 + $0x50] sm:$0xf]
      %v1462 = vld [vmem:[%s165 + $0x54] sm:$0xf]
      %v1463 = vld [vmem:[%s165 + $0x58] sm:$0xf]
      %v1464 = vld [vmem:[%s165 + $0x5c] sm:$0xf]
      %v1465 = vld [vmem:[%s165 + $0x60] sm:$0xf]
      %v1466 = vld [vmem:[%s165 + $0x64] sm:$0xf]
      %v1467 = vld [vmem:[%s165 + $0x68] sm:$0xf]
      %v1468 = vld [vmem:[%s165 + $0x6c] sm:$0xf]
      %v1469 = vld [vmem:[%s165 + $0x70] sm:$0xf]
      %v1470 = vld [vmem:[%s165 + $0x74] sm:$0xf]
      %v1471 = vld [vmem:[%s165 + $0x78] sm:$0xf]
      %v1472 = vld [vmem:[%s165 + $0x7c] sm:$0xf]
      %v1473 = vld [vmem:[%s165 + $0x80] sm:$0xf]
      %v1474 = vld [vmem:[%s165 + $0x84] sm:$0xf]
      %v1475 = vld [vmem:[%s165 + $0x88] sm:$0xf]
      %v1476 = vld [vmem:[%s165 + $0x8c] sm:$0xf]
      %v1477 = vld [vmem:[%s165 + $0x90] sm:$0xf]
      %v1478 = vld [vmem:[%s165 + $0x94] sm:$0xf]
      %v1479 = vld [vmem:[%s165 + $0x98] sm:$0x1]
      %s1480 = scalar_lea.vmem %s1, 6
      %v1481 = vld [vmem:[%s1480] sm:$0x3]
      %v1519 = vunpack.c.l.b16 %v1443
      %v1520 = vunpack.c.l.b16 %v1444
      %v1521 = vunpack.c.l.b16 %v1445
      %v1522 = vunpack.c.l.b16 %v1446
      %v1523 = vunpack.c.l.b16 %v1447
      %v1524 = vunpack.c.l.b16 %v1448
      %v1525 = vunpack.c.l.b16 %v1449
      %v1526 = vunpack.c.l.b16 %v1450
      %v1527 = vunpack.c.l.b16 %v1451
      %v1528 = vunpack.c.l.b16 %v1452
      %v1529 = vunpack.c.l.b16 %v1453
      %v1530 = vunpack.c.l.b16 %v1454
      %v1531 = vunpack.c.l.b16 %v1455
      %v1532 = vunpack.c.l.b16 %v1456
      %v1533 = vunpack.c.l.b16 %v1457
      %v1534 = vunpack.c.l.b16 %v1458
      %v1535 = vunpack.c.l.b16 %v1459
      %v1536 = vunpack.c.l.b16 %v1460
      %v1537 = vunpack.c.l.b16 %v1461
      %v1538 = vunpack.c.l.b16 %v1462
      %v1539 = vunpack.c.l.b16 %v1463
      %v1540 = vunpack.c.l.b16 %v1464
      %v1541 = vunpack.c.l.b16 %v1465
      %v1542 = vunpack.c.l.b16 %v1466
      %v1543 = vunpack.c.l.b16 %v1467
      %v1544 = vunpack.c.l.b16 %v1468
      %v1545 = vunpack.c.l.b16 %v1469
      %v1546 = vunpack.c.l.b16 %v1470
      %v1547 = vunpack.c.l.b16 %v1471
      %v1548 = vunpack.c.l.b16 %v1472
      %v1549 = vunpack.c.l.b16 %v1473
      %v1550 = vunpack.c.l.b16 %v1474
      %v1551 = vunpack.c.l.b16 %v1475
      %v1552 = vunpack.c.l.b16 %v1476
      %v1553 = vunpack.c.l.b16 %v1477
      %v1554 = vunpack.c.l.b16 %v1478
      %v1555 = vunpack.c.l.b16 %v1479
      %v1556 = vpack.c.b16 %v1520, %v1519
      %v1557 = vpack.c.b16 %v1522, %v1521
      %v1558 = vpack.c.b16 %v1524, %v1523
      %v1559 = vpack.c.b16 %v1526, %v1525
      %v1560 = vpack.c.b16 %v1528, %v1527
      %v1561 = vpack.c.b16 %v1530, %v1529
      %v1562 = vpack.c.b16 %v1532, %v1531
      %v1563 = vpack.c.b16 %v1534, %v1533
      %v1564 = vpack.c.b16 %v1536, %v1535
      %v1565 = vpack.c.b16 %v1538, %v1537
      %v1566 = vpack.c.b16 %v1540, %v1539
      %v1567 = vpack.c.b16 %v1542, %v1541
      %v1568 = vpack.c.b16 %v1544, %v1543
      %v1569 = vpack.c.b16 %v1546, %v1545
      %v1570 = vpack.c.b16 %v1548, %v1547
      %v1571 = vpack.c.b16 %v1550, %v1549
      %v1572 = vpack.c.b16 %v1552, %v1551
      %v1573 = vpack.c.b16 %v1554, %v1553
      %v1574 = vpack.c.b16 %v1555, %v1555
      %v1575 = vrot.slane %v1556, 1
      %v1576 = vrot.slane %v1557, 1
      %v1577 = vsel %vm1135, %v1575, %v1576
      %v1578 = vrot.slane %v1558, 1
      %v1579 = vsel %vm1135, %v1576, %v1578
      %v1580 = vrot.slane %v1559, 1
      %v1581 = vsel %vm1135, %v1578, %v1580
      %v1582 = vrot.slane %v1560, 1
      %v1583 = vsel %vm1135, %v1580, %v1582
      %v1584 = vrot.slane %v1561, 1
      %v1585 = vsel %vm1135, %v1582, %v1584
      %v1586 = vrot.slane %v1562, 1
      %v1587 = vsel %vm1135, %v1584, %v1586
      %v1588 = vrot.slane %v1563, 1
      %v1589 = vsel %vm1135, %v1586, %v1588
      %v1590 = vrot.slane %v1564, 1
      %v1591 = vsel %vm1135, %v1588, %v1590
      %v1592 = vrot.slane %v1565, 1
      %v1593 = vsel %vm1135, %v1590, %v1592
      %v1594 = vrot.slane %v1566, 1
      %v1595 = vsel %vm1135, %v1592, %v1594
      %v1596 = vrot.slane %v1567, 1
      %v1597 = vsel %vm1135, %v1594, %v1596
      %v1598 = vrot.slane %v1568, 1
      %v1599 = vsel %vm1135, %v1596, %v1598
      %v1600 = vrot.slane %v1569, 1
      %v1601 = vsel %vm1135, %v1598, %v1600
      %v1602 = vrot.slane %v1570, 1
      %v1603 = vsel %vm1135, %v1600, %v1602
      %v1604 = vrot.slane %v1571, 1
      %v1605 = vsel %vm1135, %v1602, %v1604
      %v1606 = vrot.slane %v1572, 1
      %v1607 = vsel %vm1135, %v1604, %v1606
      %v1608 = vrot.slane %v1573, 1
      %v1609 = vsel %vm1135, %v1606, %v1608
      %v1610 = vrot.slane %v1574, 1
      %v1611 = vsel %vm1135, %v1608, %v1610
      %v1613 = vsel %vm306, %v1577, 0
      %v1616 = vsel %vm306, %v1579, 0
      %v1619 = vsel %vm306, %v1581, 0
      %v1622 = vsel %vm306, %v1583, 0
      %v1625 = vsel %vm306, %v1585, 0
      %v1628 = vsel %vm306, %v1587, 0
      %v1631 = vsel %vm306, %v1589, 0
      %v1634 = vsel %vm306, %v1591, 0
      %v1637 = vsel %vm306, %v1593, 0
      %v1640 = vsel %vm306, %v1595, 0
      %v1643 = vsel %vm306, %v1597, 0
      %v1646 = vsel %vm306, %v1599, 0
      %v1649 = vsel %vm306, %v1601, 0
      %v1652 = vsel %vm306, %v1603, 0
      %v1655 = vsel %vm306, %v1605, 0
      %v1658 = vsel %vm306, %v1607, 0
      %v1661 = vsel %vm306, %v1609, 0
      %v1664 = vsel %vm306, %v1611, 0
      %v1667 = vsel %vm361, %v1481, 0
      %1669 = vmatprep.subr.bf16.mxu0 0
      %1670 = vmatpush1.bf16.msra.mxu0 %v1667
      %1671 = vmatprep.subr.bf16.mxu0 0
      %1672 = vmatpush1.bf16.msra.mxu0 0
      %1673 = vmatprep.subr.bf16.mxu0 0
      %1674 = vmatpush1.bf16.msra.mxu0 0
      %1675 = vmatprep.subr.bf16.mxu0 0
      %1676 = vmatpush1.bf16.msra.mxu0 0
      %1677 = vmatprep.subr.bf16.mxu0 0
      %1678 = vmatpush1.bf16.msra.mxu0 0
      %1679 = vmatprep.subr.bf16.mxu0 0
      %1680 = vmatpush1.bf16.msra.mxu0 0
      %1681 = vmatprep.subr.bf16.mxu0 0
      %1682 = vmatpush1.bf16.msra.mxu0 0
      %1683 = vmatprep.subr.bf16.mxu0 0
      %1684 = vmatpush1.bf16.msra.mxu0 0
      %1685 = vmatprep.subr.bf16.mxu0 0
      %1686 = vmatpush1.bf16.msra.mxu0 0
      %1687 = vmatprep.subr.bf16.mxu0 0
      %1688 = vmatpush1.bf16.msra.mxu0 0
      %1689 = vmatprep.subr.bf16.mxu0 0
      %1690 = vmatpush1.bf16.msra.mxu0 0
      %1691 = vmatprep.subr.bf16.mxu0 0
      %1692 = vmatpush1.bf16.msra.mxu0 0
      %1693 = vmatprep.subr.bf16.mxu0 0
      %1694 = vmatpush1.bf16.msra.mxu0 0
      %1695 = vmatprep.subr.bf16.mxu0 0
      %1696 = vmatpush1.bf16.msra.mxu0 0
      %1697 = vmatprep.subr.bf16.mxu0 0
      %1698 = vmatpush1.bf16.msra.mxu0 0
      %1699 = vmatprep.subr.bf16.mxu0 0
      %1700 = vmatpush1.bf16.msra.mxu0 0
      %1701 = vmatprep.mubr.bf16.mxu0 0
      %1702 = vmatmul.mubr.bf16.gmra.mrb[0].mxu0 %v1613
      %v1703 = vpop.f32.mrb[0].mxu0
      %v1704 = vadd.f32 0.0, %v1703
      %v1705 = vpop.f32.mrb[0].mxu0
      %v1706 = vpop.f32.mrb[0].mxu0
      %v1707 = vadd.f32 0.0, %v1706
      %v1708 = vpop.f32.mrb[0].mxu0
      %1709 = vmatprep.mubr.bf16.mxu0 0
      %1710 = vmatmul.mubr.bf16.gmra.mrb[0].mxu0 %v1616
      %v1711 = vpop.f32.mrb[0].mxu0
      %v1712 = vadd.f32 0.0, %v1711
      %v1713 = vpop.f32.mrb[0].mxu0
      %v1714 = vpop.f32.mrb[0].mxu0
      %v1715 = vadd.f32 0.0, %v1714
      %v1716 = vpop.f32.mrb[0].mxu0
      %1717 = vmatprep.mubr.bf16.mxu0 0
      %1718 = vmatmul.mubr.bf16.gmra.mrb[0].mxu0 %v1619
      %v1719 = vpop.f32.mrb[0].mxu0
      %v1720 = vadd.f32 0.0, %v1719
      %v1721 = vpop.f32.mrb[0].mxu0
      %v1722 = vpop.f32.mrb[0].mxu0
      %v1723 = vadd.f32 0.0, %v1722
      %v1724 = vpop.f32.mrb[0].mxu0
      %1725 = vmatprep.mubr.bf16.mxu0 0
      %1726 = vmatmul.mubr.bf16.gmra.mrb[0].mxu0 %v1622
      %v1727 = vpop.f32.mrb[0].mxu0
      %v1728 = vadd.f32 0.0, %v1727
      %v1729 = vpop.f32.mrb[0].mxu0
      %v1730 = vpop.f32.mrb[0].mxu0
      %v1731 = vadd.f32 0.0, %v1730
      %v1732 = vpop.f32.mrb[0].mxu0
      %1733 = vmatprep.mubr.bf16.mxu0 0
      %1734 = vmatmul.mubr.bf16.gmra.mrb[0].mxu0 %v1625
      %v1735 = vpop.f32.mrb[0].mxu0
      %v1736 = vadd.f32 0.0, %v1735
      %v1737 = vpop.f32.mrb[0].mxu0
      %v1738 = vpop.f32.mrb[0].mxu0
      %v1739 = vadd.f32 0.0, %v1738
      %v1740 = vpop.f32.mrb[0].mxu0
      %1741 = vmatprep.mubr.bf16.mxu0 0
      %1742 = vmatmul.mubr.bf16.gmra.mrb[0].mxu0 %v1628
      %v1743 = vpop.f32.mrb[0].mxu0
      %v1744 = vadd.f32 0.0, %v1743
      %v1745 = vpop.f32.mrb[0].mxu0
      %v1746 = vpop.f32.mrb[0].mxu0
      %v1747 = vadd.f32 0.0, %v1746
      %v1748 = vpop.f32.mrb[0].mxu0
      %1749 = vmatprep.mubr.bf16.mxu0 0
      %1750 = vmatmul.mubr.bf16.gmra.mrb[0].mxu0 %v1631
      %v1751 = vpop.f32.mrb[0].mxu0
      %v1752 = vadd.f32 0.0, %v1751
      %v1753 = vpop.f32.mrb[0].mxu0
      %v1754 = vpop.f32.mrb[0].mxu0
      %v1755 = vadd.f32 0.0, %v1754
      %v1756 = vpop.f32.mrb[0].mxu0
      %1757 = vmatprep.mubr.bf16.mxu0 0
      %1758 = vmatmul.mubr.bf16.gmra.mrb[0].mxu0 %v1634
      %v1759 = vpop.f32.mrb[0].mxu0
      %v1760 = vadd.f32 0.0, %v1759
      %v1761 = vpop.f32.mrb[0].mxu0
      %v1762 = vpop.f32.mrb[0].mxu0
      %v1763 = vadd.f32 0.0, %v1762
      %v1764 = vpop.f32.mrb[0].mxu0
      %1765 = vmatprep.mubr.bf16.mxu0 0
      %1766 = vmatmul.mubr.bf16.gmra.mrb[0].mxu0 %v1637
      %v1767 = vpop.f32.mrb[0].mxu0
      %v1768 = vadd.f32 0.0, %v1767
      %v1769 = vpop.f32.mrb[0].mxu0
      %v1770 = vpop.f32.mrb[0].mxu0
      %v1771 = vadd.f32 0.0, %v1770
      %v1772 = vpop.f32.mrb[0].mxu0
      %1773 = vmatprep.mubr.bf16.mxu0 0
      %1774 = vmatmul.mubr.bf16.gmra.mrb[0].mxu0 %v1640
      %v1775 = vpop.f32.mrb[0].mxu0
      %v1776 = vadd.f32 0.0, %v1775
      %v1777 = vpop.f32.mrb[0].mxu0
      %v1778 = vpop.f32.mrb[0].mxu0
      %v1779 = vadd.f32 0.0, %v1778
      %v1780 = vpop.f32.mrb[0].mxu0
      %1781 = vmatprep.mubr.bf16.mxu0 0
      %1782 = vmatmul.mubr.bf16.gmra.mrb[0].mxu0 %v1643
      %v1783 = vpop.f32.mrb[0].mxu0
      %v1784 = vadd.f32 0.0, %v1783
      %v1785 = vpop.f32.mrb[0].mxu0
      %v1786 = vpop.f32.mrb[0].mxu0
      %v1787 = vadd.f32 0.0, %v1786
      %v1788 = vpop.f32.mrb[0].mxu0
      %1789 = vmatprep.mubr.bf16.mxu0 0
      %1790 = vmatmul.mubr.bf16.gmra.mrb[0].mxu0 %v1646
      %v1791 = vpop.f32.mrb[0].mxu0
      %v1792 = vadd.f32 0.0, %v1791
      %v1793 = vpop.f32.mrb[0].mxu0
      %v1794 = vpop.f32.mrb[0].mxu0
      %v1795 = vadd.f32 0.0, %v1794
      %v1796 = vpop.f32.mrb[0].mxu0
      %1797 = vmatprep.mubr.bf16.mxu0 0
      %1798 = vmatmul.mubr.bf16.gmra.mrb[0].mxu0 %v1649
      %v1799 = vpop.f32.mrb[0].mxu0
      %v1800 = vadd.f32 0.0, %v1799
      %v1801 = vpop.f32.mrb[0].mxu0
      %v1802 = vpop.f32.mrb[0].mxu0
      %v1803 = vadd.f32 0.0, %v1802
      %v1804 = vpop.f32.mrb[0].mxu0
      %1805 = vmatprep.mubr.bf16.mxu0 0
      %1806 = vmatmul.mubr.bf16.gmra.mrb[0].mxu0 %v1652
      %v1807 = vpop.f32.mrb[0].mxu0
      %v1808 = vadd.f32 0.0, %v1807
      %v1809 = vpop.f32.mrb[0].mxu0
      %v1810 = vpop.f32.mrb[0].mxu0
      %v1811 = vadd.f32 0.0, %v1810
      %v1812 = vpop.f32.mrb[0].mxu0
      %1813 = vmatprep.mubr.bf16.mxu0 0
      %1814 = vmatmul.mubr.bf16.gmra.mrb[0].mxu0 %v1655
      %v1815 = vpop.f32.mrb[0].mxu0
      %v1816 = vadd.f32 0.0, %v1815
      %v1817 = vpop.f32.mrb[0].mxu0
      %v1818 = vpop.f32.mrb[0].mxu0
      %v1819 = vadd.f32 0.0, %v1818
      %v1820 = vpop.f32.mrb[0].mxu0
      %1821 = vmatprep.mubr.bf16.mxu0 0
      %1822 = vmatmul.mubr.bf16.gmra.mrb[0].mxu0 %v1658
      %v1823 = vpop.f32.mrb[0].mxu0
      %v1824 = vadd.f32 0.0, %v1823
      %v1825 = vpop.f32.mrb[0].mxu0
      %v1826 = vpop.f32.mrb[0].mxu0
      %v1827 = vadd.f32 0.0, %v1826
      %v1828 = vpop.f32.mrb[0].mxu0
      %1829 = vmatprep.mubr.bf16.mxu0 0
      %1830 = vmatmul.mubr.bf16.gmra.mrb[0].mxu0 %v1661
      %v1831 = vpop.f32.mrb[0].mxu0
      %v1832 = vadd.f32 0.0, %v1831
      %v1833 = vpop.f32.mrb[0].mxu0
      %v1834 = vpop.f32.mrb[0].mxu0
      %v1835 = vadd.f32 0.0, %v1834
      %v1836 = vpop.f32.mrb[0].mxu0
      %1837 = vmatprep.mubr.bf16.mxu0 0
      %1838 = vmatmul.mubr.bf16.gmra.mrb[0].mxu0 %v1664
      %v1839 = vpop.f32.mrb[0].mxu0
      %v1840 = vadd.f32 0.0, %v1839
      %v1841 = vpop.f32.mrb[0].mxu0
      %v1842 = vpop.f32.mrb[0].mxu0
      %v1843 = vadd.f32 0.0, %v1842
      %v1844 = vpop.f32.mrb[0].mxu0
      %1845 = vdwg.mxu0
      %v1846 = vadd.f32 %v1407, %v1704
      %v1847 = vadd.f32 %v1408, %v1707
      %v1848 = vadd.f32 %v1409, %v1712
      %v1849 = vadd.f32 %v1410, %v1715
      %v1850 = vadd.f32 %v1411, %v1720
      %v1851 = vadd.f32 %v1412, %v1723
      %v1852 = vadd.f32 %v1413, %v1728
      %v1853 = vadd.f32 %v1414, %v1731
      %v1854 = vadd.f32 %v1415, %v1736
      %v1855 = vadd.f32 %v1416, %v1739
      %v1856 = vadd.f32 %v1417, %v1744
      %v1857 = vadd.f32 %v1418, %v1747
      %v1858 = vadd.f32 %v1419, %v1752
      %v1859 = vadd.f32 %v1420, %v1755
      %v1860 = vadd.f32 %v1421, %v1760
      %v1861 = vadd.f32 %v1422, %v1763
      %v1862 = vadd.f32 %v1423, %v1768
      %v1863 = vadd.f32 %v1424, %v1771
      %v1864 = vadd.f32 %v1425, %v1776
      %v1865 = vadd.f32 %v1426, %v1779
      %v1866 = vadd.f32 %v1427, %v1784
      %v1867 = vadd.f32 %v1428, %v1787
      %v1868 = vadd.f32 %v1429, %v1792
      %v1869 = vadd.f32 %v1430, %v1795
      %v1870 = vadd.f32 %v1431, %v1800
      %v1871 = vadd.f32 %v1432, %v1803
      %v1872 = vadd.f32 %v1433, %v1808
      %v1873 = vadd.f32 %v1434, %v1811
      %v1874 = vadd.f32 %v1435, %v1816
      %v1875 = vadd.f32 %v1436, %v1819
      %v1876 = vadd.f32 %v1437, %v1824
      %v1877 = vadd.f32 %v1438, %v1827
      %v1878 = vadd.f32 %v1439, %v1832
      %v1879 = vadd.f32 %v1440, %v1835
      %v1880 = vadd.f32 %v1441, %v1840
      %v1881 = vadd.f32 %v1442, %v1843
      %v1882 = vld [vmem:[%s165 + $0x98] sm:$0x3]
      %s1883 = scalar_lea.vmem %s1, 8
      %v1884 = vld [vmem:[%s1883] sm:$0x3]
      %v1886 = vunpack.c.l.b16 %v1882
      %v1887 = vpack.c.b16 %v1886, %v1886
      %vm1888 = vsmask.f32 6400
      %v1890 = vshrl.u32 %v1556, 16
      %v1892 = vrot.slane %v1890, 1
      %v1893 = vshll.u32 %v1556, 16
      %v1895 = vrot.slane %v1893, 2
      %v1896 = vor.u32 %v1892, %v1895
      %v1898 = vshrl.u32 %v1557, 16
      %v1900 = vrot.slane %v1898, 1
      %v1901 = vshll.u32 %v1557, 16
      %v1903 = vrot.slane %v1901, 2
      %v1904 = vor.u32 %v1900, %v1903
      %v1905 = vsel %vm1888, %v1896, %v1904
      %v1907 = vshrl.u32 %v1558, 16
      %v1909 = vrot.slane %v1907, 1
      %v1910 = vshll.u32 %v1558, 16
      %v1912 = vrot.slane %v1910, 2
      %v1913 = vor.u32 %v1909, %v1912
      %v1914 = vsel %vm1888, %v1904, %v1913
      %v1916 = vshrl.u32 %v1559, 16
      %v1918 = vrot.slane %v1916, 1
      %v1919 = vshll.u32 %v1559, 16
      %v1921 = vrot.slane %v1919, 2
      %v1922 = vor.u32 %v1918, %v1921
      %v1923 = vsel %vm1888, %v1913, %v1922
      %v1925 = vshrl.u32 %v1560, 16
      %v1927 = vrot.slane %v1925, 1
      %v1928 = vshll.u32 %v1560, 16
      %v1930 = vrot.slane %v1928, 2
      %v1931 = vor.u32 %v1927, %v1930
      %v1932 = vsel %vm1888, %v1922, %v1931
      %v1934 = vshrl.u32 %v1561, 16
      %v1936 = vrot.slane %v1934, 1
      %v1937 = vshll.u32 %v1561, 16
      %v1939 = vrot.slane %v1937, 2
      %v1940 = vor.u32 %v1936, %v1939
      %v1941 = vsel %vm1888, %v1931, %v1940
      %v1943 = vshrl.u32 %v1562, 16
      %v1945 = vrot.slane %v1943, 1
      %v1946 = vshll.u32 %v1562, 16
      %v1948 = vrot.slane %v1946, 2
      %v1949 = vor.u32 %v1945, %v1948
      %v1950 = vsel %vm1888, %v1940, %v1949
      %v1952 = vshrl.u32 %v1563, 16
      %v1954 = vrot.slane %v1952, 1
      %v1955 = vshll.u32 %v1563, 16
      %v1957 = vrot.slane %v1955, 2
      %v1958 = vor.u32 %v1954, %v1957
      %v1959 = vsel %vm1888, %v1949, %v1958
      %v1961 = vshrl.u32 %v1564, 16
      %v1963 = vrot.slane %v1961, 1
      %v1964 = vshll.u32 %v1564, 16
      %v1966 = vrot.slane %v1964, 2
      %v1967 = vor.u32 %v1963, %v1966
      %v1968 = vsel %vm1888, %v1958, %v1967
      %v1970 = vshrl.u32 %v1565, 16
      %v1972 = vrot.slane %v1970, 1
      %v1973 = vshll.u32 %v1565, 16
      %v1975 = vrot.slane %v1973, 2
      %v1976 = vor.u32 %v1972, %v1975
      %v1977 = vsel %vm1888, %v1967, %v1976
      %v1979 = vshrl.u32 %v1566, 16
      %v1981 = vrot.slane %v1979, 1
      %v1982 = vshll.u32 %v1566, 16
      %v1984 = vrot.slane %v1982, 2
      %v1985 = vor.u32 %v1981, %v1984
      %v1986 = vsel %vm1888, %v1976, %v1985
      %v1988 = vshrl.u32 %v1567, 16
      %v1990 = vrot.slane %v1988, 1
      %v1991 = vshll.u32 %v1567, 16
      %v1993 = vrot.slane %v1991, 2
      %v1994 = vor.u32 %v1990, %v1993
      %v1995 = vsel %vm1888, %v1985, %v1994
      %v1997 = vshrl.u32 %v1568, 16
      %v1999 = vrot.slane %v1997, 1
      %v2000 = vshll.u32 %v1568, 16
      %v2002 = vrot.slane %v2000, 2
      %v2003 = vor.u32 %v1999, %v2002
      %v2004 = vsel %vm1888, %v1994, %v2003
      %v2006 = vshrl.u32 %v1569, 16
      %v2008 = vrot.slane %v2006, 1
      %v2009 = vshll.u32 %v1569, 16
      %v2011 = vrot.slane %v2009, 2
      %v2012 = vor.u32 %v2008, %v2011
      %v2013 = vsel %vm1888, %v2003, %v2012
      %v2015 = vshrl.u32 %v1570, 16
      %v2017 = vrot.slane %v2015, 1
      %v2018 = vshll.u32 %v1570, 16
      %v2020 = vrot.slane %v2018, 2
      %v2021 = vor.u32 %v2017, %v2020
      %v2022 = vsel %vm1888, %v2012, %v2021
      %v2024 = vshrl.u32 %v1571, 16
      %v2026 = vrot.slane %v2024, 1
      %v2027 = vshll.u32 %v1571, 16
      %v2029 = vrot.slane %v2027, 2
      %v2030 = vor.u32 %v2026, %v2029
      %v2031 = vsel %vm1888, %v2021, %v2030
      %v2033 = vshrl.u32 %v1572, 16
      %v2035 = vrot.slane %v2033, 1
      %v2036 = vshll.u32 %v1572, 16
      %v2038 = vrot.slane %v2036, 2
      %v2039 = vor.u32 %v2035, %v2038
      %v2040 = vsel %vm1888, %v2030, %v2039
      %v2042 = vshrl.u32 %v1573, 16
      %v2044 = vrot.slane %v2042, 1
      %v2045 = vshll.u32 %v1573, 16
      %v2047 = vrot.slane %v2045, 2
      %v2048 = vor.u32 %v2044, %v2047
      %v2049 = vsel %vm1888, %v2039, %v2048
      %v2051 = vshrl.u32 %v1887, 16
      %v2053 = vrot.slane %v2051, 1
      %v2054 = vshll.u32 %v1887, 16
      %v2056 = vrot.slane %v2054, 2
      %v2057 = vor.u32 %v2053, %v2056
      %v2058 = vsel %vm1888, %v2048, %v2057
      %v2060 = vsel %vm306, %v1905, 0
      %v2063 = vsel %vm306, %v1914, 0
      %v2066 = vsel %vm306, %v1923, 0
      %v2069 = vsel %vm306, %v1932, 0
      %v2072 = vsel %vm306, %v1941, 0
      %v2075 = vsel %vm306, %v1950, 0
      %v2078 = vsel %vm306, %v1959, 0
      %v2081 = vsel %vm306, %v1968, 0
      %v2084 = vsel %vm306, %v1977, 0
      %v2087 = vsel %vm306, %v1986, 0
      %v2090 = vsel %vm306, %v1995, 0
      %v2093 = vsel %vm306, %v2004, 0
      %v2096 = vsel %vm306, %v2013, 0
      %v2099 = vsel %vm306, %v2022, 0
      %v2102 = vsel %vm306, %v2031, 0
      %v2105 = vsel %vm306, %v2040, 0
      %v2108 = vsel %vm306, %v2049, 0
      %v2111 = vsel %vm306, %v2058, 0
      %v2114 = vsel %vm361, %v1884, 0
      %2116 = vmatprep.subr.bf16.mxu0 0
      %2117 = vmatpush1.bf16.msra.mxu0 %v2114
      %2118 = vmatprep.subr.bf16.mxu0 0
      %2119 = vmatpush1.bf16.msra.mxu0 0
      %2120 = vmatprep.subr.bf16.mxu0 0
      %2121 = vmatpush1.bf16.msra.mxu0 0
      %2122 = vmatprep.subr.bf16.mxu0 0
      %2123 = vmatpush1.bf16.msra.mxu0 0
      %2124 = vmatprep.subr.bf16.mxu0 0
      %2125 = vmatpush1.bf16.msra.mxu0 0
      %2126 = vmatprep.subr.bf16.mxu0 0
      %2127 = vmatpush1.bf16.msra.mxu0 0
      %2128 = vmatprep.subr.bf16.mxu0 0
      %2129 = vmatpush1.bf16.msra.mxu0 0
      %2130 = vmatprep.subr.bf16.mxu0 0
      %2131 = vmatpush1.bf16.msra.mxu0 0
      %2132 = vmatprep.subr.bf16.mxu0 0
      %2133 = vmatpush1.bf16.msra.mxu0 0
      %2134 = vmatprep.subr.bf16.mxu0 0
      %2135 = vmatpush1.bf16.msra.mxu0 0
      %2136 = vmatprep.subr.bf16.mxu0 0
      %2137 = vmatpush1.bf16.msra.mxu0 0
      %2138 = vmatprep.subr.bf16.mxu0 0
      %2139 = vmatpush1.bf16.msra.mxu0 0
      %2140 = vmatprep.subr.bf16.mxu0 0
      %2141 = vmatpush1.bf16.msra.mxu0 0
      %2142 = vmatprep.subr.bf16.mxu0 0
      %2143 = vmatpush1.bf16.msra.mxu0 0
      %2144 = vmatprep.subr.bf16.mxu0 0
      %2145 = vmatpush1.bf16.msra.mxu0 0
      %2146 = vmatprep.subr.bf16.mxu0 0
      %2147 = vmatpush1.bf16.msra.mxu0 0
      %2148 = vmatprep.mubr.bf16.mxu0 0
      %2149 = vmatmul.mubr.bf16.gmra.mrb[0].mxu0 %v2060
      %v2150 = vpop.f32.mrb[0].mxu0
      %v2151 = vadd.f32 0.0, %v2150
      %v2152 = vpop.f32.mrb[0].mxu0
      %v2153 = vpop.f32.mrb[0].mxu0
      %v2154 = vadd.f32 0.0, %v2153
      %v2155 = vpop.f32.mrb[0].mxu0
      %2156 = vmatprep.mubr.bf16.mxu0 0
      %2157 = vmatmul.mubr.bf16.gmra.mrb[0].mxu0 %v2063
      %v2158 = vpop.f32.mrb[0].mxu0
      %v2159 = vadd.f32 0.0, %v2158
      %v2160 = vpop.f32.mrb[0].mxu0
      %v2161 = vpop.f32.mrb[0].mxu0
      %v2162 = vadd.f32 0.0, %v2161
      %v2163 = vpop.f32.mrb[0].mxu0
      %2164 = vmatprep.mubr.bf16.mxu0 0
      %2165 = vmatmul.mubr.bf16.gmra.mrb[0].mxu0 %v2066
      %v2166 = vpop.f32.mrb[0].mxu0
      %v2167 = vadd.f32 0.0, %v2166
      %v2168 = vpop.f32.mrb[0].mxu0
      %v2169 = vpop.f32.mrb[0].mxu0
      %v2170 = vadd.f32 0.0, %v2169
      %v2171 = vpop.f32.mrb[0].mxu0
      %2172 = vmatprep.mubr.bf16.mxu0 0
      %2173 = vmatmul.mubr.bf16.gmra.mrb[0].mxu0 %v2069
      %v2174 = vpop.f32.mrb[0].mxu0
      %v2175 = vadd.f32 0.0, %v2174
      %v2176 = vpop.f32.mrb[0].mxu0
      %v2177 = vpop.f32.mrb[0].mxu0
      %v2178 = vadd.f32 0.0, %v2177
      %v2179 = vpop.f32.mrb[0].mxu0
      %2180 = vmatprep.mubr.bf16.mxu0 0
      %2181 = vmatmul.mubr.bf16.gmra.mrb[0].mxu0 %v2072
      %v2182 = vpop.f32.mrb[0].mxu0
      %v2183 = vadd.f32 0.0, %v2182
      %v2184 = vpop.f32.mrb[0].mxu0
      %v2185 = vpop.f32.mrb[0].mxu0
      %v2186 = vadd.f32 0.0, %v2185
      %v2187 = vpop.f32.mrb[0].mxu0
      %2188 = vmatprep.mubr.bf16.mxu0 0
      %2189 = vmatmul.mubr.bf16.gmra.mrb[0].mxu0 %v2075
      %v2190 = vpop.f32.mrb[0].mxu0
      %v2191 = vadd.f32 0.0, %v2190
      %v2192 = vpop.f32.mrb[0].mxu0
      %v2193 = vpop.f32.mrb[0].mxu0
      %v2194 = vadd.f32 0.0, %v2193
      %v2195 = vpop.f32.mrb[0].mxu0
      %2196 = vmatprep.mubr.bf16.mxu0 0
      %2197 = vmatmul.mubr.bf16.gmra.mrb[0].mxu0 %v2078
      %v2198 = vpop.f32.mrb[0].mxu0
      %v2199 = vadd.f32 0.0, %v2198
      %v2200 = vpop.f32.mrb[0].mxu0
      %v2201 = vpop.f32.mrb[0].mxu0
      %v2202 = vadd.f32 0.0, %v2201
      %v2203 = vpop.f32.mrb[0].mxu0
      %2204 = vmatprep.mubr.bf16.mxu0 0
      %2205 = vmatmul.mubr.bf16.gmra.mrb[0].mxu0 %v2081
      %v2206 = vpop.f32.mrb[0].mxu0
      %v2207 = vadd.f32 0.0, %v2206
      %v2208 = vpop.f32.mrb[0].mxu0
      %v2209 = vpop.f32.mrb[0].mxu0
      %v2210 = vadd.f32 0.0, %v2209
      %v2211 = vpop.f32.mrb[0].mxu0
      %2212 = vmatprep.mubr.bf16.mxu0 0
      %2213 = vmatmul.mubr.bf16.gmra.mrb[0].mxu0 %v2084
      %v2214 = vpop.f32.mrb[0].mxu0
      %v2215 = vadd.f32 0.0, %v2214
      %v2216 = vpop.f32.mrb[0].mxu0
      %v2217 = vpop.f32.mrb[0].mxu0
      %v2218 = vadd.f32 0.0, %v2217
      %v2219 = vpop.f32.mrb[0].mxu0
      %2220 = vmatprep.mubr.bf16.mxu0 0
      %2221 = vmatmul.mubr.bf16.gmra.mrb[0].mxu0 %v2087
      %v2222 = vpop.f32.mrb[0].mxu0
      %v2223 = vadd.f32 0.0, %v2222
      %v2224 = vpop.f32.mrb[0].mxu0
      %v2225 = vpop.f32.mrb[0].mxu0
      %v2226 = vadd.f32 0.0, %v2225
      %v2227 = vpop.f32.mrb[0].mxu0
      %2228 = vmatprep.mubr.bf16.mxu0 0
      %2229 = vmatmul.mubr.bf16.gmra.mrb[0].mxu0 %v2090
      %v2230 = vpop.f32.mrb[0].mxu0
      %v2231 = vadd.f32 0.0, %v2230
      %v2232 = vpop.f32.mrb[0].mxu0
      %v2233 = vpop.f32.mrb[0].mxu0
      %v2234 = vadd.f32 0.0, %v2233
      %v2235 = vpop.f32.mrb[0].mxu0
      %2236 = vmatprep.mubr.bf16.mxu0 0
      %2237 = vmatmul.mubr.bf16.gmra.mrb[0].mxu0 %v2093
      %v2238 = vpop.f32.mrb[0].mxu0
      %v2239 = vadd.f32 0.0, %v2238
      %v2240 = vpop.f32.mrb[0].mxu0
      %v2241 = vpop.f32.mrb[0].mxu0
      %v2242 = vadd.f32 0.0, %v2241
      %v2243 = vpop.f32.mrb[0].mxu0
      %2244 = vmatprep.mubr.bf16.mxu0 0
      %2245 = vmatmul.mubr.bf16.gmra.mrb[0].mxu0 %v2096
      %v2246 = vpop.f32.mrb[0].mxu0
      %v2247 = vadd.f32 0.0, %v2246
      %v2248 = vpop.f32.mrb[0].mxu0
      %v2249 = vpop.f32.mrb[0].mxu0
      %v2250 = vadd.f32 0.0, %v2249
      %v2251 = vpop.f32.mrb[0].mxu0
      %2252 = vmatprep.mubr.bf16.mxu0 0
      %2253 = vmatmul.mubr.bf16.gmra.mrb[0].mxu0 %v2099
      %v2254 = vpop.f32.mrb[0].mxu0
      %v2255 = vadd.f32 0.0, %v2254
      %v2256 = vpop.f32.mrb[0].mxu0
      %v2257 = vpop.f32.mrb[0].mxu0
      %v2258 = vadd.f32 0.0, %v2257
      %v2259 = vpop.f32.mrb[0].mxu0
      %2260 = vmatprep.mubr.bf16.mxu0 0
      %2261 = vmatmul.mubr.bf16.gmra.mrb[0].mxu0 %v2102
      %v2262 = vpop.f32.mrb[0].mxu0
      %v2263 = vadd.f32 0.0, %v2262
      %v2264 = vpop.f32.mrb[0].mxu0
      %v2265 = vpop.f32.mrb[0].mxu0
      %v2266 = vadd.f32 0.0, %v2265
      %v2267 = vpop.f32.mrb[0].mxu0
      %2268 = vmatprep.mubr.bf16.mxu0 0
      %2269 = vmatmul.mubr.bf16.gmra.mrb[0].mxu0 %v2105
      %v2270 = vpop.f32.mrb[0].mxu0
      %v2271 = vadd.f32 0.0, %v2270
      %v2272 = vpop.f32.mrb[0].mxu0
      %v2273 = vpop.f32.mrb[0].mxu0
      %v2274 = vadd.f32 0.0, %v2273
      %v2275 = vpop.f32.mrb[0].mxu0
      %2276 = vmatprep.mubr.bf16.mxu0 0
      %2277 = vmatmul.mubr.bf16.gmra.mrb[0].mxu0 %v2108
      %v2278 = vpop.f32.mrb[0].mxu0
      %v2279 = vadd.f32 0.0, %v2278
      %v2280 = vpop.f32.mrb[0].mxu0
      %v2281 = vpop.f32.mrb[0].mxu0
      %v2282 = vadd.f32 0.0, %v2281
      %v2283 = vpop.f32.mrb[0].mxu0
      %2284 = vmatprep.mubr.bf16.mxu0 0
      %2285 = vmatmul.mubr.bf16.gmra.mrb[0].mxu0 %v2111
      %v2286 = vpop.f32.mrb[0].mxu0
      %v2287 = vadd.f32 0.0, %v2286
      %v2288 = vpop.f32.mrb[0].mxu0
      %v2289 = vpop.f32.mrb[0].mxu0
      %v2290 = vadd.f32 0.0, %v2289
      %v2291 = vpop.f32.mrb[0].mxu0
      %2292 = vdwg.mxu0
      %v2293 = vadd.f32 %v1846, %v2151
      %v2294 = vadd.f32 %v1847, %v2154
      %v2295 = vadd.f32 %v1848, %v2159
      %v2296 = vadd.f32 %v1849, %v2162
      %v2297 = vadd.f32 %v1850, %v2167
      %v2298 = vadd.f32 %v1851, %v2170
      %v2299 = vadd.f32 %v1852, %v2175
      %v2300 = vadd.f32 %v1853, %v2178
      %v2301 = vadd.f32 %v1854, %v2183
      %v2302 = vadd.f32 %v1855, %v2186
      %v2303 = vadd.f32 %v1856, %v2191
      %v2304 = vadd.f32 %v1857, %v2194
      %v2305 = vadd.f32 %v1858, %v2199
      %v2306 = vadd.f32 %v1859, %v2202
      %v2307 = vadd.f32 %v1860, %v2207
      %v2308 = vadd.f32 %v1861, %v2210
      %v2309 = vadd.f32 %v1862, %v2215
      %v2310 = vadd.f32 %v1863, %v2218
      %v2311 = vadd.f32 %v1864, %v2223
      %v2312 = vadd.f32 %v1865, %v2226
      %v2313 = vadd.f32 %v1866, %v2231
      %v2314 = vadd.f32 %v1867, %v2234
      %v2315 = vadd.f32 %v1868, %v2239
      %v2316 = vadd.f32 %v1869, %v2242
      %v2317 = vadd.f32 %v1870, %v2247
      %v2318 = vadd.f32 %v1871, %v2250
      %v2319 = vadd.f32 %v1872, %v2255
      %v2320 = vadd.f32 %v1873, %v2258
      %v2321 = vadd.f32 %v1874, %v2263
      %v2322 = vadd.f32 %v1875, %v2266
      %v2323 = vadd.f32 %v1876, %v2271
      %v2324 = vadd.f32 %v1877, %v2274
      %v2325 = vadd.f32 %v1878, %v2279
      %v2326 = vadd.f32 %v1879, %v2282
      %v2327 = vadd.f32 %v1880, %v2287
      %v2328 = vadd.f32 %v1881, %v2290
      %v2329 = vld [vmem:[%s165 + $0x8] sm:$0xc]
      %s2330 = scalar_lea.vmem %s1, 10
      %v2331 = vld [vmem:[%s2330] sm:$0x3]
      %v2333 = vunpack.c.l.b16 %v2329
      %v2334 = vpack.c.b16 %v1520, %v2333
      %vm2335 = vcmask 1045504
      %v2336 = vrot.slane %v2334, 2
      %v2337 = vrot.slane %v1557, 2
      %v2338 = vsel %vm2335, %v2336, %v2337
      %v2339 = vrot.slane %v1558, 2
      %v2340 = vsel %vm2335, %v2337, %v2339
      %v2341 = vrot.slane %v1559, 2
      %v2342 = vsel %vm2335, %v2339, %v2341
      %v2343 = vrot.slane %v1560, 2
      %v2344 = vsel %vm2335, %v2341, %v2343
      %v2345 = vrot.slane %v1561, 2
      %v2346 = vsel %vm2335, %v2343, %v2345
      %v2347 = vrot.slane %v1562, 2
      %v2348 = vsel %vm2335, %v2345, %v2347
      %v2349 = vrot.slane %v1563, 2
      %v2350 = vsel %vm2335, %v2347, %v2349
      %v2351 = vrot.slane %v1564, 2
      %v2352 = vsel %vm2335, %v2349, %v2351
      %v2353 = vrot.slane %v1565, 2
      %v2354 = vsel %vm2335, %v2351, %v2353
      %v2355 = vrot.slane %v1566, 2
      %v2356 = vsel %vm2335, %v2353, %v2355
      %v2357 = vrot.slane %v1567, 2
      %v2358 = vsel %vm2335, %v2355, %v2357
      %v2359 = vrot.slane %v1568, 2
      %v2360 = vsel %vm2335, %v2357, %v2359
      %v2361 = vrot.slane %v1569, 2
      %v2362 = vsel %vm2335, %v2359, %v2361
      %v2363 = vrot.slane %v1570, 2
      %v2364 = vsel %vm2335, %v2361, %v2363
      %v2365 = vrot.slane %v1571, 2
      %v2366 = vsel %vm2335, %v2363, %v2365
      %v2367 = vrot.slane %v1572, 2
      %v2368 = vsel %vm2335, %v2365, %v2367
      %v2369 = vrot.slane %v1573, 2
      %v2370 = vsel %vm2335, %v2367, %v2369
      %v2371 = vrot.slane %v1887, 2
      %v2372 = vsel %vm2335, %v2369, %v2371
      %v2374 = vsel %vm306, %v2338, 0
      %v2377 = vsel %vm306, %v2340, 0
      %v2380 = vsel %vm306, %v2342, 0
      %v2383 = vsel %vm306, %v2344, 0
      %v2386 = vsel %vm306, %v2346, 0
      %v2389 = vsel %vm306, %v2348, 0
      %v2392 = vsel %vm306, %v2350, 0
      %v2395 = vsel %vm306, %v2352, 0
      %v2398 = vsel %vm306, %v2354, 0
      %v2401 = vsel %vm306, %v2356, 0
      %v2404 = vsel %vm306, %v2358, 0
      %v2407 = vsel %vm306, %v2360, 0
      %v2410 = vsel %vm306, %v2362, 0
      %v2413 = vsel %vm306, %v2364, 0
      %v2416 = vsel %vm306, %v2366, 0
      %v2419 = vsel %vm306, %v2368, 0
      %v2422 = vsel %vm306, %v2370, 0
      %v2425 = vsel %vm306, %v2372, 0
      %v2428 = vsel %vm361, %v2331, 0
      %2430 = vmatprep.subr.bf16.mxu0 0
      %2431 = vmatpush1.bf16.msra.mxu0 %v2428
      %2432 = vmatprep.subr.bf16.mxu0 0
      %2433 = vmatpush1.bf16.msra.mxu0 0
      %2434 = vmatprep.subr.bf16.mxu0 0
      %2435 = vmatpush1.bf16.msra.mxu0 0
      %2436 = vmatprep.subr.bf16.mxu0 0
      %2437 = vmatpush1.bf16.msra.mxu0 0
      %2438 = vmatprep.subr.bf16.mxu0 0
      %2439 = vmatpush1.bf16.msra.mxu0 0
      %2440 = vmatprep.subr.bf16.mxu0 0
      %2441 = vmatpush1.bf16.msra.mxu0 0
      %2442 = vmatprep.subr.bf16.mxu0 0
      %2443 = vmatpush1.bf16.msra.mxu0 0
      %2444 = vmatprep.subr.bf16.mxu0 0
      %2445 = vmatpush1.bf16.msra.mxu0 0
      %2446 = vmatprep.subr.bf16.mxu0 0
      %2447 = vmatpush1.bf16.msra.mxu0 0
      %2448 = vmatprep.subr.bf16.mxu0 0
      %2449 = vmatpush1.bf16.msra.mxu0 0
      %2450 = vmatprep.subr.bf16.mxu0 0
      %2451 = vmatpush1.bf16.msra.mxu0 0
      %2452 = vmatprep.subr.bf16.mxu0 0
      %2453 = vmatpush1.bf16.msra.mxu0 0
      %2454 = vmatprep.subr.bf16.mxu0 0
      %2455 = vmatpush1.bf16.msra.mxu0 0
      %2456 = vmatprep.subr.bf16.mxu0 0
      %2457 = vmatpush1.bf16.msra.mxu0 0
      %2458 = vmatprep.subr.bf16.mxu0 0
      %2459 = vmatpush1.bf16.msra.mxu0 0
      %2460 = vmatprep.subr.bf16.mxu0 0
      %2461 = vmatpush1.bf16.msra.mxu0 0
      %2462 = vmatprep.mubr.bf16.mxu0 0
      %2463 = vmatmul.mubr.bf16.gmra.mrb[0].mxu0 %v2374
      %v2464 = vpop.f32.mrb[0].mxu0
      %v2465 = vadd.f32 0.0, %v2464
      %v2466 = vpop.f32.mrb[0].mxu0
      %v2467 = vpop.f32.mrb[0].mxu0
      %v2468 = vadd.f32 0.0, %v2467
      %v2469 = vpop.f32.mrb[0].mxu0
      %2470 = vmatprep.mubr.bf16.mxu0 0
      %2471 = vmatmul.mubr.bf16.gmra.mrb[0].mxu0 %v2377
      %v2472 = vpop.f32.mrb[0].mxu0
      %v2473 = vadd.f32 0.0, %v2472
      %v2474 = vpop.f32.mrb[0].mxu0
      %v2475 = vpop.f32.mrb[0].mxu0
      %v2476 = vadd.f32 0.0, %v2475
      %v2477 = vpop.f32.mrb[0].mxu0
      %2478 = vmatprep.mubr.bf16.mxu0 0
      %2479 = vmatmul.mubr.bf16.gmra.mrb[0].mxu0 %v2380
      %v2480 = vpop.f32.mrb[0].mxu0
      %v2481 = vadd.f32 0.0, %v2480
      %v2482 = vpop.f32.mrb[0].mxu0
      %v2483 = vpop.f32.mrb[0].mxu0
      %v2484 = vadd.f32 0.0, %v2483
      %v2485 = vpop.f32.mrb[0].mxu0
      %2486 = vmatprep.mubr.bf16.mxu0 0
      %2487 = vmatmul.mubr.bf16.gmra.mrb[0].mxu0 %v2383
      %v2488 = vpop.f32.mrb[0].mxu0
      %v2489 = vadd.f32 0.0, %v2488
      %v2490 = vpop.f32.mrb[0].mxu0
      %v2491 = vpop.f32.mrb[0].mxu0
      %v2492 = vadd.f32 0.0, %v2491
      %v2493 = vpop.f32.mrb[0].mxu0
      %2494 = vmatprep.mubr.bf16.mxu0 0
      %2495 = vmatmul.mubr.bf16.gmra.mrb[0].mxu0 %v2386
      %v2496 = vpop.f32.mrb[0].mxu0
      %v2497 = vadd.f32 0.0, %v2496
      %v2498 = vpop.f32.mrb[0].mxu0
      %v2499 = vpop.f32.mrb[0].mxu0
      %v2500 = vadd.f32 0.0, %v2499
      %v2501 = vpop.f32.mrb[0].mxu0
      %2502 = vmatprep.mubr.bf16.mxu0 0
      %2503 = vmatmul.mubr.bf16.gmra.mrb[0].mxu0 %v2389
      %v2504 = vpop.f32.mrb[0].mxu0
      %v2505 = vadd.f32 0.0, %v2504
      %v2506 = vpop.f32.mrb[0].mxu0
      %v2507 = vpop.f32.mrb[0].mxu0
      %v2508 = vadd.f32 0.0, %v2507
      %v2509 = vpop.f32.mrb[0].mxu0
      %2510 = vmatprep.mubr.bf16.mxu0 0
      %2511 = vmatmul.mubr.bf16.gmra.mrb[0].mxu0 %v2392
      %v2512 = vpop.f32.mrb[0].mxu0
      %v2513 = vadd.f32 0.0, %v2512
      %v2514 = vpop.f32.mrb[0].mxu0
      %v2515 = vpop.f32.mrb[0].mxu0
      %v2516 = vadd.f32 0.0, %v2515
      %v2517 = vpop.f32.mrb[0].mxu0
      %2518 = vmatprep.mubr.bf16.mxu0 0
      %2519 = vmatmul.mubr.bf16.gmra.mrb[0].mxu0 %v2395
      %v2520 = vpop.f32.mrb[0].mxu0
      %v2521 = vadd.f32 0.0, %v2520
      %v2522 = vpop.f32.mrb[0].mxu0
      %v2523 = vpop.f32.mrb[0].mxu0
      %v2524 = vadd.f32 0.0, %v2523
      %v2525 = vpop.f32.mrb[0].mxu0
      %2526 = vmatprep.mubr.bf16.mxu0 0
      %2527 = vmatmul.mubr.bf16.gmra.mrb[0].mxu0 %v2398
      %v2528 = vpop.f32.mrb[0].mxu0
      %v2529 = vadd.f32 0.0, %v2528
      %v2530 = vpop.f32.mrb[0].mxu0
      %v2531 = vpop.f32.mrb[0].mxu0
      %v2532 = vadd.f32 0.0, %v2531
      %v2533 = vpop.f32.mrb[0].mxu0
      %2534 = vmatprep.mubr.bf16.mxu0 0
      %2535 = vmatmul.mubr.bf16.gmra.mrb[0].mxu0 %v2401
      %v2536 = vpop.f32.mrb[0].mxu0
      %v2537 = vadd.f32 0.0, %v2536
      %v2538 = vpop.f32.mrb[0].mxu0
      %v2539 = vpop.f32.mrb[0].mxu0
      %v2540 = vadd.f32 0.0, %v2539
      %v2541 = vpop.f32.mrb[0].mxu0
      %2542 = vmatprep.mubr.bf16.mxu0 0
      %2543 = vmatmul.mubr.bf16.gmra.mrb[0].mxu0 %v2404
      %v2544 = vpop.f32.mrb[0].mxu0
      %v2545 = vadd.f32 0.0, %v2544
      %v2546 = vpop.f32.mrb[0].mxu0
      %v2547 = vpop.f32.mrb[0].mxu0
      %v2548 = vadd.f32 0.0, %v2547
      %v2549 = vpop.f32.mrb[0].mxu0
      %2550 = vmatprep.mubr.bf16.mxu0 0
      %2551 = vmatmul.mubr.bf16.gmra.mrb[0].mxu0 %v2407
      %v2552 = vpop.f32.mrb[0].mxu0
      %v2553 = vadd.f32 0.0, %v2552
      %v2554 = vpop.f32.mrb[0].mxu0
      %v2555 = vpop.f32.mrb[0].mxu0
      %v2556 = vadd.f32 0.0, %v2555
      %v2557 = vpop.f32.mrb[0].mxu0
      %2558 = vmatprep.mubr.bf16.mxu0 0
      %2559 = vmatmul.mubr.bf16.gmra.mrb[0].mxu0 %v2410
      %v2560 = vpop.f32.mrb[0].mxu0
      %v2561 = vadd.f32 0.0, %v2560
      %v2562 = vpop.f32.mrb[0].mxu0
      %v2563 = vpop.f32.mrb[0].mxu0
      %v2564 = vadd.f32 0.0, %v2563
      %v2565 = vpop.f32.mrb[0].mxu0
      %2566 = vmatprep.mubr.bf16.mxu0 0
      %2567 = vmatmul.mubr.bf16.gmra.mrb[0].mxu0 %v2413
      %v2568 = vpop.f32.mrb[0].mxu0
      %v2569 = vadd.f32 0.0, %v2568
      %v2570 = vpop.f32.mrb[0].mxu0
      %v2571 = vpop.f32.mrb[0].mxu0
      %v2572 = vadd.f32 0.0, %v2571
      %v2573 = vpop.f32.mrb[0].mxu0
      %2574 = vmatprep.mubr.bf16.mxu0 0
      %2575 = vmatmul.mubr.bf16.gmra.mrb[0].mxu0 %v2416
      %v2576 = vpop.f32.mrb[0].mxu0
      %v2577 = vadd.f32 0.0, %v2576
      %v2578 = vpop.f32.mrb[0].mxu0
      %v2579 = vpop.f32.mrb[0].mxu0
      %v2580 = vadd.f32 0.0, %v2579
      %v2581 = vpop.f32.mrb[0].mxu0
      %2582 = vmatprep.mubr.bf16.mxu0 0
      %2583 = vmatmul.mubr.bf16.gmra.mrb[0].mxu0 %v2419
      %v2584 = vpop.f32.mrb[0].mxu0
      %v2585 = vadd.f32 0.0, %v2584
      %v2586 = vpop.f32.mrb[0].mxu0
      %v2587 = vpop.f32.mrb[0].mxu0
      %v2588 = vadd.f32 0.0, %v2587
      %v2589 = vpop.f32.mrb[0].mxu0
      %2590 = vmatprep.mubr.bf16.mxu0 0
      %2591 = vmatmul.mubr.bf16.gmra.mrb[0].mxu0 %v2422
      %v2592 = vpop.f32.mrb[0].mxu0
      %v2593 = vadd.f32 0.0, %v2592
      %v2594 = vpop.f32.mrb[0].mxu0
      %v2595 = vpop.f32.mrb[0].mxu0
      %v2596 = vadd.f32 0.0, %v2595
      %v2597 = vpop.f32.mrb[0].mxu0
      %2598 = vmatprep.mubr.bf16.mxu0 0
      %2599 = vmatmul.mubr.bf16.gmra.mrb[0].mxu0 %v2425
      %v2600 = vpop.f32.mrb[0].mxu0
      %v2601 = vadd.f32 0.0, %v2600
      %v2602 = vpop.f32.mrb[0].mxu0
      %v2603 = vpop.f32.mrb[0].mxu0
      %v2604 = vadd.f32 0.0, %v2603
      %v2605 = vpop.f32.mrb[0].mxu0
      %2606 = vdwg.mxu0
      %v2607 = vadd.f32 %v2293, %v2465
      %v2608 = vadd.f32 %v2294, %v2468
      %v2609 = vadd.f32 %v2295, %v2473
      %v2610 = vadd.f32 %v2296, %v2476
      %v2611 = vadd.f32 %v2297, %v2481
      %v2612 = vadd.f32 %v2298, %v2484
      %v2613 = vadd.f32 %v2299, %v2489
      %v2614 = vadd.f32 %v2300, %v2492
      %v2615 = vadd.f32 %v2301, %v2497
      %v2616 = vadd.f32 %v2302, %v2500
      %v2617 = vadd.f32 %v2303, %v2505
      %v2618 = vadd.f32 %v2304, %v2508
      %v2619 = vadd.f32 %v2305, %v2513
      %v2620 = vadd.f32 %v2306, %v2516
      %v2621 = vadd.f32 %v2307, %v2521
      %v2622 = vadd.f32 %v2308, %v2524
      %v2623 = vadd.f32 %v2309, %v2529
      %v2624 = vadd.f32 %v2310, %v2532
      %v2625 = vadd.f32 %v2311, %v2537
      %v2626 = vadd.f32 %v2312, %v2540
      %v2627 = vadd.f32 %v2313, %v2545
      %v2628 = vadd.f32 %v2314, %v2548
      %v2629 = vadd.f32 %v2315, %v2553
      %v2630 = vadd.f32 %v2316, %v2556
      %v2631 = vadd.f32 %v2317, %v2561
      %v2632 = vadd.f32 %v2318, %v2564
      %v2633 = vadd.f32 %v2319, %v2569
      %v2634 = vadd.f32 %v2320, %v2572
      %v2635 = vadd.f32 %v2321, %v2577
      %v2636 = vadd.f32 %v2322, %v2580
      %v2637 = vadd.f32 %v2323, %v2585
      %v2638 = vadd.f32 %v2324, %v2588
      %v2639 = vadd.f32 %v2325, %v2593
      %v2640 = vadd.f32 %v2326, %v2596
      %v2641 = vadd.f32 %v2327, %v2601
      %v2642 = vadd.f32 %v2328, %v2604
      %v2643 = vld [vmem:[%s165 + $0x10] sm:$0xc]
      %v2644 = vld [vmem:[%s165 + $0x14] sm:$0xf]
      %v2645 = vld [vmem:[%s165 + $0x18] sm:$0xf]
      %v2646 = vld [vmem:[%s165 + $0x1c] sm:$0xf]
      %v2647 = vld [vmem:[%s165 + $0x20] sm:$0xf]
      %v2648 = vld [vmem:[%s165 + $0x24] sm:$0xf]
      %v2649 = vld [vmem:[%s165 + $0x28] sm:$0xf]
      %v2650 = vld [vmem:[%s165 + $0x2c] sm:$0xf]
      %v2651 = vld [vmem:[%s165 + $0x30] sm:$0xf]
      %v2652 = vld [vmem:[%s165 + $0x34] sm:$0xf]
      %v2653 = vld [vmem:[%s165 + $0x38] sm:$0xf]
      %v2654 = vld [vmem:[%s165 + $0x3c] sm:$0xf]
      %v2655 = vld [vmem:[%s165 + $0x40] sm:$0xf]
      %v2656 = vld [vmem:[%s165 + $0x44] sm:$0xf]
      %v2657 = vld [vmem:[%s165 + $0x48] sm:$0xf]
      %v2658 = vld [vmem:[%s165 + $0x4c] sm:$0xf]
      %v2659 = vld [vmem:[%s165 + $0x50] sm:$0xf]
      %v2660 = vld [vmem:[%s165 + $0x54] sm:$0xf]
      %v2661 = vld [vmem:[%s165 + $0x58] sm:$0xf]
      %v2662 = vld [vmem:[%s165 + $0x5c] sm:$0xf]
      %v2663 = vld [vmem:[%s165 + $0x60] sm:$0xf]
      %v2664 = vld [vmem:[%s165 + $0x64] sm:$0xf]
      %v2665 = vld [vmem:[%s165 + $0x68] sm:$0xf]
      %v2666 = vld [vmem:[%s165 + $0x6c] sm:$0xf]
      %v2667 = vld [vmem:[%s165 + $0x70] sm:$0xf]
      %v2668 = vld [vmem:[%s165 + $0x74] sm:$0xf]
      %v2669 = vld [vmem:[%s165 + $0x78] sm:$0xf]
      %v2670 = vld [vmem:[%s165 + $0x7c] sm:$0xf]
      %v2671 = vld [vmem:[%s165 + $0x80] sm:$0xf]
      %v2672 = vld [vmem:[%s165 + $0x84] sm:$0xf]
      %v2673 = vld [vmem:[%s165 + $0x88] sm:$0xf]
      %v2674 = vld [vmem:[%s165 + $0x8c] sm:$0xf]
      %v2675 = vld [vmem:[%s165 + $0x90] sm:$0xf]
      %v2676 = vld [vmem:[%s165 + $0x94] sm:$0xf]
      %v2677 = vld [vmem:[%s165 + $0x98] sm:$0xf]
      %v2678 = vld [vmem:[%s165 + $0x9c] sm:$0xf]
      %v2679 = vld [vmem:[%s165 + $0xa0] sm:$0x3]
      %s2680 = scalar_lea.vmem %s1, 12
      %v2681 = vld [vmem:[%s2680] sm:$0x3]
      %v2719 = vunpack.c.l.b16 %v2643
      %v2720 = vunpack.c.l.b16 %v2644
      %v2721 = vunpack.c.l.b16 %v2645
      %v2722 = vunpack.c.l.b16 %v2646
      %v2723 = vunpack.c.l.b16 %v2647
      %v2724 = vunpack.c.l.b16 %v2648
      %v2725 = vunpack.c.l.b16 %v2649
      %v2726 = vunpack.c.l.b16 %v2650
      %v2727 = vunpack.c.l.b16 %v2651
      %v2728 = vunpack.c.l.b16 %v2652
      %v2729 = vunpack.c.l.b16 %v2653
      %v2730 = vunpack.c.l.b16 %v2654
      %v2731 = vunpack.c.l.b16 %v2655
      %v2732 = vunpack.c.l.b16 %v2656
      %v2733 = vunpack.c.l.b16 %v2657
      %v2734 = vunpack.c.l.b16 %v2658
      %v2735 = vunpack.c.l.b16 %v2659
      %v2736 = vunpack.c.l.b16 %v2660
      %v2737 = vunpack.c.l.b16 %v2661
      %v2738 = vunpack.c.l.b16 %v2662
      %v2739 = vunpack.c.l.b16 %v2663
      %v2740 = vunpack.c.l.b16 %v2664
      %v2741 = vunpack.c.l.b16 %v2665
      %v2742 = vunpack.c.l.b16 %v2666
      %v2743 = vunpack.c.l.b16 %v2667
      %v2744 = vunpack.c.l.b16 %v2668
      %v2745 = vunpack.c.l.b16 %v2669
      %v2746 = vunpack.c.l.b16 %v2670
      %v2747 = vunpack.c.l.b16 %v2671
      %v2748 = vunpack.c.l.b16 %v2672
      %v2749 = vunpack.c.l.b16 %v2673
      %v2750 = vunpack.c.l.b16 %v2674
      %v2751 = vunpack.c.l.b16 %v2675
      %v2752 = vunpack.c.l.b16 %v2676
      %v2753 = vunpack.c.l.b16 %v2677
      %v2754 = vunpack.c.l.b16 %v2678
      %v2755 = vunpack.c.l.b16 %v2679
      %v2756 = vpack.c.b16 %v2720, %v2719
      %v2757 = vpack.c.b16 %v2722, %v2721
      %v2758 = vpack.c.b16 %v2724, %v2723
      %v2759 = vpack.c.b16 %v2726, %v2725
      %v2760 = vpack.c.b16 %v2728, %v2727
      %v2761 = vpack.c.b16 %v2730, %v2729
      %v2762 = vpack.c.b16 %v2732, %v2731
      %v2763 = vpack.c.b16 %v2734, %v2733
      %v2764 = vpack.c.b16 %v2736, %v2735
      %v2765 = vpack.c.b16 %v2738, %v2737
      %v2766 = vpack.c.b16 %v2740, %v2739
      %v2767 = vpack.c.b16 %v2742, %v2741
      %v2768 = vpack.c.b16 %v2744, %v2743
      %v2769 = vpack.c.b16 %v2746, %v2745
      %v2770 = vpack.c.b16 %v2748, %v2747
      %v2771 = vpack.c.b16 %v2750, %v2749
      %v2772 = vpack.c.b16 %v2752, %v2751
      %v2773 = vpack.c.b16 %v2754, %v2753
      %v2774 = vpack.c.b16 %v2755, %v2755
      %v2775 = vrot.slane %v2756, 2
      %v2776 = vrot.slane %v2757, 2
      %v2777 = vsel %vm2335, %v2775, %v2776
      %v2778 = vrot.slane %v2758, 2
      %v2779 = vsel %vm2335, %v2776, %v2778
      %v2780 = vrot.slane %v2759, 2
      %v2781 = vsel %vm2335, %v2778, %v2780
      %v2782 = vrot.slane %v2760, 2
      %v2783 = vsel %vm2335, %v2780, %v2782
      %v2784 = vrot.slane %v2761, 2
      %v2785 = vsel %vm2335, %v2782, %v2784
      %v2786 = vrot.slane %v2762, 2
      %v2787 = vsel %vm2335, %v2784, %v2786
      %v2788 = vrot.slane %v2763, 2
      %v2789 = vsel %vm2335, %v2786, %v2788
      %v2790 = vrot.slane %v2764, 2
      %v2791 = vsel %vm2335, %v2788, %v2790
      %v2792 = vrot.slane %v2765, 2
      %v2793 = vsel %vm2335, %v2790, %v2792
      %v2794 = vrot.slane %v2766, 2
      %v2795 = vsel %vm2335, %v2792, %v2794
      %v2796 = vrot.slane %v2767, 2
      %v2797 = vsel %vm2335, %v2794, %v2796
      %v2798 = vrot.slane %v2768, 2
      %v2799 = vsel %vm2335, %v2796, %v2798
      %v2800 = vrot.slane %v2769, 2
      %v2801 = vsel %vm2335, %v2798, %v2800
      %v2802 = vrot.slane %v2770, 2
      %v2803 = vsel %vm2335, %v2800, %v2802
      %v2804 = vrot.slane %v2771, 2
      %v2805 = vsel %vm2335, %v2802, %v2804
      %v2806 = vrot.slane %v2772, 2
      %v2807 = vsel %vm2335, %v2804, %v2806
      %v2808 = vrot.slane %v2773, 2
      %v2809 = vsel %vm2335, %v2806, %v2808
      %v2810 = vrot.slane %v2774, 2
      %v2811 = vsel %vm2335, %v2808, %v2810
      %v2813 = vsel %vm306, %v2777, 0
      %v2816 = vsel %vm306, %v2779, 0
      %v2819 = vsel %vm306, %v2781, 0
      %v2822 = vsel %vm306, %v2783, 0
      %v2825 = vsel %vm306, %v2785, 0
      %v2828 = vsel %vm306, %v2787, 0
      %v2831 = vsel %vm306, %v2789, 0
      %v2834 = vsel %vm306, %v2791, 0
      %v2837 = vsel %vm306, %v2793, 0
      %v2840 = vsel %vm306, %v2795, 0
      %v2843 = vsel %vm306, %v2797, 0
      %v2846 = vsel %vm306, %v2799, 0
      %v2849 = vsel %vm306, %v2801, 0
      %v2852 = vsel %vm306, %v2803, 0
      %v2855 = vsel %vm306, %v2805, 0
      %v2858 = vsel %vm306, %v2807, 0
      %v2861 = vsel %vm306, %v2809, 0
      %v2864 = vsel %vm306, %v2811, 0
      %v2867 = vsel %vm361, %v2681, 0
      %2869 = vmatprep.subr.bf16.mxu0 0
      %2870 = vmatpush1.bf16.msra.mxu0 %v2867
      %2871 = vmatprep.subr.bf16.mxu0 0
      %2872 = vmatpush1.bf16.msra.mxu0 0
      %2873 = vmatprep.subr.bf16.mxu0 0
      %2874 = vmatpush1.bf16.msra.mxu0 0
      %2875 = vmatprep.subr.bf16.mxu0 0
      %2876 = vmatpush1.bf16.msra.mxu0 0
      %2877 = vmatprep.subr.bf16.mxu0 0
      %2878 = vmatpush1.bf16.msra.mxu0 0
      %2879 = vmatprep.subr.bf16.mxu0 0
      %2880 = vmatpush1.bf16.msra.mxu0 0
      %2881 = vmatprep.subr.bf16.mxu0 0
      %2882 = vmatpush1.bf16.msra.mxu0 0
      %2883 = vmatprep.subr.bf16.mxu0 0
      %2884 = vmatpush1.bf16.msra.mxu0 0
      %2885 = vmatprep.subr.bf16.mxu0 0
      %2886 = vmatpush1.bf16.msra.mxu0 0
      %2887 = vmatprep.subr.bf16.mxu0 0
      %2888 = vmatpush1.bf16.msra.mxu0 0
      %2889 = vmatprep.subr.bf16.mxu0 0
      %2890 = vmatpush1.bf16.msra.mxu0 0
      %2891 = vmatprep.subr.bf16.mxu0 0
      %2892 = vmatpush1.bf16.msra.mxu0 0
      %2893 = vmatprep.subr.bf16.mxu0 0
      %2894 = vmatpush1.bf16.msra.mxu0 0
      %2895 = vmatprep.subr.bf16.mxu0 0
      %2896 = vmatpush1.bf16.msra.mxu0 0
      %2897 = vmatprep.subr.bf16.mxu0 0
      %2898 = vmatpush1.bf16.msra.mxu0 0
      %2899 = vmatprep.subr.bf16.mxu0 0
      %2900 = vmatpush1.bf16.msra.mxu0 0
      %2901 = vmatprep.mubr.bf16.mxu0 0
      %2902 = vmatmul.mubr.bf16.gmra.mrb[0].mxu0 %v2813
      %v2903 = vpop.f32.mrb[0].mxu0
      %v2904 = vadd.f32 0.0, %v2903
      %v2905 = vpop.f32.mrb[0].mxu0
      %v2906 = vpop.f32.mrb[0].mxu0
      %v2907 = vadd.f32 0.0, %v2906
      %v2908 = vpop.f32.mrb[0].mxu0
      %2909 = vmatprep.mubr.bf16.mxu0 0
      %2910 = vmatmul.mubr.bf16.gmra.mrb[0].mxu0 %v2816
      %v2911 = vpop.f32.mrb[0].mxu0
      %v2912 = vadd.f32 0.0, %v2911
      %v2913 = vpop.f32.mrb[0].mxu0
      %v2914 = vpop.f32.mrb[0].mxu0
      %v2915 = vadd.f32 0.0, %v2914
      %v2916 = vpop.f32.mrb[0].mxu0
      %2917 = vmatprep.mubr.bf16.mxu0 0
      %2918 = vmatmul.mubr.bf16.gmra.mrb[0].mxu0 %v2819
      %v2919 = vpop.f32.mrb[0].mxu0
      %v2920 = vadd.f32 0.0, %v2919
      %v2921 = vpop.f32.mrb[0].mxu0
      %v2922 = vpop.f32.mrb[0].mxu0
      %v2923 = vadd.f32 0.0, %v2922
      %v2924 = vpop.f32.mrb[0].mxu0
      %2925 = vmatprep.mubr.bf16.mxu0 0
      %2926 = vmatmul.mubr.bf16.gmra.mrb[0].mxu0 %v2822
      %v2927 = vpop.f32.mrb[0].mxu0
      %v2928 = vadd.f32 0.0, %v2927
      %v2929 = vpop.f32.mrb[0].mxu0
      %v2930 = vpop.f32.mrb[0].mxu0
      %v2931 = vadd.f32 0.0, %v2930
      %v2932 = vpop.f32.mrb[0].mxu0
      %2933 = vmatprep.mubr.bf16.mxu0 0
      %2934 = vmatmul.mubr.bf16.gmra.mrb[0].mxu0 %v2825
      %v2935 = vpop.f32.mrb[0].mxu0
      %v2936 = vadd.f32 0.0, %v2935
      %v2937 = vpop.f32.mrb[0].mxu0
      %v2938 = vpop.f32.mrb[0].mxu0
      %v2939 = vadd.f32 0.0, %v2938
      %v2940 = vpop.f32.mrb[0].mxu0
      %2941 = vmatprep.mubr.bf16.mxu0 0
      %2942 = vmatmul.mubr.bf16.gmra.mrb[0].mxu0 %v2828
      %v2943 = vpop.f32.mrb[0].mxu0
      %v2944 = vadd.f32 0.0, %v2943
      %v2945 = vpop.f32.mrb[0].mxu0
      %v2946 = vpop.f32.mrb[0].mxu0
      %v2947 = vadd.f32 0.0, %v2946
      %v2948 = vpop.f32.mrb[0].mxu0
      %2949 = vmatprep.mubr.bf16.mxu0 0
      %2950 = vmatmul.mubr.bf16.gmra.mrb[0].mxu0 %v2831
      %v2951 = vpop.f32.mrb[0].mxu0
      %v2952 = vadd.f32 0.0, %v2951
      %v2953 = vpop.f32.mrb[0].mxu0
      %v2954 = vpop.f32.mrb[0].mxu0
      %v2955 = vadd.f32 0.0, %v2954
      %v2956 = vpop.f32.mrb[0].mxu0
      %2957 = vmatprep.mubr.bf16.mxu0 0
      %2958 = vmatmul.mubr.bf16.gmra.mrb[0].mxu0 %v2834
      %v2959 = vpop.f32.mrb[0].mxu0
      %v2960 = vadd.f32 0.0, %v2959
      %v2961 = vpop.f32.mrb[0].mxu0
      %v2962 = vpop.f32.mrb[0].mxu0
      %v2963 = vadd.f32 0.0, %v2962
      %v2964 = vpop.f32.mrb[0].mxu0
      %2965 = vmatprep.mubr.bf16.mxu0 0
      %2966 = vmatmul.mubr.bf16.gmra.mrb[0].mxu0 %v2837
      %v2967 = vpop.f32.mrb[0].mxu0
      %v2968 = vadd.f32 0.0, %v2967
      %v2969 = vpop.f32.mrb[0].mxu0
      %v2970 = vpop.f32.mrb[0].mxu0
      %v2971 = vadd.f32 0.0, %v2970
      %v2972 = vpop.f32.mrb[0].mxu0
      %2973 = vmatprep.mubr.bf16.mxu0 0
      %2974 = vmatmul.mubr.bf16.gmra.mrb[0].mxu0 %v2840
      %v2975 = vpop.f32.mrb[0].mxu0
      %v2976 = vadd.f32 0.0, %v2975
      %v2977 = vpop.f32.mrb[0].mxu0
      %v2978 = vpop.f32.mrb[0].mxu0
      %v2979 = vadd.f32 0.0, %v2978
      %v2980 = vpop.f32.mrb[0].mxu0
      %2981 = vmatprep.mubr.bf16.mxu0 0
      %2982 = vmatmul.mubr.bf16.gmra.mrb[0].mxu0 %v2843
      %v2983 = vpop.f32.mrb[0].mxu0
      %v2984 = vadd.f32 0.0, %v2983
      %v2985 = vpop.f32.mrb[0].mxu0
      %v2986 = vpop.f32.mrb[0].mxu0
      %v2987 = vadd.f32 0.0, %v2986
      %v2988 = vpop.f32.mrb[0].mxu0
      %2989 = vmatprep.mubr.bf16.mxu0 0
      %2990 = vmatmul.mubr.bf16.gmra.mrb[0].mxu0 %v2846
      %v2991 = vpop.f32.mrb[0].mxu0
      %v2992 = vadd.f32 0.0, %v2991
      %v2993 = vpop.f32.mrb[0].mxu0
      %v2994 = vpop.f32.mrb[0].mxu0
      %v2995 = vadd.f32 0.0, %v2994
      %v2996 = vpop.f32.mrb[0].mxu0
      %2997 = vmatprep.mubr.bf16.mxu0 0
      %2998 = vmatmul.mubr.bf16.gmra.mrb[0].mxu0 %v2849
      %v2999 = vpop.f32.mrb[0].mxu0
      %v3000 = vadd.f32 0.0, %v2999
      %v3001 = vpop.f32.mrb[0].mxu0
      %v3002 = vpop.f32.mrb[0].mxu0
      %v3003 = vadd.f32 0.0, %v3002
      %v3004 = vpop.f32.mrb[0].mxu0
      %3005 = vmatprep.mubr.bf16.mxu0 0
      %3006 = vmatmul.mubr.bf16.gmra.mrb[0].mxu0 %v2852
      %v3007 = vpop.f32.mrb[0].mxu0
      %v3008 = vadd.f32 0.0, %v3007
      %v3009 = vpop.f32.mrb[0].mxu0
      %v3010 = vpop.f32.mrb[0].mxu0
      %v3011 = vadd.f32 0.0, %v3010
      %v3012 = vpop.f32.mrb[0].mxu0
      %3013 = vmatprep.mubr.bf16.mxu0 0
      %3014 = vmatmul.mubr.bf16.gmra.mrb[0].mxu0 %v2855
      %v3015 = vpop.f32.mrb[0].mxu0
      %v3016 = vadd.f32 0.0, %v3015
      %v3017 = vpop.f32.mrb[0].mxu0
      %v3018 = vpop.f32.mrb[0].mxu0
      %v3019 = vadd.f32 0.0, %v3018
      %v3020 = vpop.f32.mrb[0].mxu0
      %3021 = vmatprep.mubr.bf16.mxu0 0
      %3022 = vmatmul.mubr.bf16.gmra.mrb[0].mxu0 %v2858
      %v3023 = vpop.f32.mrb[0].mxu0
      %v3024 = vadd.f32 0.0, %v3023
      %v3025 = vpop.f32.mrb[0].mxu0
      %v3026 = vpop.f32.mrb[0].mxu0
      %v3027 = vadd.f32 0.0, %v3026
      %v3028 = vpop.f32.mrb[0].mxu0
      %3029 = vmatprep.mubr.bf16.mxu0 0
      %3030 = vmatmul.mubr.bf16.gmra.mrb[0].mxu0 %v2861
      %v3031 = vpop.f32.mrb[0].mxu0
      %v3032 = vadd.f32 0.0, %v3031
      %v3033 = vpop.f32.mrb[0].mxu0
      %v3034 = vpop.f32.mrb[0].mxu0
      %v3035 = vadd.f32 0.0, %v3034
      %v3036 = vpop.f32.mrb[0].mxu0
      %3037 = vmatprep.mubr.bf16.mxu0 0
      %3038 = vmatmul.mubr.bf16.gmra.mrb[0].mxu0 %v2864
      %v3039 = vpop.f32.mrb[0].mxu0
      %v3040 = vadd.f32 0.0, %v3039
      %v3041 = vpop.f32.mrb[0].mxu0
      %v3042 = vpop.f32.mrb[0].mxu0
      %v3043 = vadd.f32 0.0, %v3042
      %v3044 = vpop.f32.mrb[0].mxu0
      %3045 = vdwg.mxu0
      %v3046 = vadd.f32 %v2607, %v2904
      %v3047 = vadd.f32 %v2608, %v2907
      %v3048 = vadd.f32 %v2609, %v2912
      %v3049 = vadd.f32 %v2610, %v2915
      %v3050 = vadd.f32 %v2611, %v2920
      %v3051 = vadd.f32 %v2612, %v2923
      %v3052 = vadd.f32 %v2613, %v2928
      %v3053 = vadd.f32 %v2614, %v2931
      %v3054 = vadd.f32 %v2615, %v2936
      %v3055 = vadd.f32 %v2616, %v2939
      %v3056 = vadd.f32 %v2617, %v2944
      %v3057 = vadd.f32 %v2618, %v2947
      %v3058 = vadd.f32 %v2619, %v2952
      %v3059 = vadd.f32 %v2620, %v2955
      %v3060 = vadd.f32 %v2621, %v2960
      %v3061 = vadd.f32 %v2622, %v2963
      %v3062 = vadd.f32 %v2623, %v2968
      %v3063 = vadd.f32 %v2624, %v2971
      %v3064 = vadd.f32 %v2625, %v2976
      %v3065 = vadd.f32 %v2626, %v2979
      %v3066 = vadd.f32 %v2627, %v2984
      %v3067 = vadd.f32 %v2628, %v2987
      %v3068 = vadd.f32 %v2629, %v2992
      %v3069 = vadd.f32 %v2630, %v2995
      %v3070 = vadd.f32 %v2631, %v3000
      %v3071 = vadd.f32 %v2632, %v3003
      %v3072 = vadd.f32 %v2633, %v3008
      %v3073 = vadd.f32 %v2634, %v3011
      %v3074 = vadd.f32 %v2635, %v3016
      %v3075 = vadd.f32 %v2636, %v3019
      %v3076 = vadd.f32 %v2637, %v3024
      %v3077 = vadd.f32 %v2638, %v3027
      %v3078 = vadd.f32 %v2639, %v3032
      %v3079 = vadd.f32 %v2640, %v3035
      %v3080 = vadd.f32 %v2641, %v3040
      %v3081 = vadd.f32 %v2642, %v3043
      %v3082 = vld [vmem:[%s165 + $0xa0] sm:$0x7]
      %s3083 = scalar_lea.vmem %s1, 14
      %v3084 = vld [vmem:[%s3083] sm:$0x3]
      %v3086 = vunpack.c.l.b16 %v3082
      %v3087 = vpack.c.b16 %v3086, %v3086
      %vm3088 = vsmask.f32 5376
      %v3090 = vshrl.u32 %v2756, 16
      %v3092 = vrot.slane %v3090, 2
      %v3093 = vshll.u32 %v2756, 16
      %v3095 = vrot.slane %v3093, 3
      %v3096 = vor.u32 %v3092, %v3095
      %v3098 = vshrl.u32 %v2757, 16
      %v3100 = vrot.slane %v3098, 2
      %v3101 = vshll.u32 %v2757, 16
      %v3103 = vrot.slane %v3101, 3
      %v3104 = vor.u32 %v3100, %v3103
      %v3105 = vsel %vm3088, %v3096, %v3104
      %v3107 = vshrl.u32 %v2758, 16
      %v3109 = vrot.slane %v3107, 2
      %v3110 = vshll.u32 %v2758, 16
      %v3112 = vrot.slane %v3110, 3
      %v3113 = vor.u32 %v3109, %v3112
      %v3114 = vsel %vm3088, %v3104, %v3113
      %v3116 = vshrl.u32 %v2759, 16
      %v3118 = vrot.slane %v3116, 2
      %v3119 = vshll.u32 %v2759, 16
      %v3121 = vrot.slane %v3119, 3
      %v3122 = vor.u32 %v3118, %v3121
      %v3123 = vsel %vm3088, %v3113, %v3122
      %v3125 = vshrl.u32 %v2760, 16
      %v3127 = vrot.slane %v3125, 2
      %v3128 = vshll.u32 %v2760, 16
      %v3130 = vrot.slane %v3128, 3
      %v3131 = vor.u32 %v3127, %v3130
      %v3132 = vsel %vm3088, %v3122, %v3131
      %v3134 = vshrl.u32 %v2761, 16
      %v3136 = vrot.slane %v3134, 2
      %v3137 = vshll.u32 %v2761, 16
      %v3139 = vrot.slane %v3137, 3
      %v3140 = vor.u32 %v3136, %v3139
      %v3141 = vsel %vm3088, %v3131, %v3140
      %v3143 = vshrl.u32 %v2762, 16
      %v3145 = vrot.slane %v3143, 2
      %v3146 = vshll.u32 %v2762, 16
      %v3148 = vrot.slane %v3146, 3
      %v3149 = vor.u32 %v3145, %v3148
      %v3150 = vsel %vm3088, %v3140, %v3149
      %v3152 = vshrl.u32 %v2763, 16
      %v3154 = vrot.slane %v3152, 2
      %v3155 = vshll.u32 %v2763, 16
      %v3157 = vrot.slane %v3155, 3
      %v3158 = vor.u32 %v3154, %v3157
      %v3159 = vsel %vm3088, %v3149, %v3158
      %v3161 = vshrl.u32 %v2764, 16
      %v3163 = vrot.slane %v3161, 2
      %v3164 = vshll.u32 %v2764, 16
      %v3166 = vrot.slane %v3164, 3
      %v3167 = vor.u32 %v3163, %v3166
      %v3168 = vsel %vm3088, %v3158, %v3167
      %v3170 = vshrl.u32 %v2765, 16
      %v3172 = vrot.slane %v3170, 2
      %v3173 = vshll.u32 %v2765, 16
      %v3175 = vrot.slane %v3173, 3
      %v3176 = vor.u32 %v3172, %v3175
      %v3177 = vsel %vm3088, %v3167, %v3176
      %v3179 = vshrl.u32 %v2766, 16
      %v3181 = vrot.slane %v3179, 2
      %v3182 = vshll.u32 %v2766, 16
      %v3184 = vrot.slane %v3182, 3
      %v3185 = vor.u32 %v3181, %v3184
      %v3186 = vsel %vm3088, %v3176, %v3185
      %v3188 = vshrl.u32 %v2767, 16
      %v3190 = vrot.slane %v3188, 2
      %v3191 = vshll.u32 %v2767, 16
      %v3193 = vrot.slane %v3191, 3
      %v3194 = vor.u32 %v3190, %v3193
      %v3195 = vsel %vm3088, %v3185, %v3194
      %v3197 = vshrl.u32 %v2768, 16
      %v3199 = vrot.slane %v3197, 2
      %v3200 = vshll.u32 %v2768, 16
      %v3202 = vrot.slane %v3200, 3
      %v3203 = vor.u32 %v3199, %v3202
      %v3204 = vsel %vm3088, %v3194, %v3203
      %v3206 = vshrl.u32 %v2769, 16
      %v3208 = vrot.slane %v3206, 2
      %v3209 = vshll.u32 %v2769, 16
      %v3211 = vrot.slane %v3209, 3
      %v3212 = vor.u32 %v3208, %v3211
      %v3213 = vsel %vm3088, %v3203, %v3212
      %v3215 = vshrl.u32 %v2770, 16
      %v3217 = vrot.slane %v3215, 2
      %v3218 = vshll.u32 %v2770, 16
      %v3220 = vrot.slane %v3218, 3
      %v3221 = vor.u32 %v3217, %v3220
      %v3222 = vsel %vm3088, %v3212, %v3221
      %v3224 = vshrl.u32 %v2771, 16
      %v3226 = vrot.slane %v3224, 2
      %v3227 = vshll.u32 %v2771, 16
      %v3229 = vrot.slane %v3227, 3
      %v3230 = vor.u32 %v3226, %v3229
      %v3231 = vsel %vm3088, %v3221, %v3230
      %v3233 = vshrl.u32 %v2772, 16
      %v3235 = vrot.slane %v3233, 2
      %v3236 = vshll.u32 %v2772, 16
      %v3238 = vrot.slane %v3236, 3
      %v3239 = vor.u32 %v3235, %v3238
      %v3240 = vsel %vm3088, %v3230, %v3239
      %v3242 = vshrl.u32 %v2773, 16
      %v3244 = vrot.slane %v3242, 2
      %v3245 = vshll.u32 %v2773, 16
      %v3247 = vrot.slane %v3245, 3
      %v3248 = vor.u32 %v3244, %v3247
      %v3249 = vsel %vm3088, %v3239, %v3248
      %v3251 = vshrl.u32 %v3087, 16
      %v3253 = vrot.slane %v3251, 2
      %v3254 = vshll.u32 %v3087, 16
      %v3256 = vrot.slane %v3254, 3
      %v3257 = vor.u32 %v3253, %v3256
      %v3258 = vsel %vm3088, %v3248, %v3257
      %v3260 = vsel %vm306, %v3105, 0
      %v3263 = vsel %vm306, %v3114, 0
      %v3266 = vsel %vm306, %v3123, 0
      %v3269 = vsel %vm306, %v3132, 0
      %v3272 = vsel %vm306, %v3141, 0
      %v3275 = vsel %vm306, %v3150, 0
      %v3278 = vsel %vm306, %v3159, 0
      %v3281 = vsel %vm306, %v3168, 0
      %v3284 = vsel %vm306, %v3177, 0
      %v3287 = vsel %vm306, %v3186, 0
      %v3290 = vsel %vm306, %v3195, 0
      %v3293 = vsel %vm306, %v3204, 0
      %v3296 = vsel %vm306, %v3213, 0
      %v3299 = vsel %vm306, %v3222, 0
      %v3302 = vsel %vm306, %v3231, 0
      %v3305 = vsel %vm306, %v3240, 0
      %v3308 = vsel %vm306, %v3249, 0
      %v3311 = vsel %vm306, %v3258, 0
      %v3314 = vsel %vm361, %v3084, 0
      %3316 = vmatprep.subr.bf16.mxu0 0
      %3317 = vmatpush1.bf16.msra.mxu0 %v3314
      %3318 = vmatprep.subr.bf16.mxu0 0
      %3319 = vmatpush1.bf16.msra.mxu0 0
      %3320 = vmatprep.subr.bf16.mxu0 0
      %3321 = vmatpush1.bf16.msra.mxu0 0
      %3322 = vmatprep.subr.bf16.mxu0 0
      %3323 = vmatpush1.bf16.msra.mxu0 0
      %3324 = vmatprep.subr.bf16.mxu0 0
      %3325 = vmatpush1.bf16.msra.mxu0 0
      %3326 = vmatprep.subr.bf16.mxu0 0
      %3327 = vmatpush1.bf16.msra.mxu0 0
      %3328 = vmatprep.subr.bf16.mxu0 0
      %3329 = vmatpush1.bf16.msra.mxu0 0
      %3330 = vmatprep.subr.bf16.mxu0 0
      %3331 = vmatpush1.bf16.msra.mxu0 0
      %3332 = vmatprep.subr.bf16.mxu0 0
      %3333 = vmatpush1.bf16.msra.mxu0 0
      %3334 = vmatprep.subr.bf16.mxu0 0
      %3335 = vmatpush1.bf16.msra.mxu0 0
      %3336 = vmatprep.subr.bf16.mxu0 0
      %3337 = vmatpush1.bf16.msra.mxu0 0
      %3338 = vmatprep.subr.bf16.mxu0 0
      %3339 = vmatpush1.bf16.msra.mxu0 0
      %3340 = vmatprep.subr.bf16.mxu0 0
      %3341 = vmatpush1.bf16.msra.mxu0 0
      %3342 = vmatprep.subr.bf16.mxu0 0
      %3343 = vmatpush1.bf16.msra.mxu0 0
      %3344 = vmatprep.subr.bf16.mxu0 0
      %3345 = vmatpush1.bf16.msra.mxu0 0
      %3346 = vmatprep.subr.bf16.mxu0 0
      %3347 = vmatpush1.bf16.msra.mxu0 0
      %3348 = vmatprep.mubr.bf16.mxu0 0
      %3349 = vmatmul.mubr.bf16.gmra.mrb[0].mxu0 %v3260
      %v3350 = vpop.f32.mrb[0].mxu0
      %v3351 = vadd.f32 0.0, %v3350
      %v3352 = vpop.f32.mrb[0].mxu0
      %v3353 = vpop.f32.mrb[0].mxu0
      %v3354 = vadd.f32 0.0, %v3353
      %v3355 = vpop.f32.mrb[0].mxu0
      %3356 = vmatprep.mubr.bf16.mxu0 0
      %3357 = vmatmul.mubr.bf16.gmra.mrb[0].mxu0 %v3263
      %v3358 = vpop.f32.mrb[0].mxu0
      %v3359 = vadd.f32 0.0, %v3358
      %v3360 = vpop.f32.mrb[0].mxu0
      %v3361 = vpop.f32.mrb[0].mxu0
      %v3362 = vadd.f32 0.0, %v3361
      %v3363 = vpop.f32.mrb[0].mxu0
      %3364 = vmatprep.mubr.bf16.mxu0 0
      %3365 = vmatmul.mubr.bf16.gmra.mrb[0].mxu0 %v3266
      %v3366 = vpop.f32.mrb[0].mxu0
      %v3367 = vadd.f32 0.0, %v3366
      %v3368 = vpop.f32.mrb[0].mxu0
      %v3369 = vpop.f32.mrb[0].mxu0
      %v3370 = vadd.f32 0.0, %v3369
      %v3371 = vpop.f32.mrb[0].mxu0
      %3372 = vmatprep.mubr.bf16.mxu0 0
      %3373 = vmatmul.mubr.bf16.gmra.mrb[0].mxu0 %v3269
      %v3374 = vpop.f32.mrb[0].mxu0
      %v3375 = vadd.f32 0.0, %v3374
      %v3376 = vpop.f32.mrb[0].mxu0
      %v3377 = vpop.f32.mrb[0].mxu0
      %v3378 = vadd.f32 0.0, %v3377
      %v3379 = vpop.f32.mrb[0].mxu0
      %3380 = vmatprep.mubr.bf16.mxu0 0
      %3381 = vmatmul.mubr.bf16.gmra.mrb[0].mxu0 %v3272
      %v3382 = vpop.f32.mrb[0].mxu0
      %v3383 = vadd.f32 0.0, %v3382
      %v3384 = vpop.f32.mrb[0].mxu0
      %v3385 = vpop.f32.mrb[0].mxu0
      %v3386 = vadd.f32 0.0, %v3385
      %v3387 = vpop.f32.mrb[0].mxu0
      %3388 = vmatprep.mubr.bf16.mxu0 0
      %3389 = vmatmul.mubr.bf16.gmra.mrb[0].mxu0 %v3275
      %v3390 = vpop.f32.mrb[0].mxu0
      %v3391 = vadd.f32 0.0, %v3390
      %v3392 = vpop.f32.mrb[0].mxu0
      %v3393 = vpop.f32.mrb[0].mxu0
      %v3394 = vadd.f32 0.0, %v3393
      %v3395 = vpop.f32.mrb[0].mxu0
      %3396 = vmatprep.mubr.bf16.mxu0 0
      %3397 = vmatmul.mubr.bf16.gmra.mrb[0].mxu0 %v3278
      %v3398 = vpop.f32.mrb[0].mxu0
      %v3399 = vadd.f32 0.0, %v3398
      %v3400 = vpop.f32.mrb[0].mxu0
      %v3401 = vpop.f32.mrb[0].mxu0
      %v3402 = vadd.f32 0.0, %v3401
      %v3403 = vpop.f32.mrb[0].mxu0
      %3404 = vmatprep.mubr.bf16.mxu0 0
      %3405 = vmatmul.mubr.bf16.gmra.mrb[0].mxu0 %v3281
      %v3406 = vpop.f32.mrb[0].mxu0
      %v3407 = vadd.f32 0.0, %v3406
      %v3408 = vpop.f32.mrb[0].mxu0
      %v3409 = vpop.f32.mrb[0].mxu0
      %v3410 = vadd.f32 0.0, %v3409
      %v3411 = vpop.f32.mrb[0].mxu0
      %3412 = vmatprep.mubr.bf16.mxu0 0
      %3413 = vmatmul.mubr.bf16.gmra.mrb[0].mxu0 %v3284
      %v3414 = vpop.f32.mrb[0].mxu0
      %v3415 = vadd.f32 0.0, %v3414
      %v3416 = vpop.f32.mrb[0].mxu0
      %v3417 = vpop.f32.mrb[0].mxu0
      %v3418 = vadd.f32 0.0, %v3417
      %v3419 = vpop.f32.mrb[0].mxu0
      %3420 = vmatprep.mubr.bf16.mxu0 0
      %3421 = vmatmul.mubr.bf16.gmra.mrb[0].mxu0 %v3287
      %v3422 = vpop.f32.mrb[0].mxu0
      %v3423 = vadd.f32 0.0, %v3422
      %v3424 = vpop.f32.mrb[0].mxu0
      %v3425 = vpop.f32.mrb[0].mxu0
      %v3426 = vadd.f32 0.0, %v3425
      %v3427 = vpop.f32.mrb[0].mxu0
      %3428 = vmatprep.mubr.bf16.mxu0 0
      %3429 = vmatmul.mubr.bf16.gmra.mrb[0].mxu0 %v3290
      %v3430 = vpop.f32.mrb[0].mxu0
      %v3431 = vadd.f32 0.0, %v3430
      %v3432 = vpop.f32.mrb[0].mxu0
      %v3433 = vpop.f32.mrb[0].mxu0
      %v3434 = vadd.f32 0.0, %v3433
      %v3435 = vpop.f32.mrb[0].mxu0
      %3436 = vmatprep.mubr.bf16.mxu0 0
      %3437 = vmatmul.mubr.bf16.gmra.mrb[0].mxu0 %v3293
      %v3438 = vpop.f32.mrb[0].mxu0
      %v3439 = vadd.f32 0.0, %v3438
      %v3440 = vpop.f32.mrb[0].mxu0
      %v3441 = vpop.f32.mrb[0].mxu0
      %v3442 = vadd.f32 0.0, %v3441
      %v3443 = vpop.f32.mrb[0].mxu0
      %3444 = vmatprep.mubr.bf16.mxu0 0
      %3445 = vmatmul.mubr.bf16.gmra.mrb[0].mxu0 %v3296
      %v3446 = vpop.f32.mrb[0].mxu0
      %v3447 = vadd.f32 0.0, %v3446
      %v3448 = vpop.f32.mrb[0].mxu0
      %v3449 = vpop.f32.mrb[0].mxu0
      %v3450 = vadd.f32 0.0, %v3449
      %v3451 = vpop.f32.mrb[0].mxu0
      %3452 = vmatprep.mubr.bf16.mxu0 0
      %3453 = vmatmul.mubr.bf16.gmra.mrb[0].mxu0 %v3299
      %v3454 = vpop.f32.mrb[0].mxu0
      %v3455 = vadd.f32 0.0, %v3454
      %v3456 = vpop.f32.mrb[0].mxu0
      %v3457 = vpop.f32.mrb[0].mxu0
      %v3458 = vadd.f32 0.0, %v3457
      %v3459 = vpop.f32.mrb[0].mxu0
      %3460 = vmatprep.mubr.bf16.mxu0 0
      %3461 = vmatmul.mubr.bf16.gmra.mrb[0].mxu0 %v3302
      %v3462 = vpop.f32.mrb[0].mxu0
      %v3463 = vadd.f32 0.0, %v3462
      %v3464 = vpop.f32.mrb[0].mxu0
      %v3465 = vpop.f32.mrb[0].mxu0
      %v3466 = vadd.f32 0.0, %v3465
      %v3467 = vpop.f32.mrb[0].mxu0
      %3468 = vmatprep.mubr.bf16.mxu0 0
      %3469 = vmatmul.mubr.bf16.gmra.mrb[0].mxu0 %v3305
      %v3470 = vpop.f32.mrb[0].mxu0
      %v3471 = vadd.f32 0.0, %v3470
      %v3472 = vpop.f32.mrb[0].mxu0
      %v3473 = vpop.f32.mrb[0].mxu0
      %v3474 = vadd.f32 0.0, %v3473
      %v3475 = vpop.f32.mrb[0].mxu0
      %3476 = vmatprep.mubr.bf16.mxu0 0
      %3477 = vmatmul.mubr.bf16.gmra.mrb[0].mxu0 %v3308
      %v3478 = vpop.f32.mrb[0].mxu0
      %v3479 = vadd.f32 0.0, %v3478
      %v3480 = vpop.f32.mrb[0].mxu0
      %v3481 = vpop.f32.mrb[0].mxu0
      %v3482 = vadd.f32 0.0, %v3481
      %v3483 = vpop.f32.mrb[0].mxu0
      %3484 = vmatprep.mubr.bf16.mxu0 0
      %3485 = vmatmul.mubr.bf16.gmra.mrb[0].mxu0 %v3311
      %v3486 = vpop.f32.mrb[0].mxu0
      %v3487 = vadd.f32 0.0, %v3486
      %v3488 = vpop.f32.mrb[0].mxu0
      %v3489 = vpop.f32.mrb[0].mxu0
      %v3490 = vadd.f32 0.0, %v3489
      %v3491 = vpop.f32.mrb[0].mxu0
      %3492 = vdwg.mxu0
      %v3493 = vadd.f32 %v3046, %v3351
      %v3494 = vadd.f32 %v3047, %v3354
      %v3495 = vadd.f32 %v3048, %v3359
      %v3496 = vadd.f32 %v3049, %v3362
      %v3497 = vadd.f32 %v3050, %v3367
      %v3498 = vadd.f32 %v3051, %v3370
      %v3499 = vadd.f32 %v3052, %v3375
      %v3500 = vadd.f32 %v3053, %v3378
      %v3501 = vadd.f32 %v3054, %v3383
      %v3502 = vadd.f32 %v3055, %v3386
      %v3503 = vadd.f32 %v3056, %v3391
      %v3504 = vadd.f32 %v3057, %v3394
      %v3505 = vadd.f32 %v3058, %v3399
      %v3506 = vadd.f32 %v3059, %v3402
      %v3507 = vadd.f32 %v3060, %v3407
      %v3508 = vadd.f32 %v3061, %v3410
      %v3509 = vadd.f32 %v3062, %v3415
      %v3510 = vadd.f32 %v3063, %v3418
      %v3511 = vadd.f32 %v3064, %v3423
      %v3512 = vadd.f32 %v3065, %v3426
      %v3513 = vadd.f32 %v3066, %v3431
      %v3514 = vadd.f32 %v3067, %v3434
      %v3515 = vadd.f32 %v3068, %v3439
      %v3516 = vadd.f32 %v3069, %v3442
      %v3517 = vadd.f32 %v3070, %v3447
      %v3518 = vadd.f32 %v3071, %v3450
      %v3519 = vadd.f32 %v3072, %v3455
      %v3520 = vadd.f32 %v3073, %v3458
      %v3521 = vadd.f32 %v3074, %v3463
      %v3522 = vadd.f32 %v3075, %v3466
      %v3523 = vadd.f32 %v3076, %v3471
      %v3524 = vadd.f32 %v3077, %v3474
      %v3525 = vadd.f32 %v3078, %v3479
      %v3526 = vadd.f32 %v3079, %v3482
      %v3527 = vadd.f32 %v3080, %v3487
      %v3528 = vadd.f32 %v3081, %v3490
      %v3529 = vld [vmem:[%s165 + $0x10] sm:$0x8]
      %s3530 = scalar_lea.vmem %s1, 16
      %v3531 = vld [vmem:[%s3530] sm:$0x3]
      %v3533 = vunpack.c.l.b16 %v3529
      %v3534 = vpack.c.b16 %v2720, %v3533
      %vm3535 = vcmask 1044480
      %v3536 = vrot.slane %v3534, 3
      %v3537 = vrot.slane %v2757, 3
      %v3538 = vsel %vm3535, %v3536, %v3537
      %v3539 = vrot.slane %v2758, 3
      %v3540 = vsel %vm3535, %v3537, %v3539
      %v3541 = vrot.slane %v2759, 3
      %v3542 = vsel %vm3535, %v3539, %v3541
      %v3543 = vrot.slane %v2760, 3
      %v3544 = vsel %vm3535, %v3541, %v3543
      %v3545 = vrot.slane %v2761, 3
      %v3546 = vsel %vm3535, %v3543, %v3545
      %v3547 = vrot.slane %v2762, 3
      %v3548 = vsel %vm3535, %v3545, %v3547
      %v3549 = vrot.slane %v2763, 3
      %v3550 = vsel %vm3535, %v3547, %v3549
      %v3551 = vrot.slane %v2764, 3
      %v3552 = vsel %vm3535, %v3549, %v3551
      %v3553 = vrot.slane %v2765, 3
      %v3554 = vsel %vm3535, %v3551, %v3553
      %v3555 = vrot.slane %v2766, 3
      %v3556 = vsel %vm3535, %v3553, %v3555
      %v3557 = vrot.slane %v2767, 3
      %v3558 = vsel %vm3535, %v3555, %v3557
      %v3559 = vrot.slane %v2768, 3
      %v3560 = vsel %vm3535, %v3557, %v3559
      %v3561 = vrot.slane %v2769, 3
      %v3562 = vsel %vm3535, %v3559, %v3561
      %v3563 = vrot.slane %v2770, 3
      %v3564 = vsel %vm3535, %v3561, %v3563
      %v3565 = vrot.slane %v2771, 3
      %v3566 = vsel %vm3535, %v3563, %v3565
      %v3567 = vrot.slane %v2772, 3
      %v3568 = vsel %vm3535, %v3565, %v3567
      %v3569 = vrot.slane %v2773, 3
      %v3570 = vsel %vm3535, %v3567, %v3569
      %v3571 = vrot.slane %v3087, 3
      %v3572 = vsel %vm3535, %v3569, %v3571
      %v3574 = vsel %vm306, %v3538, 0
      %v3577 = vsel %vm306, %v3540, 0
      %v3580 = vsel %vm306, %v3542, 0
      %v3583 = vsel %vm306, %v3544, 0
      %v3586 = vsel %vm306, %v3546, 0
      %v3589 = vsel %vm306, %v3548, 0
      %v3592 = vsel %vm306, %v3550, 0
      %v3595 = vsel %vm306, %v3552, 0
      %v3598 = vsel %vm306, %v3554, 0
      %v3601 = vsel %vm306, %v3556, 0
      %v3604 = vsel %vm306, %v3558, 0
      %v3607 = vsel %vm306, %v3560, 0
      %v3610 = vsel %vm306, %v3562, 0
      %v3613 = vsel %vm306, %v3564, 0
      %v3616 = vsel %vm306, %v3566, 0
      %v3619 = vsel %vm306, %v3568, 0
      %v3622 = vsel %vm306, %v3570, 0
      %v3625 = vsel %vm306, %v3572, 0
      %v3628 = vsel %vm361, %v3531, 0
      %3630 = vmatprep.subr.bf16.mxu0 0
      %3631 = vmatpush1.bf16.msra.mxu0 %v3628
      %3632 = vmatprep.subr.bf16.mxu0 0
      %3633 = vmatpush1.bf16.msra.mxu0 0
      %3634 = vmatprep.subr.bf16.mxu0 0
      %3635 = vmatpush1.bf16.msra.mxu0 0
      %3636 = vmatprep.subr.bf16.mxu0 0
      %3637 = vmatpush1.bf16.msra.mxu0 0
      %3638 = vmatprep.subr.bf16.mxu0 0
      %3639 = vmatpush1.bf16.msra.mxu0 0
      %3640 = vmatprep.subr.bf16.mxu0 0
      %3641 = vmatpush1.bf16.msra.mxu0 0
      %3642 = vmatprep.subr.bf16.mxu0 0
      %3643 = vmatpush1.bf16.msra.mxu0 0
      %3644 = vmatprep.subr.bf16.mxu0 0
      %3645 = vmatpush1.bf16.msra.mxu0 0
      %3646 = vmatprep.subr.bf16.mxu0 0
      %3647 = vmatpush1.bf16.msra.mxu0 0
      %3648 = vmatprep.subr.bf16.mxu0 0
      %3649 = vmatpush1.bf16.msra.mxu0 0
      %3650 = vmatprep.subr.bf16.mxu0 0
      %3651 = vmatpush1.bf16.msra.mxu0 0
      %3652 = vmatprep.subr.bf16.mxu0 0
      %3653 = vmatpush1.bf16.msra.mxu0 0
      %3654 = vmatprep.subr.bf16.mxu0 0
      %3655 = vmatpush1.bf16.msra.mxu0 0
      %3656 = vmatprep.subr.bf16.mxu0 0
      %3657 = vmatpush1.bf16.msra.mxu0 0
      %3658 = vmatprep.subr.bf16.mxu0 0
      %3659 = vmatpush1.bf16.msra.mxu0 0
      %3660 = vmatprep.subr.bf16.mxu0 0
      %3661 = vmatpush1.bf16.msra.mxu0 0
      %3662 = vmatprep.mubr.bf16.mxu0 0
      %3663 = vmatmul.mubr.bf16.gmra.mrb[0].mxu0 %v3574
      %v3664 = vpop.f32.mrb[0].mxu0
      %v3665 = vadd.f32 0.0, %v3664
      %v3666 = vpop.f32.mrb[0].mxu0
      %v3667 = vpop.f32.mrb[0].mxu0
      %v3668 = vadd.f32 0.0, %v3667
      %v3669 = vpop.f32.mrb[0].mxu0
      %3670 = vmatprep.mubr.bf16.mxu0 0
      %3671 = vmatmul.mubr.bf16.gmra.mrb[0].mxu0 %v3577
      %v3672 = vpop.f32.mrb[0].mxu0
      %v3673 = vadd.f32 0.0, %v3672
      %v3674 = vpop.f32.mrb[0].mxu0
      %v3675 = vpop.f32.mrb[0].mxu0
      %v3676 = vadd.f32 0.0, %v3675
      %v3677 = vpop.f32.mrb[0].mxu0
      %3678 = vmatprep.mubr.bf16.mxu0 0
      %3679 = vmatmul.mubr.bf16.gmra.mrb[0].mxu0 %v3580
      %v3680 = vpop.f32.mrb[0].mxu0
      %v3681 = vadd.f32 0.0, %v3680
      %v3682 = vpop.f32.mrb[0].mxu0
      %v3683 = vpop.f32.mrb[0].mxu0
      %v3684 = vadd.f32 0.0, %v3683
      %v3685 = vpop.f32.mrb[0].mxu0
      %3686 = vmatprep.mubr.bf16.mxu0 0
      %3687 = vmatmul.mubr.bf16.gmra.mrb[0].mxu0 %v3583
      %v3688 = vpop.f32.mrb[0].mxu0
      %v3689 = vadd.f32 0.0, %v3688
      %v3690 = vpop.f32.mrb[0].mxu0
      %v3691 = vpop.f32.mrb[0].mxu0
      %v3692 = vadd.f32 0.0, %v3691
      %v3693 = vpop.f32.mrb[0].mxu0
      %3694 = vmatprep.mubr.bf16.mxu0 0
      %3695 = vmatmul.mubr.bf16.gmra.mrb[0].mxu0 %v3586
      %v3696 = vpop.f32.mrb[0].mxu0
      %v3697 = vadd.f32 0.0, %v3696
      %v3698 = vpop.f32.mrb[0].mxu0
      %v3699 = vpop.f32.mrb[0].mxu0
      %v3700 = vadd.f32 0.0, %v3699
      %v3701 = vpop.f32.mrb[0].mxu0
      %3702 = vmatprep.mubr.bf16.mxu0 0
      %3703 = vmatmul.mubr.bf16.gmra.mrb[0].mxu0 %v3589
      %v3704 = vpop.f32.mrb[0].mxu0
      %v3705 = vadd.f32 0.0, %v3704
      %v3706 = vpop.f32.mrb[0].mxu0
      %v3707 = vpop.f32.mrb[0].mxu0
      %v3708 = vadd.f32 0.0, %v3707
      %v3709 = vpop.f32.mrb[0].mxu0
      %3710 = vmatprep.mubr.bf16.mxu0 0
      %3711 = vmatmul.mubr.bf16.gmra.mrb[0].mxu0 %v3592
      %v3712 = vpop.f32.mrb[0].mxu0
      %v3713 = vadd.f32 0.0, %v3712
      %v3714 = vpop.f32.mrb[0].mxu0
      %v3715 = vpop.f32.mrb[0].mxu0
      %v3716 = vadd.f32 0.0, %v3715
      %v3717 = vpop.f32.mrb[0].mxu0
      %3718 = vmatprep.mubr.bf16.mxu0 0
      %3719 = vmatmul.mubr.bf16.gmra.mrb[0].mxu0 %v3595
      %v3720 = vpop.f32.mrb[0].mxu0
      %v3721 = vadd.f32 0.0, %v3720
      %v3722 = vpop.f32.mrb[0].mxu0
      %v3723 = vpop.f32.mrb[0].mxu0
      %v3724 = vadd.f32 0.0, %v3723
      %v3725 = vpop.f32.mrb[0].mxu0
      %3726 = vmatprep.mubr.bf16.mxu0 0
      %3727 = vmatmul.mubr.bf16.gmra.mrb[0].mxu0 %v3598
      %v3728 = vpop.f32.mrb[0].mxu0
      %v3729 = vadd.f32 0.0, %v3728
      %v3730 = vpop.f32.mrb[0].mxu0
      %v3731 = vpop.f32.mrb[0].mxu0
      %v3732 = vadd.f32 0.0, %v3731
      %v3733 = vpop.f32.mrb[0].mxu0
      %3734 = vmatprep.mubr.bf16.mxu0 0
      %3735 = vmatmul.mubr.bf16.gmra.mrb[0].mxu0 %v3601
      %v3736 = vpop.f32.mrb[0].mxu0
      %v3737 = vadd.f32 0.0, %v3736
      %v3738 = vpop.f32.mrb[0].mxu0
      %v3739 = vpop.f32.mrb[0].mxu0
      %v3740 = vadd.f32 0.0, %v3739
      %v3741 = vpop.f32.mrb[0].mxu0
      %3742 = vmatprep.mubr.bf16.mxu0 0
      %3743 = vmatmul.mubr.bf16.gmra.mrb[0].mxu0 %v3604
      %v3744 = vpop.f32.mrb[0].mxu0
      %v3745 = vadd.f32 0.0, %v3744
      %v3746 = vpop.f32.mrb[0].mxu0
      %v3747 = vpop.f32.mrb[0].mxu0
      %v3748 = vadd.f32 0.0, %v3747
      %v3749 = vpop.f32.mrb[0].mxu0
      %3750 = vmatprep.mubr.bf16.mxu0 0
      %3751 = vmatmul.mubr.bf16.gmra.mrb[0].mxu0 %v3607
      %v3752 = vpop.f32.mrb[0].mxu0
      %v3753 = vadd.f32 0.0, %v3752
      %v3754 = vpop.f32.mrb[0].mxu0
      %v3755 = vpop.f32.mrb[0].mxu0
      %v3756 = vadd.f32 0.0, %v3755
      %v3757 = vpop.f32.mrb[0].mxu0
      %3758 = vmatprep.mubr.bf16.mxu0 0
      %3759 = vmatmul.mubr.bf16.gmra.mrb[0].mxu0 %v3610
      %v3760 = vpop.f32.mrb[0].mxu0
      %v3761 = vadd.f32 0.0, %v3760
      %v3762 = vpop.f32.mrb[0].mxu0
      %v3763 = vpop.f32.mrb[0].mxu0
      %v3764 = vadd.f32 0.0, %v3763
      %v3765 = vpop.f32.mrb[0].mxu0
      %3766 = vmatprep.mubr.bf16.mxu0 0
      %3767 = vmatmul.mubr.bf16.gmra.mrb[0].mxu0 %v3613
      %v3768 = vpop.f32.mrb[0].mxu0
      %v3769 = vadd.f32 0.0, %v3768
      %v3770 = vpop.f32.mrb[0].mxu0
      %v3771 = vpop.f32.mrb[0].mxu0
      %v3772 = vadd.f32 0.0, %v3771
      %v3773 = vpop.f32.mrb[0].mxu0
      %3774 = vmatprep.mubr.bf16.mxu0 0
      %3775 = vmatmul.mubr.bf16.gmra.mrb[0].mxu0 %v3616
      %v3776 = vpop.f32.mrb[0].mxu0
      %v3777 = vadd.f32 0.0, %v3776
      %v3778 = vpop.f32.mrb[0].mxu0
      %v3779 = vpop.f32.mrb[0].mxu0
      %v3780 = vadd.f32 0.0, %v3779
      %v3781 = vpop.f32.mrb[0].mxu0
      %3782 = vmatprep.mubr.bf16.mxu0 0
      %3783 = vmatmul.mubr.bf16.gmra.mrb[0].mxu0 %v3619
      %v3784 = vpop.f32.mrb[0].mxu0
      %v3785 = vadd.f32 0.0, %v3784
      %v3786 = vpop.f32.mrb[0].mxu0
      %v3787 = vpop.f32.mrb[0].mxu0
      %v3788 = vadd.f32 0.0, %v3787
      %v3789 = vpop.f32.mrb[0].mxu0
      %3790 = vmatprep.mubr.bf16.mxu0 0
      %3791 = vmatmul.mubr.bf16.gmra.mrb[0].mxu0 %v3622
      %v3792 = vpop.f32.mrb[0].mxu0
      %v3793 = vadd.f32 0.0, %v3792
      %v3794 = vpop.f32.mrb[0].mxu0
      %v3795 = vpop.f32.mrb[0].mxu0
      %v3796 = vadd.f32 0.0, %v3795
      %v3797 = vpop.f32.mrb[0].mxu0
      %3798 = vmatprep.mubr.bf16.mxu0 0
      %3799 = vmatmul.mubr.bf16.gmra.mrb[0].mxu0 %v3625
      %v3800 = vpop.f32.mrb[0].mxu0
      %v3801 = vadd.f32 0.0, %v3800
      %v3802 = vpop.f32.mrb[0].mxu0
      %v3803 = vpop.f32.mrb[0].mxu0
      %v3804 = vadd.f32 0.0, %v3803
      %v3805 = vpop.f32.mrb[0].mxu0
      %3806 = vdwg.mxu0
      %v3807 = vadd.f32 %v3493, %v3665
      %v3808 = vadd.f32 %v3494, %v3668
      %v3809 = vadd.f32 %v3495, %v3673
      %v3810 = vadd.f32 %v3496, %v3676
      %v3811 = vadd.f32 %v3497, %v3681
      %v3812 = vadd.f32 %v3498, %v3684
      %v3813 = vadd.f32 %v3499, %v3689
      %v3814 = vadd.f32 %v3500, %v3692
      %v3815 = vadd.f32 %v3501, %v3697
      %v3816 = vadd.f32 %v3502, %v3700
      %v3817 = vadd.f32 %v3503, %v3705
      %v3818 = vadd.f32 %v3504, %v3708
      %v3819 = vadd.f32 %v3505, %v3713
      %v3820 = vadd.f32 %v3506, %v3716
      %v3821 = vadd.f32 %v3507, %v3721
      %v3822 = vadd.f32 %v3508, %v3724
      %v3823 = vadd.f32 %v3509, %v3729
      %v3824 = vadd.f32 %v3510, %v3732
      %v3825 = vadd.f32 %v3511, %v3737
      %v3826 = vadd.f32 %v3512, %v3740
      %v3827 = vadd.f32 %v3513, %v3745
      %v3828 = vadd.f32 %v3514, %v3748
      %v3829 = vadd.f32 %v3515, %v3753
      %v3830 = vadd.f32 %v3516, %v3756
      %v3831 = vadd.f32 %v3517, %v3761
      %v3832 = vadd.f32 %v3518, %v3764
      %v3833 = vadd.f32 %v3519, %v3769
      %v3834 = vadd.f32 %v3520, %v3772
      %v3835 = vadd.f32 %v3521, %v3777
      %v3836 = vadd.f32 %v3522, %v3780
      %v3837 = vadd.f32 %v3523, %v3785
      %v3838 = vadd.f32 %v3524, %v3788
      %v3839 = vadd.f32 %v3525, %v3793
      %v3840 = vadd.f32 %v3526, %v3796
      %v3841 = vadd.f32 %v3527, %v3801
      %v3842 = vadd.f32 %v3528, %v3804
      %v3843 = vmul.f32 %v3807, 0.1
      %v3844 = vmul.f32 %v3808, 0.1
      %v3845 = vmul.f32 %v3809, 0.1
      %v3846 = vmul.f32 %v3810, 0.1
      %v3847 = vmul.f32 %v3811, 0.1
      %v3848 = vmul.f32 %v3812, 0.1
      %v3849 = vmul.f32 %v3813, 0.1
      %v3850 = vmul.f32 %v3814, 0.1
      %v3851 = vmul.f32 %v3815, 0.1
      %v3852 = vmul.f32 %v3816, 0.1
      %v3853 = vmul.f32 %v3817, 0.1
      %v3854 = vmul.f32 %v3818, 0.1
      %v3855 = vmul.f32 %v3819, 0.1
      %v3856 = vmul.f32 %v3820, 0.1
      %v3857 = vmul.f32 %v3821, 0.1
      %v3858 = vmul.f32 %v3822, 0.1
      %v3859 = vmul.f32 %v3823, 0.1
      %v3860 = vmul.f32 %v3824, 0.1
      %v3861 = vmul.f32 %v3825, 0.1
      %v3862 = vmul.f32 %v3826, 0.1
      %v3863 = vmul.f32 %v3827, 0.1
      %v3864 = vmul.f32 %v3828, 0.1
      %v3865 = vmul.f32 %v3829, 0.1
      %v3866 = vmul.f32 %v3830, 0.1
      %v3867 = vmul.f32 %v3831, 0.1
      %v3868 = vmul.f32 %v3832, 0.1
      %v3869 = vmul.f32 %v3833, 0.1
      %v3870 = vmul.f32 %v3834, 0.1
      %v3871 = vmul.f32 %v3835, 0.1
      %v3872 = vmul.f32 %v3836, 0.1
      %v3873 = vmul.f32 %v3837, 0.1
      %v3874 = vmul.f32 %v3838, 0.1
      %v3875 = vmul.f32 %v3839, 0.1
      %v3876 = vmul.f32 %v3840, 0.1
      %v3877 = vmul.f32 %v3841, 0.1
      %v3878 = vmul.f32 %v3842, 0.1
      %v3879 = vmax.f32 %v3807, %v3843
      %v3880 = vmax.f32 %v3808, %v3844
      %v3881 = vmax.f32 %v3809, %v3845
      %v3882 = vmax.f32 %v3810, %v3846
      %v3883 = vmax.f32 %v3811, %v3847
      %v3884 = vmax.f32 %v3812, %v3848
      %v3885 = vmax.f32 %v3813, %v3849
      %v3886 = vmax.f32 %v3814, %v3850
      %v3887 = vmax.f32 %v3815, %v3851
      %v3888 = vmax.f32 %v3816, %v3852
      %v3889 = vmax.f32 %v3817, %v3853
      %v3890 = vmax.f32 %v3818, %v3854
      %v3891 = vmax.f32 %v3819, %v3855
      %v3892 = vmax.f32 %v3820, %v3856
      %v3893 = vmax.f32 %v3821, %v3857
      %v3894 = vmax.f32 %v3822, %v3858
      %v3895 = vmax.f32 %v3823, %v3859
      %v3896 = vmax.f32 %v3824, %v3860
      %v3897 = vmax.f32 %v3825, %v3861
      %v3898 = vmax.f32 %v3826, %v3862
      %v3899 = vmax.f32 %v3827, %v3863
      %v3900 = vmax.f32 %v3828, %v3864
      %v3901 = vmax.f32 %v3829, %v3865
      %v3902 = vmax.f32 %v3830, %v3866
      %v3903 = vmax.f32 %v3831, %v3867
      %v3904 = vmax.f32 %v3832, %v3868
      %v3905 = vmax.f32 %v3833, %v3869
      %v3906 = vmax.f32 %v3834, %v3870
      %v3907 = vmax.f32 %v3835, %v3871
      %v3908 = vmax.f32 %v3836, %v3872
      %v3909 = vmax.f32 %v3837, %v3873
      %v3910 = vmax.f32 %v3838, %v3874
      %v3911 = vmax.f32 %v3839, %v3875
      %v3912 = vmax.f32 %v3840, %v3876
      %v3913 = vmax.f32 %v3841, %v3877
      %v3914 = vmax.f32 %v3842, %v3878
      %vm3915 = vcmask 64512
      %3916 = vst.msk [vmem:[%s170] sm:$0xff] %vm3915, %v3879
      %3917 = vst.msk [vmem:[%s170 + $0x8] sm:$0xff] %vm3915, %v3880
      %3918 = vst.msk [vmem:[%s170 + $0x10] sm:$0xff] %vm3915, %v3881
      %3919 = vst.msk [vmem:[%s170 + $0x18] sm:$0xff] %vm3915, %v3882
      %3920 = vst.msk [vmem:[%s170 + $0x20] sm:$0xff] %vm3915, %v3883
      %3921 = vst.msk [vmem:[%s170 + $0x28] sm:$0xff] %vm3915, %v3884
      %3922 = vst.msk [vmem:[%s170 + $0x30] sm:$0xff] %vm3915, %v3885
      %3923 = vst.msk [vmem:[%s170 + $0x38] sm:$0xff] %vm3915, %v3886
      %3924 = vst.msk [vmem:[%s170 + $0x40] sm:$0xff] %vm3915, %v3887
      %3925 = vst.msk [vmem:[%s170 + $0x48] sm:$0xff] %vm3915, %v3888
      %3926 = vst.msk [vmem:[%s170 + $0x50] sm:$0xff] %vm3915, %v3889
      %3927 = vst.msk [vmem:[%s170 + $0x58] sm:$0xff] %vm3915, %v3890
      %3928 = vst.msk [vmem:[%s170 + $0x60] sm:$0xff] %vm3915, %v3891
      %3929 = vst.msk [vmem:[%s170 + $0x68] sm:$0xff] %vm3915, %v3892
      %3930 = vst.msk [vmem:[%s170 + $0x70] sm:$0xff] %vm3915, %v3893
      %3931 = vst.msk [vmem:[%s170 + $0x78] sm:$0xff] %vm3915, %v3894
      %3932 = vst.msk [vmem:[%s170 + $0x80] sm:$0xff] %vm3915, %v3895
      %3933 = vst.msk [vmem:[%s170 + $0x88] sm:$0xff] %vm3915, %v3896
      %3934 = vst.msk [vmem:[%s170 + $0x90] sm:$0xff] %vm3915, %v3897
      %3935 = vst.msk [vmem:[%s170 + $0x98] sm:$0xff] %vm3915, %v3898
      %3936 = vst.msk [vmem:[%s170 + $0xa0] sm:$0xff] %vm3915, %v3899
      %3937 = vst.msk [vmem:[%s170 + $0xa8] sm:$0xff] %vm3915, %v3900
      %3938 = vst.msk [vmem:[%s170 + $0xb0] sm:$0xff] %vm3915, %v3901
      %3939 = vst.msk [vmem:[%s170 + $0xb8] sm:$0xff] %vm3915, %v3902
      %3940 = vst.msk [vmem:[%s170 + $0xc0] sm:$0xff] %vm3915, %v3903
      %3941 = vst.msk [vmem:[%s170 + $0xc8] sm:$0xff] %vm3915, %v3904
      %3942 = vst.msk [vmem:[%s170 + $0xd0] sm:$0xff] %vm3915, %v3905
      %3943 = vst.msk [vmem:[%s170 + $0xd8] sm:$0xff] %vm3915, %v3906
      %3944 = vst.msk [vmem:[%s170 + $0xe0] sm:$0xff] %vm3915, %v3907
      %3945 = vst.msk [vmem:[%s170 + $0xe8] sm:$0xff] %vm3915, %v3908
      %3946 = vst.msk [vmem:[%s170 + $0xf0] sm:$0xff] %vm3915, %v3909
      %3947 = vst.msk [vmem:[%s170 + $0xf8] sm:$0xff] %vm3915, %v3910
      %3948 = vst.msk [vmem:[%s170 + $0x100] sm:$0xff] %vm3915, %v3911
      %3949 = vst.msk [vmem:[%s170 + $0x108] sm:$0xff] %vm3915, %v3912
      %3950 = vst.msk [vmem:[%s170 + $0x110] sm:$0xff] %vm3915, %v3913
      %3951 = vst.msk [vmem:[%s170 + $0x118] sm:$0xff] %vm3915, %v3914
      %p3952 = scmp.lt.s32.totalorder %s14, 1
      %s3953 = scalar_select %p3952, %s14, 1
      %s3954 = smul.addr %s3953, 36
      %s3955 = smul.addr %s3954, 8
      %s3956 = scalar_lea.vmem %s3, %s3955
      // Predicated region
      $region33: #{conv_bn_lrelu.1} parent=31 // pred_check
        %p3957 = pneg %p100
      $region34: #{conv_bn_lrelu.1} parent=31 // pred_check_branch
        %3959 = sbr.rel (%p3957) target = $region36
      $region35: #{conv_bn_lrelu.1} parent=31 // pred_region
        _
      $region36: #{conv_bn_lrelu.1} parent=31 // pred_fallthru
        _
    $region32: #{conv_bn_lrelu.1} parent=5 // pred_fallthru
      _
    %p3960 = scmp.le.s32.totalorder 2, %s9
    // Predicated region
    $region37: #{conv_bn_lrelu.1} parent=5 // pred_check
      %p3961 = pneg %p3960
    $region38: #{conv_bn_lrelu.1} parent=5 // pred_check_branch
      %3963 = sbr.rel (%p3961) target = $region40
    $region39: #{conv_bn_lrelu.1} parent=5 // pred_region
      %s3964 = ssub.s32 %s9, 2
      // Predicated region
      $region41: #{conv_bn_lrelu.1} parent=39 // pred_check
        %p3965 = pneg %p106
      $region42: #{conv_bn_lrelu.1} parent=39 // pred_check_branch
        %3967 = sbr.rel (%p3965) target = $region44
      $region43: #{conv_bn_lrelu.1} parent=39 // pred_region
        %p3968 = scmp.lt.s32.totalorder %s15, 1
        %s3969 = scalar_select %p3968, %s15, 1
        %s3970 = smul.addr %s3969, 36
        %s3971 = smul.addr %s3970, 8
        %s3972 = scalar_lea.vmem %s3, %s3971
      $region44: #{conv_bn_lrelu.1} parent=39 // pred_fallthru
        _
    $region40: #{conv_bn_lrelu.1} parent=5 // pred_fallthru
      _
  $region6: #{conv_bn_lrelu.1} parent=0 // loop_footer
    %s13 = sadd.s32 1, %s9
  $region7: #{conv_bn_lrelu.1} parent=0 // loop_footer_branch
    %8 = sbr.rel target = $region3
  $region8: #{conv_bn_lrelu.1} parent=0 // loop_exit
    _

</llo_original>
